<compile_context>
chip_gen: v7x
topology: tpu7x:2x2x1
jax: 0.10.0
libtpu: 0.0.40
codegen_flags: <defaults>
</compile_context>

<pallas_src>
import functools

import jax
import jax.numpy as jnp
from jax.experimental import pallas as pl
from jax.experimental.pallas import tpu as pltpu


# Matmul operand dtype. float32 keeps exact parity with an f32 reference.
# On v6e/v7x set to jnp.bfloat16 at larger H/Din to hit the bf16 MXU rate;
# cell state, gate nonlinearities and accumulation stay float32 either way.
MATMUL_DTYPE = jnp.float32


def _mm(a, b):
    return jnp.dot(a.astype(MATMUL_DTYPE), b.astype(MATMUL_DTYPE),
                   preferred_element_type=jnp.float32)


def _fused_bilstm_kernel(*refs, seq_len, batch_pad, hidden, num_layers):
    """Whole forward in one invocation: stacked bi-LSTM + final Linear.

    refs layout (all whole-array VMEM blocks):
      [0]                x2d       (S*Bp, Din)   time-major rows, batch padded
      [1 + 3*l + 0]      w_ih_cat  (Din_l, 8H)   [fwd | bwd], gate order i,f,o,g
      [1 + 3*l + 1]      w_hh_cat  (H, 8H)       [fwd | bwd], gate order i,f,o,g
      [1 + 3*l + 2]      bias_cat  (1, 8H)       (b_ih + b_hh), same order
      [1 + 3*L + 0]      h0        (2L*Bp, H)    rows [2l*Bp:(2l+1)*Bp]=fwd, next Bp=bwd
      [1 + 3*L + 1]      c0        (2L*Bp, H)
      [1 + 3*L + 2]      lin_w^T   (2H, O)
      [1 + 3*L + 3]      lin_b     (1, O)
      [1 + 3*L + 4]      out       (S*Bp, O)     (output)
      [1 + 3*L + 5]      xp        (S*Bp, 8H)    scratch: fused input projection
      [1 + 3*L + 6/7]    seq a/b   (S*Bp, 2H)    scratch: layer outputs (ping-pong)
    """
    S, Bp, H, L = seq_len, batch_pad, hidden, num_layers
    base = 1 + 3 * L
    x2d_ref = refs[0]
    h0_ref, c0_ref = refs[base], refs[base + 1]
    linw_ref, linb_ref = refs[base + 2], refs[base + 3]
    out_ref = refs[base + 4]
    xp_ref = refs[base + 5]
    seq_refs = (refs[base + 6], refs[base + 7])

    for layer in range(L):
        w_ih = refs[1 + 3 * layer][...]        # (Din_l, 8H)
        w_hh = refs[1 + 3 * layer + 1][...]    # (H, 8H)
        bias = refs[1 + 3 * layer + 2][...]    # (1, 8H)
        w_hh_f = w_hh[:, :4 * H]
        w_hh_b = w_hh[:, 4 * H:]

        # ---- Hoisted input projection: ONE bulk matmul for both directions
        # over all timesteps, written to a VMEM scratch.
        xin = x2d_ref[...] if layer == 0 else seq_refs[(layer - 1) % 2][...]
        xp_ref[...] = _mm(xin, w_ih) + bias

        # Initial states, sublane-stacked: rows [0:Bp] = fwd, [Bp:2Bp] = bwd.
        h = h0_ref[2 * layer * Bp:(2 * layer + 2) * Bp, :]   # (2Bp, H)
        c = c0_ref[2 * layer * Bp:(2 * layer + 2) * Bp, :]   # (2Bp, H)
        seq_out = seq_refs[layer % 2]

        # ---- Serial recurrence, both directions interleaved per iteration.
        # TODO(synk): lax.fori_loop over the scratches for long S; core_map
        # split of the two directions across v7x's two TensorCores.
        for t in range(S):
            tb = S - 1 - t                                    # bwd time index
            x_f = xp_ref[t * Bp:(t + 1) * Bp, :4 * H]         # (Bp, 4H)
            x_b = xp_ref[tb * Bp:(tb + 1) * Bp, 4 * H:]       # (Bp, 4H)
            # Two independent MXU pushes back-to-back: the fwd and bwd
            # dependency chains hide each other's matmul latency.
            g_f = x_f + _mm(h[:Bp], w_hh_f)
            g_b = x_b + _mm(h[Bp:], w_hh_b)
            gates = jnp.concatenate([g_f, g_b], axis=0)       # (2Bp, 4H)
            # Gate order (i, f, o, g): one sigmoid + two tanh cover BOTH
            # directions (3 EUP pushes per step instead of 10).
            sig = jax.nn.sigmoid(gates[:, :3 * H])            # i | f | o
            g_in = jnp.tanh(gates[:, 3 * H:])                 # g
            c = sig[:, H:2 * H] * c + sig[:, :H] * g_in
            h = sig[:, 2 * H:] * jnp.tanh(c)
            # Sublane-aligned scratch stores (Bp = 8): dense operand for the
            # next layer / final Linear, no list-concatenate relayouts.
            seq_out[t * Bp:(t + 1) * Bp, :H] = h[:Bp]         # fwd half, time t
            seq_out[tb * Bp:(tb + 1) * Bp, H:] = h[Bp:]       # bwd half, time tb

    # ---- Dropout is eval-mode identity; .squeeze() is a no-op here.
    # ---- Final Linear fused: single (S*Bp, 2H) x (2H, O) matmul.
    seq_last = seq_refs[(L - 1) % 2][...]
    out_ref[...] = (_mm(seq_last, linw_ref[...]) + linb_ref[...]).astype(out_ref.dtype)


# ---------------------------------------------------------------------------
# Wrapper: one pallas_call for the whole forward.
# ---------------------------------------------------------------------------
def lstm_model_forward(prepared, x, h0, c0):
    """x: (batch, seq, input_size); h0/c0: (2L, batch, H). Returns (seq, batch, O)."""
    B, S, Din = x.shape
    L = len(prepared["layers"])
    H = prepared["layers"][0][1].shape[0]          # w_hh_cat is (H, 8H)
    O = prepared["lin_w_t"].shape[1]
    Bp = max(8, -(-B // 8) * 8)                    # pad batch to a sublane multiple

    # Time-major rows: row t*Bp + b <-> (t, b); padded rows are zero.
    xt = jnp.pad(jnp.transpose(x, (1, 0, 2)), ((0, 0), (0, Bp - B), (0, 0)))
    x2d = xt.reshape(S * Bp, Din)
    h0p = jnp.pad(h0, ((0, 0), (0, Bp - B), (0, 0))).reshape(2 * L * Bp, H)
    c0p = jnp.pad(c0, ((0, 0), (0, Bp - B), (0, 0))).reshape(2 * L * Bp, H)

    vmem = pl.BlockSpec(memory_space=pltpu.MemorySpace.VMEM)
    inputs = [x2d]
    for (w_ih, w_hh, b) in prepared["layers"]:
        inputs += [w_ih, w_hh, b]
    inputs += [h0p, c0p, prepared["lin_w_t"], prepared["lin_b"]]

    kernel = functools.partial(_fused_bilstm_kernel, seq_len=S, batch_pad=Bp,
                               hidden=H, num_layers=L)
    y2d = pl.pallas_call(
        kernel,
        out_shape=jax.ShapeDtypeStruct((S * Bp, O), jnp.float32),
        in_specs=[vmem] * len(inputs),
        out_specs=vmem,
        scratch_shapes=[
            pltpu.VMEM((S * Bp, 8 * H), jnp.float32),   # fused input projection
            pltpu.VMEM((S * Bp, 2 * H), jnp.float32),   # layer output (ping)
            pltpu.VMEM((S * Bp, 2 * H), jnp.float32),   # layer output (pong)
        ],
        compiler_params=pltpu.CompilerParams(vmem_limit_bytes=64 * 1024 * 1024),
    )(*inputs)
    return y2d.reshape(S, Bp, O)[:, :B, :]


# ---------------------------------------------------------------------------
# Parameter init (PyTorch layout / gate order i,f,g,o; pre-transposed weights)
# and kernel-layout preparation (gate permutation + direction concatenation).
# ---------------------------------------------------------------------------
def init_params(key, input_size, hidden_size, num_layers, output_size):
    num_directions = 2
    params = {"layers": []}
    scale = 1.0 / float(hidden_size) ** 0.5
    for layer in range(num_layers):
        layer_in = input_size if layer == 0 else hidden_size * num_directions
        dirs = []
        for _ in range(num_directions):
            key, k1, k2, k3, k4 = jax.random.split(key, 5)
            w_ih_t = jax.random.uniform(k1, (layer_in, 4 * hidden_size),
                                        jnp.float32, -scale, scale)
            w_hh_t = jax.random.uniform(k2, (hidden_size, 4 * hidden_size),
                                        jnp.float32, -scale, scale)
            b_ih = jax.random.uniform(k3, (4 * hidden_size,),
                                      jnp.float32, -scale, scale)
            b_hh = jax.random.uniform(k4, (4 * hidden_size,),
                                      jnp.float32, -scale, scale)
            dirs.append({"w_ih_t": w_ih_t, "w_hh_t": w_hh_t, "b": b_ih + b_hh})
        params["layers"].append(dirs)
    lin_in = hidden_size * num_directions
    lin_scale = 1.0 / float(lin_in) ** 0.5
    key, kw, kb = jax.random.split(key, 3)
    params["lin_w_t"] = jax.random.uniform(kw, (lin_in, output_size),
                                           jnp.float32, -lin_scale, lin_scale)
    params["lin_b"] = jax.random.uniform(kb, (output_size,),
                                         jnp.float32, -lin_scale, lin_scale)
    return params


def _permute_gates(w_t, H):
    """PyTorch gate order (i, f, g, o) -> kernel order (i, f, o, g) on last axis."""
    return jnp.concatenate(
        [w_t[..., :2 * H], w_t[..., 3 * H:4 * H], w_t[..., 2 * H:3 * H]], axis=-1)


def prepare_params(params, hidden_size):
    H = hidden_size
    prep = {"layers": []}
    for dirs in params["layers"]:
        w_ih = jnp.concatenate([_permute_gates(dirs[0]["w_ih_t"], H),
                                _permute_gates(dirs[1]["w_ih_t"], H)], axis=-1)
        w_hh = jnp.concatenate([_permute_gates(dirs[0]["w_hh_t"], H),
                                _permute_gates(dirs[1]["w_hh_t"], H)], axis=-1)
        b = jnp.concatenate([_permute_gates(dirs[0]["b"], H),
                             _permute_gates(dirs[1]["b"], H)], axis=-1)[None, :]
        prep["layers"].append((w_ih, w_hh, b))
    prep["lin_w_t"] = params["lin_w_t"]
    prep["lin_b"] = params["lin_b"][None, :]
    return prep


# ---------------------------------------------------------------------------
# Pure-JAX reference (PyTorch semantics) for a correctness spot-check.
# ---------------------------------------------------------------------------
def lstm_reference(params, x, h0, c0):
    B, S, _ = x.shape
    L = len(params["layers"])
    H = params["layers"][0][0]["w_hh_t"].shape[0]
    hp = jax.lax.Precision.HIGHEST
    layer_in = jnp.transpose(x, (1, 0, 2))                      # (S, B, Din)
    for l in range(L):
        outs = []
        for d in range(2):
            p = params["layers"][l][d]
            h, c = h0[2 * l + d], c0[2 * l + d]
            hs = []
            ts = range(S) if d == 0 else range(S - 1, -1, -1)
            for t in ts:
                gates = (jnp.dot(layer_in[t], p["w_ih_t"], precision=hp)
                         + jnp.dot(h, p["w_hh_t"], precision=hp) + p["b"])
                i_g = jax.nn.sigmoid(gates[:, :H])
                f_g = jax.nn.sigmoid(gates[:, H:2 * H])
                g_g = jnp.tanh(gates[:, 2 * H:3 * H])
                o_g = jax.nn.sigmoid(gates[:, 3 * H:])
                c = f_g * c + i_g * g_g
                h = o_g * jnp.tanh(c)
                hs.append(h)
            if d == 1:
                hs = hs[::-1]
            outs.append(jnp.stack(hs, axis=0))                  # (S, B, H)
        layer_in = jnp.concatenate(outs, axis=-1)               # (S, B, 2H)
    return jnp.dot(layer_in, params["lin_w_t"], precision=hp) + params["lin_b"]


if __name__ == "__main__":
    input_size = 8
    hidden_size = 32
    num_layers = 2
    output_size = 4
    num_directions = 2
    batch = 2
    seq = 8

    key = jax.random.PRNGKey(0)
    k_param, k_x, k_h, k_c = jax.random.split(key, 4)

    params = init_params(k_param, input_size, hidden_size, num_layers,
                         output_size)
    prepared = prepare_params(params, hidden_size)
    x = jax.random.normal(k_x, (batch, seq, input_size), jnp.float32)
    # The PyTorch forward draws h_0/c_0 from torch.randn every call; here they
    # are drawn deterministically with jax.random and passed in explicitly.
    h0 = jax.random.normal(k_h, (num_directions * num_layers, batch,
                                 hidden_size), jnp.float32)
    c0 = jax.random.normal(k_c, (num_directions * num_layers, batch,
                                 hidden_size), jnp.float32)

    fwd = jax.jit(lstm_model_forward)
    out = jax.block_until_ready(fwd(prepared, x, h0, c0))
    assert out.shape == (seq, batch, output_size), out.shape

    ref = lstm_reference(params, x, h0, c0)
    err = float(jnp.max(jnp.abs(out - ref)))
    assert err < 5e-2, f"max abs error vs reference: {err}"
    print("KERNEL_OK")
</pallas_src>

<mosaic_0001>
module attributes {stable_mosaic.version = 11 : i64} {
  func.func @_fused_bilstm_kernel(%arg0: memref<64x8xf32, #tpu.memory_space<vmem>>, %arg1: memref<8x256xf32, #tpu.memory_space<vmem>>, %arg2: memref<32x256xf32, #tpu.memory_space<vmem>>, %arg3: memref<1x256xf32, #tpu.memory_space<vmem>>, %arg4: memref<64x256xf32, #tpu.memory_space<vmem>>, %arg5: memref<32x256xf32, #tpu.memory_space<vmem>>, %arg6: memref<1x256xf32, #tpu.memory_space<vmem>>, %arg7: memref<32x32xf32, #tpu.memory_space<vmem>>, %arg8: memref<32x32xf32, #tpu.memory_space<vmem>>, %arg9: memref<64x4xf32, #tpu.memory_space<vmem>>, %arg10: memref<1x4xf32, #tpu.memory_space<vmem>>, %arg11: memref<64x4xf32, #tpu.memory_space<vmem>>, %arg12: memref<64x256xf32, #tpu.memory_space<vmem>>, %arg13: memref<64x64xf32, #tpu.memory_space<vmem>>, %arg14: memref<64x64xf32, #tpu.memory_space<vmem>>) attributes {dimension_semantics = [], scalar_prefetch = 0 : i64, scratch_operands = 3 : i64, tpu.core_type = #tpu.core_type<tc>} {
    %c0 = arith.constant 0 : index
    %c0_0 = arith.constant 0 : index
    %0 = vector.load %arg1[%c0, %c0_0] : memref<8x256xf32, #tpu.memory_space<vmem>>, vector<8x256xf32>
    %c0_1 = arith.constant 0 : index
    %c0_2 = arith.constant 0 : index
    %1 = vector.load %arg2[%c0_1, %c0_2] : memref<32x256xf32, #tpu.memory_space<vmem>>, vector<32x256xf32>
    %c0_3 = arith.constant 0 : index
    %c0_4 = arith.constant 0 : index
    %2 = vector.load %arg3[%c0_3, %c0_4] : memref<1x256xf32, #tpu.memory_space<vmem>>, vector<1x256xf32>
    %3 = vector.extract_strided_slice %1 {offsets = [0, 0], sizes = [32, 128], strides = [1, 1]} : vector<32x256xf32> to vector<32x128xf32>
    %4 = vector.extract_strided_slice %1 {offsets = [0, 128], sizes = [32, 128], strides = [1, 1]} : vector<32x256xf32> to vector<32x128xf32>
    %c0_5 = arith.constant 0 : index
    %c0_6 = arith.constant 0 : index
    %5 = vector.load %arg0[%c0_5, %c0_6] : memref<64x8xf32, #tpu.memory_space<vmem>>, vector<64x8xf32>
    %cst = arith.constant dense<0.000000e+00> : vector<64x256xf32>
    %6 = tpu.matmul %5, %0, %cst {dimension_numbers = #tpu.dot_dimension_numbers<[1], [0], [0], [1], [0, 0, 1, 1], [], []>} : vector<64x8xf32>, vector<8x256xf32>, vector<64x256xf32> -> vector<64x256xf32>
    %7 = vector.broadcast %2 : vector<1x256xf32> to vector<64x256xf32>
    %8 = arith.addf %6, %7 : vector<64x256xf32>
    %c0_7 = arith.constant 0 : index
    %c0_8 = arith.constant 0 : index
    %9 = vector.load %arg12[%c0_7, %c0_8] : memref<64x256xf32, #tpu.memory_space<vmem>>, vector<64x256xf32>
    tpu.vector_store %arg12[%c0_7, %c0_8], %8 {strides = array<i32>} : memref<64x256xf32, #tpu.memory_space<vmem>>, vector<64x256xf32>,
    %c0_9 = arith.constant 0 : index
    %c0_10 = arith.constant 0 : index
    %10 = vector.load %arg7[%c0_9, %c0_10] : memref<32x32xf32, #tpu.memory_space<vmem>>, vector<16x32xf32>
    %c0_11 = arith.constant 0 : index
    %c0_12 = arith.constant 0 : index
    %11 = vector.load %arg8[%c0_11, %c0_12] : memref<32x32xf32, #tpu.memory_space<vmem>>, vector<16x32xf32>
    %c0_13 = arith.constant 0 : index
    %c0_14 = arith.constant 0 : index
    %12 = vector.load %arg12[%c0_13, %c0_14] : memref<64x256xf32, #tpu.memory_space<vmem>>, vector<8x128xf32>
    %c56 = arith.constant 56 : index
    %c128 = arith.constant 128 : index
    %13 = vector.load %arg12[%c56, %c128] : memref<64x256xf32, #tpu.memory_space<vmem>>, vector<8x128xf32>
    %14 = vector.extract_strided_slice %10 {offsets = [0, 0], sizes = [8, 32], strides = [1, 1]} : vector<16x32xf32> to vector<8x32xf32>
    %cst_15 = arith.constant dense<0.000000e+00> : vector<8x128xf32>
    %15 = tpu.matmul %14, %3, %cst_15 {dimension_numbers = #tpu.dot_dimension_numbers<[1], [0], [0], [1], [0, 0, 1, 1], [], []>} : vector<8x32xf32>, vector<32x128xf32>, vector<8x128xf32> -> vector<8x128xf32>
    %16 = arith.addf %12, %15 : vector<8x128xf32>
    %17 = vector.extract_strided_slice %10 {offsets = [8, 0], sizes = [8, 32], strides = [1, 1]} : vector<16x32xf32> to vector<8x32xf32>
    %cst_16 = arith.constant dense<0.000000e+00> : vector<8x128xf32>
    %18 = tpu.matmul %17, %4, %cst_16 {dimension_numbers = #tpu.dot_dimension_numbers<[1], [0], [0], [1], [0, 0, 1, 1], [], []>} : vector<8x32xf32>, vector<32x128xf32>, vector<8x128xf32> -> vector<8x128xf32>
    %19 = arith.addf %13, %18 : vector<8x128xf32>
    %20 = tpu.concatenate %16, %19 in 0 : vector<8x128xf32>, vector<8x128xf32> -> vector<16x128xf32>
    %21 = vector.extract_strided_slice %20 {offsets = [0, 0], sizes = [16, 96], strides = [1, 1]} : vector<16x128xf32> to vector<16x96xf32>
    %22 = arith.negf %21 : vector<16x96xf32>
    %23 = math.exp %22 : vector<16x96xf32>
    %cst_17 = arith.constant 1.000000e+00 : f32
    %24 = vector.broadcast %cst_17 : f32 to vector<16x96xf32>
    %25 = arith.addf %24, %23 : vector<16x96xf32>
    %26 = arith.divf %24, %25 : vector<16x96xf32>
    %27 = vector.extract_strided_slice %20 {offsets = [0, 96], sizes = [16, 32], strides = [1, 1]} : vector<16x128xf32> to vector<16x32xf32>
    %28 = math.tanh %27 : vector<16x32xf32>
    %29 = vector.extract_strided_slice %26 {offsets = [0, 32], sizes = [16, 32], strides = [1, 1]} : vector<16x96xf32> to vector<16x32xf32>
    %30 = arith.mulf %29, %11 : vector<16x32xf32>
    %31 = vector.extract_strided_slice %26 {offsets = [0, 0], sizes = [16, 32], strides = [1, 1]} : vector<16x96xf32> to vector<16x32xf32>
    %32 = arith.mulf %31, %28 : vector<16x32xf32>
    %33 = arith.addf %30, %32 : vector<16x32xf32>
    %34 = vector.extract_strided_slice %26 {offsets = [0, 64], sizes = [16, 32], strides = [1, 1]} : vector<16x96xf32> to vector<16x32xf32>
    %35 = math.tanh %33 : vector<16x32xf32>
    %36 = arith.mulf %34, %35 : vector<16x32xf32>
    %37 = vector.extract_strided_slice %36 {offsets = [0, 0], sizes = [8, 32], strides = [1, 1]} : vector<16x32xf32> to vector<8x32xf32>
    %c0_18 = arith.constant 0 : index
    %c0_19 = arith.constant 0 : index
    %38 = vector.load %arg13[%c0_18, %c0_19] : memref<64x64xf32, #tpu.memory_space<vmem>>, vector<8x32xf32>
    tpu.vector_store %arg13[%c0_18, %c0_19], %37 {strides = array<i32>} : memref<64x64xf32, #tpu.memory_space<vmem>>, vector<8x32xf32>,
    %39 = vector.extract_strided_slice %36 {offsets = [8, 0], sizes = [8, 32], strides = [1, 1]} : vector<16x32xf32> to vector<8x32xf32>
    %c56_20 = arith.constant 56 : index
    %c32 = arith.constant 32 : index
    %40 = vector.load %arg13[%c56_20, %c32] : memref<64x64xf32, #tpu.memory_space<vmem>>, vector<8x32xf32>
    tpu.vector_store %arg13[%c56_20, %c32], %39 {strides = array<i32>} : memref<64x64xf32, #tpu.memory_space<vmem>>, vector<8x32xf32>,
    %c8 = arith.constant 8 : index
    %c0_21 = arith.constant 0 : index
    %41 = vector.load %arg12[%c8, %c0_21] : memref<64x256xf32, #tpu.memory_space<vmem>>, vector<8x128xf32>
    %c48 = arith.constant 48 : index
    %c128_22 = arith.constant 128 : index
    %42 = vector.load %arg12[%c48, %c128_22] : memref<64x256xf32, #tpu.memory_space<vmem>>, vector<8x128xf32>
    %43 = vector.extract_strided_slice %36 {offsets = [0, 0], sizes = [8, 32], strides = [1, 1]} : vector<16x32xf32> to vector<8x32xf32>
    %cst_23 = arith.constant dense<0.000000e+00> : vector<8x128xf32>
    %44 = tpu.matmul %43, %3, %cst_23 {dimension_numbers = #tpu.dot_dimension_numbers<[1], [0], [0], [1], [0, 0, 1, 1], [], []>} : vector<8x32xf32>, vector<32x128xf32>, vector<8x128xf32> -> vector<8x128xf32>
    %45 = arith.addf %41, %44 : vector<8x128xf32>
    %46 = vector.extract_strided_slice %36 {offsets = [8, 0], sizes = [8, 32], strides = [1, 1]} : vector<16x32xf32> to vector<8x32xf32>
    %cst_24 = arith.constant dense<0.000000e+00> : vector<8x128xf32>
    %47 = tpu.matmul %46, %4, %cst_24 {dimension_numbers = #tpu.dot_dimension_numbers<[1], [0], [0], [1], [0, 0, 1, 1], [], []>} : vector<8x32xf32>, vector<32x128xf32>, vector<8x128xf32> -> vector<8x128xf32>
    %48 = arith.addf %42, %47 : vector<8x128xf32>
    %49 = tpu.concatenate %45, %48 in 0 : vector<8x128xf32>, vector<8x128xf32> -> vector<16x128xf32>
    %50 = vector.extract_strided_slice %49 {offsets = [0, 0], sizes = [16, 96], strides = [1, 1]} : vector<16x128xf32> to vector<16x96xf32>
    %51 = arith.negf %50 : vector<16x96xf32>
    %52 = math.exp %51 : vector<16x96xf32>
    %cst_25 = arith.constant 1.000000e+00 : f32
    %53 = vector.broadcast %cst_25 : f32 to vector<16x96xf32>
    %54 = arith.addf %53, %52 : vector<16x96xf32>
    %55 = arith.divf %53, %54 : vector<16x96xf32>
    %56 = vector.extract_strided_slice %49 {offsets = [0, 96], sizes = [16, 32], strides = [1, 1]} : vector<16x128xf32> to vector<16x32xf32>
    %57 = math.tanh %56 : vector<16x32xf32>
    %58 = vector.extract_strided_slice %55 {offsets = [0, 32], sizes = [16, 32], strides = [1, 1]} : vector<16x96xf32> to vector<16x32xf32>
    %59 = arith.mulf %58, %33 : vector<16x32xf32>
    %60 = vector.extract_strided_slice %55 {offsets = [0, 0], sizes = [16, 32], strides = [1, 1]} : vector<16x96xf32> to vector<16x32xf32>
    %61 = arith.mulf %60, %57 : vector<16x32xf32>
    %62 = arith.addf %59, %61 : vector<16x32xf32>
    %63 = vector.extract_strided_slice %55 {offsets = [0, 64], sizes = [16, 32], strides = [1, 1]} : vector<16x96xf32> to vector<16x32xf32>
    %64 = math.tanh %62 : vector<16x32xf32>
    %65 = arith.mulf %63, %64 : vector<16x32xf32>
    %66 = vector.extract_strided_slice %65 {offsets = [0, 0], sizes = [8, 32], strides = [1, 1]} : vector<16x32xf32> to vector<8x32xf32>
    %c8_26 = arith.constant 8 : index
    %c0_27 = arith.constant 0 : index
    %67 = vector.load %arg13[%c8_26, %c0_27] : memref<64x64xf32, #tpu.memory_space<vmem>>, vector<8x32xf32>
    tpu.vector_store %arg13[%c8_26, %c0_27], %66 {strides = array<i32>} : memref<64x64xf32, #tpu.memory_space<vmem>>, vector<8x32xf32>,
    %68 = vector.extract_strided_slice %65 {offsets = [8, 0], sizes = [8, 32], strides = [1, 1]} : vector<16x32xf32> to vector<8x32xf32>
    %c48_28 = arith.constant 48 : index
    %c32_29 = arith.constant 32 : index
    %69 = vector.load %arg13[%c48_28, %c32_29] : memref<64x64xf32, #tpu.memory_space<vmem>>, vector<8x32xf32>
    tpu.vector_store %arg13[%c48_28, %c32_29], %68 {strides = array<i32>} : memref<64x64xf32, #tpu.memory_space<vmem>>, vector<8x32xf32>,
    %c16 = arith.constant 16 : index
    %c0_30 = arith.constant 0 : index
    %70 = vector.load %arg12[%c16, %c0_30] : memref<64x256xf32, #tpu.memory_space<vmem>>, vector<8x128xf32>
    %c40 = arith.constant 40 : index
    %c128_31 = arith.constant 128 : index
    %71 = vector.load %arg12[%c40, %c128_31] : memref<64x256xf32, #tpu.memory_space<vmem>>, vector<8x128xf32>
    %72 = vector.extract_strided_slice %65 {offsets = [0, 0], sizes = [8, 32], strides = [1, 1]} : vector<16x32xf32> to vector<8x32xf32>
    %cst_32 = arith.constant dense<0.000000e+00> : vector<8x128xf32>
    %73 = tpu.matmul %72, %3, %cst_32 {dimension_numbers = #tpu.dot_dimension_numbers<[1], [0], [0], [1], [0, 0, 1, 1], [], []>} : vector<8x32xf32>, vector<32x128xf32>, vector<8x128xf32> -> vector<8x128xf32>
    %74 = arith.addf %70, %73 : vector<8x128xf32>
    %75 = vector.extract_strided_slice %65 {offsets = [8, 0], sizes = [8, 32], strides = [1, 1]} : vector<16x32xf32> to vector<8x32xf32>
    %cst_33 = arith.constant dense<0.000000e+00> : vector<8x128xf32>
    %76 = tpu.matmul %75, %4, %cst_33 {dimension_numbers = #tpu.dot_dimension_numbers<[1], [0], [0], [1], [0, 0, 1, 1], [], []>} : vector<8x32xf32>, vector<32x128xf32>, vector<8x128xf32> -> vector<8x128xf32>
    %77 = arith.addf %71, %76 : vector<8x128xf32>
    %78 = tpu.concatenate %74, %77 in 0 : vector<8x128xf32>, vector<8x128xf32> -> vector<16x128xf32>
    %79 = vector.extract_strided_slice %78 {offsets = [0, 0], sizes = [16, 96], strides = [1, 1]} : vector<16x128xf32> to vector<16x96xf32>
    %80 = arith.negf %79 : vector<16x96xf32>
    %81 = math.exp %80 : vector<16x96xf32>
    %cst_34 = arith.constant 1.000000e+00 : f32
    %82 = vector.broadcast %cst_34 : f32 to vector<16x96xf32>
    %83 = arith.addf %82, %81 : vector<16x96xf32>
    %84 = arith.divf %82, %83 : vector<16x96xf32>
    %85 = vector.extract_strided_slice %78 {offsets = [0, 96], sizes = [16, 32], strides = [1, 1]} : vector<16x128xf32> to vector<16x32xf32>
    %86 = math.tanh %85 : vector<16x32xf32>
    %87 = vector.extract_strided_slice %84 {offsets = [0, 32], sizes = [16, 32], strides = [1, 1]} : vector<16x96xf32> to vector<16x32xf32>
    %88 = arith.mulf %87, %62 : vector<16x32xf32>
    %89 = vector.extract_strided_slice %84 {offsets = [0, 0], sizes = [16, 32], strides = [1, 1]} : vector<16x96xf32> to vector<16x32xf32>
    %90 = arith.mulf %89, %86 : vector<16x32xf32>
    %91 = arith.addf %88, %90 : vector<16x32xf32>
    %92 = vector.extract_strided_slice %84 {offsets = [0, 64], sizes = [16, 32], strides = [1, 1]} : vector<16x96xf32> to vector<16x32xf32>
    %93 = math.tanh %91 : vector<16x32xf32>
    %94 = arith.mulf %92, %93 : vector<16x32xf32>
    %95 = vector.extract_strided_slice %94 {offsets = [0, 0], sizes = [8, 32], strides = [1, 1]} : vector<16x32xf32> to vector<8x32xf32>
    %c16_35 = arith.constant 16 : index
    %c0_36 = arith.constant 0 : index
    %96 = vector.load %arg13[%c16_35, %c0_36] : memref<64x64xf32, #tpu.memory_space<vmem>>, vector<8x32xf32>
    tpu.vector_store %arg13[%c16_35, %c0_36], %95 {strides = array<i32>} : memref<64x64xf32, #tpu.memory_space<vmem>>, vector<8x32xf32>,
    %97 = vector.extract_strided_slice %94 {offsets = [8, 0], sizes = [8, 32], strides = [1, 1]} : vector<16x32xf32> to vector<8x32xf32>
    %c40_37 = arith.constant 40 : index
    %c32_38 = arith.constant 32 : index
    %98 = vector.load %arg13[%c40_37, %c32_38] : memref<64x64xf32, #tpu.memory_space<vmem>>, vector<8x32xf32>
    tpu.vector_store %arg13[%c40_37, %c32_38], %97 {strides = array<i32>} : memref<64x64xf32, #tpu.memory_space<vmem>>, vector<8x32xf32>,
    %c24 = arith.constant 24 : index
    %c0_39 = arith.constant 0 : index
    %99 = vector.load %arg12[%c24, %c0_39] : memref<64x256xf32, #tpu.memory_space<vmem>>, vector<8x128xf32>
    %c32_40 = arith.constant 32 : index
    %c128_41 = arith.constant 128 : index
    %100 = vector.load %arg12[%c32_40, %c128_41] : memref<64x256xf32, #tpu.memory_space<vmem>>, vector<8x128xf32>
    %101 = vector.extract_strided_slice %94 {offsets = [0, 0], sizes = [8, 32], strides = [1, 1]} : vector<16x32xf32> to vector<8x32xf32>
    %cst_42 = arith.constant dense<0.000000e+00> : vector<8x128xf32>
    %102 = tpu.matmul %101, %3, %cst_42 {dimension_numbers = #tpu.dot_dimension_numbers<[1], [0], [0], [1], [0, 0, 1, 1], [], []>} : vector<8x32xf32>, vector<32x128xf32>, vector<8x128xf32> -> vector<8x128xf32>
    %103 = arith.addf %99, %102 : vector<8x128xf32>
    %104 = vector.extract_strided_slice %94 {offsets = [8, 0], sizes = [8, 32], strides = [1, 1]} : vector<16x32xf32> to vector<8x32xf32>
    %cst_43 = arith.constant dense<0.000000e+00> : vector<8x128xf32>
    %105 = tpu.matmul %104, %4, %cst_43 {dimension_numbers = #tpu.dot_dimension_numbers<[1], [0], [0], [1], [0, 0, 1, 1], [], []>} : vector<8x32xf32>, vector<32x128xf32>, vector<8x128xf32> -> vector<8x128xf32>
    %106 = arith.addf %100, %105 : vector<8x128xf32>
    %107 = tpu.concatenate %103, %106 in 0 : vector<8x128xf32>, vector<8x128xf32> -> vector<16x128xf32>
    %108 = vector.extract_strided_slice %107 {offsets = [0, 0], sizes = [16, 96], strides = [1, 1]} : vector<16x128xf32> to vector<16x96xf32>
    %109 = arith.negf %108 : vector<16x96xf32>
    %110 = math.exp %109 : vector<16x96xf32>
    %cst_44 = arith.constant 1.000000e+00 : f32
    %111 = vector.broadcast %cst_44 : f32 to vector<16x96xf32>
    %112 = arith.addf %111, %110 : vector<16x96xf32>
    %113 = arith.divf %111, %112 : vector<16x96xf32>
    %114 = vector.extract_strided_slice %107 {offsets = [0, 96], sizes = [16, 32], strides = [1, 1]} : vector<16x128xf32> to vector<16x32xf32>
    %115 = math.tanh %114 : vector<16x32xf32>
    %116 = vector.extract_strided_slice %113 {offsets = [0, 32], sizes = [16, 32], strides = [1, 1]} : vector<16x96xf32> to vector<16x32xf32>
    %117 = arith.mulf %116, %91 : vector<16x32xf32>
    %118 = vector.extract_strided_slice %113 {offsets = [0, 0], sizes = [16, 32], strides = [1, 1]} : vector<16x96xf32> to vector<16x32xf32>
    %119 = arith.mulf %118, %115 : vector<16x32xf32>
    %120 = arith.addf %117, %119 : vector<16x32xf32>
    %121 = vector.extract_strided_slice %113 {offsets = [0, 64], sizes = [16, 32], strides = [1, 1]} : vector<16x96xf32> to vector<16x32xf32>
    %122 = math.tanh %120 : vector<16x32xf32>
    %123 = arith.mulf %121, %122 : vector<16x32xf32>
    %124 = vector.extract_strided_slice %123 {offsets = [0, 0], sizes = [8, 32], strides = [1, 1]} : vector<16x32xf32> to vector<8x32xf32>
    %c24_45 = arith.constant 24 : index
    %c0_46 = arith.constant 0 : index
    %125 = vector.load %arg13[%c24_45, %c0_46] : memref<64x64xf32, #tpu.memory_space<vmem>>, vector<8x32xf32>
    tpu.vector_store %arg13[%c24_45, %c0_46], %124 {strides = array<i32>} : memref<64x64xf32, #tpu.memory_space<vmem>>, vector<8x32xf32>,
    %126 = vector.extract_strided_slice %123 {offsets = [8, 0], sizes = [8, 32], strides = [1, 1]} : vector<16x32xf32> to vector<8x32xf32>
    %c32_47 = arith.constant 32 : index
    %c32_48 = arith.constant 32 : index
    %127 = vector.load %arg13[%c32_47, %c32_48] : memref<64x64xf32, #tpu.memory_space<vmem>>, vector<8x32xf32>
    tpu.vector_store %arg13[%c32_47, %c32_48], %126 {strides = array<i32>} : memref<64x64xf32, #tpu.memory_space<vmem>>, vector<8x32xf32>,
    %c32_49 = arith.constant 32 : index
    %c0_50 = arith.constant 0 : index
    %128 = vector.load %arg12[%c32_49, %c0_50] : memref<64x256xf32, #tpu.memory_space<vmem>>, vector<8x128xf32>
    %c24_51 = arith.constant 24 : index
    %c128_52 = arith.constant 128 : index
    %129 = vector.load %arg12[%c24_51, %c128_52] : memref<64x256xf32, #tpu.memory_space<vmem>>, vector<8x128xf32>
    %130 = vector.extract_strided_slice %123 {offsets = [0, 0], sizes = [8, 32], strides = [1, 1]} : vector<16x32xf32> to vector<8x32xf32>
    %cst_53 = arith.constant dense<0.000000e+00> : vector<8x128xf32>
    %131 = tpu.matmul %130, %3, %cst_53 {dimension_numbers = #tpu.dot_dimension_numbers<[1], [0], [0], [1], [0, 0, 1, 1], [], []>} : vector<8x32xf32>, vector<32x128xf32>, vector<8x128xf32> -> vector<8x128xf32>
    %132 = arith.addf %128, %131 : vector<8x128xf32>
    %133 = vector.extract_strided_slice %123 {offsets = [8, 0], sizes = [8, 32], strides = [1, 1]} : vector<16x32xf32> to vector<8x32xf32>
    %cst_54 = arith.constant dense<0.000000e+00> : vector<8x128xf32>
    %134 = tpu.matmul %133, %4, %cst_54 {dimension_numbers = #tpu.dot_dimension_numbers<[1], [0], [0], [1], [0, 0, 1, 1], [], []>} : vector<8x32xf32>, vector<32x128xf32>, vector<8x128xf32> -> vector<8x128xf32>
    %135 = arith.addf %129, %134 : vector<8x128xf32>
    %136 = tpu.concatenate %132, %135 in 0 : vector<8x128xf32>, vector<8x128xf32> -> vector<16x128xf32>
    %137 = vector.extract_strided_slice %136 {offsets = [0, 0], sizes = [16, 96], strides = [1, 1]} : vector<16x128xf32> to vector<16x96xf32>
    %138 = arith.negf %137 : vector<16x96xf32>
    %139 = math.exp %138 : vector<16x96xf32>
    %cst_55 = arith.constant 1.000000e+00 : f32
    %140 = vector.broadcast %cst_55 : f32 to vector<16x96xf32>
    %141 = arith.addf %140, %139 : vector<16x96xf32>
    %142 = arith.divf %140, %141 : vector<16x96xf32>
    %143 = vector.extract_strided_slice %136 {offsets = [0, 96], sizes = [16, 32], strides = [1, 1]} : vector<16x128xf32> to vector<16x32xf32>
    %144 = math.tanh %143 : vector<16x32xf32>
    %145 = vector.extract_strided_slice %142 {offsets = [0, 32], sizes = [16, 32], strides = [1, 1]} : vector<16x96xf32> to vector<16x32xf32>
    %146 = arith.mulf %145, %120 : vector<16x32xf32>
    %147 = vector.extract_strided_slice %142 {offsets = [0, 0], sizes = [16, 32], strides = [1, 1]} : vector<16x96xf32> to vector<16x32xf32>
    %148 = arith.mulf %147, %144 : vector<16x32xf32>
    %149 = arith.addf %146, %148 : vector<16x32xf32>
    %150 = vector.extract_strided_slice %142 {offsets = [0, 64], sizes = [16, 32], strides = [1, 1]} : vector<16x96xf32> to vector<16x32xf32>
    %151 = math.tanh %149 : vector<16x32xf32>
    %152 = arith.mulf %150, %151 : vector<16x32xf32>
    %153 = vector.extract_strided_slice %152 {offsets = [0, 0], sizes = [8, 32], strides = [1, 1]} : vector<16x32xf32> to vector<8x32xf32>
    %c32_56 = arith.constant 32 : index
    %c0_57 = arith.constant 0 : index
    %154 = vector.load %arg13[%c32_56, %c0_57] : memref<64x64xf32, #tpu.memory_space<vmem>>, vector<8x32xf32>
    tpu.vector_store %arg13[%c32_56, %c0_57], %153 {strides = array<i32>} : memref<64x64xf32, #tpu.memory_space<vmem>>, vector<8x32xf32>,
    %155 = vector.extract_strided_slice %152 {offsets = [8, 0], sizes = [8, 32], strides = [1, 1]} : vector<16x32xf32> to vector<8x32xf32>
    %c24_58 = arith.constant 24 : index
    %c32_59 = arith.constant 32 : index
    %156 = vector.load %arg13[%c24_58, %c32_59] : memref<64x64xf32, #tpu.memory_space<vmem>>, vector<8x32xf32>
    tpu.vector_store %arg13[%c24_58, %c32_59], %155 {strides = array<i32>} : memref<64x64xf32, #tpu.memory_space<vmem>>, vector<8x32xf32>,
    %c40_60 = arith.constant 40 : index
    %c0_61 = arith.constant 0 : index
    %157 = vector.load %arg12[%c40_60, %c0_61] : memref<64x256xf32, #tpu.memory_space<vmem>>, vector<8x128xf32>
    %c16_62 = arith.constant 16 : index
    %c128_63 = arith.constant 128 : index
    %158 = vector.load %arg12[%c16_62, %c128_63] : memref<64x256xf32, #tpu.memory_space<vmem>>, vector<8x128xf32>
    %159 = vector.extract_strided_slice %152 {offsets = [0, 0], sizes = [8, 32], strides = [1, 1]} : vector<16x32xf32> to vector<8x32xf32>
    %cst_64 = arith.constant dense<0.000000e+00> : vector<8x128xf32>
    %160 = tpu.matmul %159, %3, %cst_64 {dimension_numbers = #tpu.dot_dimension_numbers<[1], [0], [0], [1], [0, 0, 1, 1], [], []>} : vector<8x32xf32>, vector<32x128xf32>, vector<8x128xf32> -> vector<8x128xf32>
    %161 = arith.addf %157, %160 : vector<8x128xf32>
    %162 = vector.extract_strided_slice %152 {offsets = [8, 0], sizes = [8, 32], strides = [1, 1]} : vector<16x32xf32> to vector<8x32xf32>
    %cst_65 = arith.constant dense<0.000000e+00> : vector<8x128xf32>
    %163 = tpu.matmul %162, %4, %cst_65 {dimension_numbers = #tpu.dot_dimension_numbers<[1], [0], [0], [1], [0, 0, 1, 1], [], []>} : vector<8x32xf32>, vector<32x128xf32>, vector<8x128xf32> -> vector<8x128xf32>
    %164 = arith.addf %158, %163 : vector<8x128xf32>
    %165 = tpu.concatenate %161, %164 in 0 : vector<8x128xf32>, vector<8x128xf32> -> vector<16x128xf32>
    %166 = vector.extract_strided_slice %165 {offsets = [0, 0], sizes = [16, 96], strides = [1, 1]} : vector<16x128xf32> to vector<16x96xf32>
    %167 = arith.negf %166 : vector<16x96xf32>
    %168 = math.exp %167 : vector<16x96xf32>
    %cst_66 = arith.constant 1.000000e+00 : f32
    %169 = vector.broadcast %cst_66 : f32 to vector<16x96xf32>
    %170 = arith.addf %169, %168 : vector<16x96xf32>
    %171 = arith.divf %169, %170 : vector<16x96xf32>
    %172 = vector.extract_strided_slice %165 {offsets = [0, 96], sizes = [16, 32], strides = [1, 1]} : vector<16x128xf32> to vector<16x32xf32>
    %173 = math.tanh %172 : vector<16x32xf32>
    %174 = vector.extract_strided_slice %171 {offsets = [0, 32], sizes = [16, 32], strides = [1, 1]} : vector<16x96xf32> to vector<16x32xf32>
    %175 = arith.mulf %174, %149 : vector<16x32xf32>
    %176 = vector.extract_strided_slice %171 {offsets = [0, 0], sizes = [16, 32], strides = [1, 1]} : vector<16x96xf32> to vector<16x32xf32>
    %177 = arith.mulf %176, %173 : vector<16x32xf32>
    %178 = arith.addf %175, %177 : vector<16x32xf32>
    %179 = vector.extract_strided_slice %171 {offsets = [0, 64], sizes = [16, 32], strides = [1, 1]} : vector<16x96xf32> to vector<16x32xf32>
    %180 = math.tanh %178 : vector<16x32xf32>
    %181 = arith.mulf %179, %180 : vector<16x32xf32>
    %182 = vector.extract_strided_slice %181 {offsets = [0, 0], sizes = [8, 32], strides = [1, 1]} : vector<16x32xf32> to vector<8x32xf32>
    %c40_67 = arith.constant 40 : index
    %c0_68 = arith.constant 0 : index
    %183 = vector.load %arg13[%c40_67, %c0_68] : memref<64x64xf32, #tpu.memory_space<vmem>>, vector<8x32xf32>
    tpu.vector_store %arg13[%c40_67, %c0_68], %182 {strides = array<i32>} : memref<64x64xf32, #tpu.memory_space<vmem>>, vector<8x32xf32>,
    %184 = vector.extract_strided_slice %181 {offsets = [8, 0], sizes = [8, 32], strides = [1, 1]} : vector<16x32xf32> to vector<8x32xf32>
    %c16_69 = arith.constant 16 : index
    %c32_70 = arith.constant 32 : index
    %185 = vector.load %arg13[%c16_69, %c32_70] : memref<64x64xf32, #tpu.memory_space<vmem>>, vector<8x32xf32>
    tpu.vector_store %arg13[%c16_69, %c32_70], %184 {strides = array<i32>} : memref<64x64xf32, #tpu.memory_space<vmem>>, vector<8x32xf32>,
    %c48_71 = arith.constant 48 : index
    %c0_72 = arith.constant 0 : index
    %186 = vector.load %arg12[%c48_71, %c0_72] : memref<64x256xf32, #tpu.memory_space<vmem>>, vector<8x128xf32>
    %c8_73 = arith.constant 8 : index
    %c128_74 = arith.constant 128 : index
    %187 = vector.load %arg12[%c8_73, %c128_74] : memref<64x256xf32, #tpu.memory_space<vmem>>, vector<8x128xf32>
    %188 = vector.extract_strided_slice %181 {offsets = [0, 0], sizes = [8, 32], strides = [1, 1]} : vector<16x32xf32> to vector<8x32xf32>
    %cst_75 = arith.constant dense<0.000000e+00> : vector<8x128xf32>
    %189 = tpu.matmul %188, %3, %cst_75 {dimension_numbers = #tpu.dot_dimension_numbers<[1], [0], [0], [1], [0, 0, 1, 1], [], []>} : vector<8x32xf32>, vector<32x128xf32>, vector<8x128xf32> -> vector<8x128xf32>
    %190 = arith.addf %186, %189 : vector<8x128xf32>
    %191 = vector.extract_strided_slice %181 {offsets = [8, 0], sizes = [8, 32], strides = [1, 1]} : vector<16x32xf32> to vector<8x32xf32>
    %cst_76 = arith.constant dense<0.000000e+00> : vector<8x128xf32>
    %192 = tpu.matmul %191, %4, %cst_76 {dimension_numbers = #tpu.dot_dimension_numbers<[1], [0], [0], [1], [0, 0, 1, 1], [], []>} : vector<8x32xf32>, vector<32x128xf32>, vector<8x128xf32> -> vector<8x128xf32>
    %193 = arith.addf %187, %192 : vector<8x128xf32>
    %194 = tpu.concatenate %190, %193 in 0 : vector<8x128xf32>, vector<8x128xf32> -> vector<16x128xf32>
    %195 = vector.extract_strided_slice %194 {offsets = [0, 0], sizes = [16, 96], strides = [1, 1]} : vector<16x128xf32> to vector<16x96xf32>
    %196 = arith.negf %195 : vector<16x96xf32>
    %197 = math.exp %196 : vector<16x96xf32>
    %cst_77 = arith.constant 1.000000e+00 : f32
    %198 = vector.broadcast %cst_77 : f32 to vector<16x96xf32>
    %199 = arith.addf %198, %197 : vector<16x96xf32>
    %200 = arith.divf %198, %199 : vector<16x96xf32>
    %201 = vector.extract_strided_slice %194 {offsets = [0, 96], sizes = [16, 32], strides = [1, 1]} : vector<16x128xf32> to vector<16x32xf32>
    %202 = math.tanh %201 : vector<16x32xf32>
    %203 = vector.extract_strided_slice %200 {offsets = [0, 32], sizes = [16, 32], strides = [1, 1]} : vector<16x96xf32> to vector<16x32xf32>
    %204 = arith.mulf %203, %178 : vector<16x32xf32>
    %205 = vector.extract_strided_slice %200 {offsets = [0, 0], sizes = [16, 32], strides = [1, 1]} : vector<16x96xf32> to vector<16x32xf32>
    %206 = arith.mulf %205, %202 : vector<16x32xf32>
    %207 = arith.addf %204, %206 : vector<16x32xf32>
    %208 = vector.extract_strided_slice %200 {offsets = [0, 64], sizes = [16, 32], strides = [1, 1]} : vector<16x96xf32> to vector<16x32xf32>
    %209 = math.tanh %207 : vector<16x32xf32>
    %210 = arith.mulf %208, %209 : vector<16x32xf32>
    %211 = vector.extract_strided_slice %210 {offsets = [0, 0], sizes = [8, 32], strides = [1, 1]} : vector<16x32xf32> to vector<8x32xf32>
    %c48_78 = arith.constant 48 : index
    %c0_79 = arith.constant 0 : index
    %212 = vector.load %arg13[%c48_78, %c0_79] : memref<64x64xf32, #tpu.memory_space<vmem>>, vector<8x32xf32>
    tpu.vector_store %arg13[%c48_78, %c0_79], %211 {strides = array<i32>} : memref<64x64xf32, #tpu.memory_space<vmem>>, vector<8x32xf32>,
    %213 = vector.extract_strided_slice %210 {offsets = [8, 0], sizes = [8, 32], strides = [1, 1]} : vector<16x32xf32> to vector<8x32xf32>
    %c8_80 = arith.constant 8 : index
    %c32_81 = arith.constant 32 : index
    %214 = vector.load %arg13[%c8_80, %c32_81] : memref<64x64xf32, #tpu.memory_space<vmem>>, vector<8x32xf32>
    tpu.vector_store %arg13[%c8_80, %c32_81], %213 {strides = array<i32>} : memref<64x64xf32, #tpu.memory_space<vmem>>, vector<8x32xf32>,
    %c56_82 = arith.constant 56 : index
    %c0_83 = arith.constant 0 : index
    %215 = vector.load %arg12[%c56_82, %c0_83] : memref<64x256xf32, #tpu.memory_space<vmem>>, vector<8x128xf32>
    %c0_84 = arith.constant 0 : index
    %c128_85 = arith.constant 128 : index
    %216 = vector.load %arg12[%c0_84, %c128_85] : memref<64x256xf32, #tpu.memory_space<vmem>>, vector<8x128xf32>
    %217 = vector.extract_strided_slice %210 {offsets = [0, 0], sizes = [8, 32], strides = [1, 1]} : vector<16x32xf32> to vector<8x32xf32>
    %cst_86 = arith.constant dense<0.000000e+00> : vector<8x128xf32>
    %218 = tpu.matmul %217, %3, %cst_86 {dimension_numbers = #tpu.dot_dimension_numbers<[1], [0], [0], [1], [0, 0, 1, 1], [], []>} : vector<8x32xf32>, vector<32x128xf32>, vector<8x128xf32> -> vector<8x128xf32>
    %219 = arith.addf %215, %218 : vector<8x128xf32>
    %220 = vector.extract_strided_slice %210 {offsets = [8, 0], sizes = [8, 32], strides = [1, 1]} : vector<16x32xf32> to vector<8x32xf32>
    %cst_87 = arith.constant dense<0.000000e+00> : vector<8x128xf32>
    %221 = tpu.matmul %220, %4, %cst_87 {dimension_numbers = #tpu.dot_dimension_numbers<[1], [0], [0], [1], [0, 0, 1, 1], [], []>} : vector<8x32xf32>, vector<32x128xf32>, vector<8x128xf32> -> vector<8x128xf32>
    %222 = arith.addf %216, %221 : vector<8x128xf32>
    %223 = tpu.concatenate %219, %222 in 0 : vector<8x128xf32>, vector<8x128xf32> -> vector<16x128xf32>
    %224 = vector.extract_strided_slice %223 {offsets = [0, 0], sizes = [16, 96], strides = [1, 1]} : vector<16x128xf32> to vector<16x96xf32>
    %225 = arith.negf %224 : vector<16x96xf32>
    %226 = math.exp %225 : vector<16x96xf32>
    %cst_88 = arith.constant 1.000000e+00 : f32
    %227 = vector.broadcast %cst_88 : f32 to vector<16x96xf32>
    %228 = arith.addf %227, %226 : vector<16x96xf32>
    %229 = arith.divf %227, %228 : vector<16x96xf32>
    %230 = vector.extract_strided_slice %223 {offsets = [0, 96], sizes = [16, 32], strides = [1, 1]} : vector<16x128xf32> to vector<16x32xf32>
    %231 = math.tanh %230 : vector<16x32xf32>
    %232 = vector.extract_strided_slice %229 {offsets = [0, 32], sizes = [16, 32], strides = [1, 1]} : vector<16x96xf32> to vector<16x32xf32>
    %233 = arith.mulf %232, %207 : vector<16x32xf32>
    %234 = vector.extract_strided_slice %229 {offsets = [0, 0], sizes = [16, 32], strides = [1, 1]} : vector<16x96xf32> to vector<16x32xf32>
    %235 = arith.mulf %234, %231 : vector<16x32xf32>
    %236 = arith.addf %233, %235 : vector<16x32xf32>
    %237 = vector.extract_strided_slice %229 {offsets = [0, 64], sizes = [16, 32], strides = [1, 1]} : vector<16x96xf32> to vector<16x32xf32>
    %238 = math.tanh %236 : vector<16x32xf32>
    %239 = arith.mulf %237, %238 : vector<16x32xf32>
    %240 = vector.extract_strided_slice %239 {offsets = [0, 0], sizes = [8, 32], strides = [1, 1]} : vector<16x32xf32> to vector<8x32xf32>
    %c56_89 = arith.constant 56 : index
    %c0_90 = arith.constant 0 : index
    %241 = vector.load %arg13[%c56_89, %c0_90] : memref<64x64xf32, #tpu.memory_space<vmem>>, vector<8x32xf32>
    tpu.vector_store %arg13[%c56_89, %c0_90], %240 {strides = array<i32>} : memref<64x64xf32, #tpu.memory_space<vmem>>, vector<8x32xf32>,
    %242 = vector.extract_strided_slice %239 {offsets = [8, 0], sizes = [8, 32], strides = [1, 1]} : vector<16x32xf32> to vector<8x32xf32>
    %c0_91 = arith.constant 0 : index
    %c32_92 = arith.constant 32 : index
    %243 = vector.load %arg13[%c0_91, %c32_92] : memref<64x64xf32, #tpu.memory_space<vmem>>, vector<8x32xf32>
    tpu.vector_store %arg13[%c0_91, %c32_92], %242 {strides = array<i32>} : memref<64x64xf32, #tpu.memory_space<vmem>>, vector<8x32xf32>,
    %c0_93 = arith.constant 0 : index
    %c0_94 = arith.constant 0 : index
    %244 = vector.load %arg4[%c0_93, %c0_94] : memref<64x256xf32, #tpu.memory_space<vmem>>, vector<64x256xf32>
    %c0_95 = arith.constant 0 : index
    %c0_96 = arith.constant 0 : index
    %245 = vector.load %arg5[%c0_95, %c0_96] : memref<32x256xf32, #tpu.memory_space<vmem>>, vector<32x256xf32>
    %c0_97 = arith.constant 0 : index
    %c0_98 = arith.constant 0 : index
    %246 = vector.load %arg6[%c0_97, %c0_98] : memref<1x256xf32, #tpu.memory_space<vmem>>, vector<1x256xf32>
    %247 = vector.extract_strided_slice %245 {offsets = [0, 0], sizes = [32, 128], strides = [1, 1]} : vector<32x256xf32> to vector<32x128xf32>
    %248 = vector.extract_strided_slice %245 {offsets = [0, 128], sizes = [32, 128], strides = [1, 1]} : vector<32x256xf32> to vector<32x128xf32>
    %c0_99 = arith.constant 0 : index
    %c0_100 = arith.constant 0 : index
    %249 = vector.load %arg13[%c0_99, %c0_100] : memref<64x64xf32, #tpu.memory_space<vmem>>, vector<64x64xf32>
    %cst_101 = arith.constant dense<0.000000e+00> : vector<64x256xf32>
    %250 = tpu.matmul %249, %244, %cst_101 {dimension_numbers = #tpu.dot_dimension_numbers<[1], [0], [0], [1], [0, 0, 1, 1], [], []>} : vector<64x64xf32>, vector<64x256xf32>, vector<64x256xf32> -> vector<64x256xf32>
    %251 = vector.broadcast %246 : vector<1x256xf32> to vector<64x256xf32>
    %252 = arith.addf %250, %251 : vector<64x256xf32>
    %c0_102 = arith.constant 0 : index
    %c0_103 = arith.constant 0 : index
    %253 = vector.load %arg12[%c0_102, %c0_103] : memref<64x256xf32, #tpu.memory_space<vmem>>, vector<64x256xf32>
    tpu.vector_store %arg12[%c0_102, %c0_103], %252 {strides = array<i32>} : memref<64x256xf32, #tpu.memory_space<vmem>>, vector<64x256xf32>,
    %c16_104 = arith.constant 16 : index
    %c0_105 = arith.constant 0 : index
    %254 = vector.load %arg7[%c16_104, %c0_105] : memref<32x32xf32, #tpu.memory_space<vmem>>, vector<16x32xf32>
    %c16_106 = arith.constant 16 : index
    %c0_107 = arith.constant 0 : index
    %255 = vector.load %arg8[%c16_106, %c0_107] : memref<32x32xf32, #tpu.memory_space<vmem>>, vector<16x32xf32>
    %c0_108 = arith.constant 0 : index
    %c0_109 = arith.constant 0 : index
    %256 = vector.load %arg12[%c0_108, %c0_109] : memref<64x256xf32, #tpu.memory_space<vmem>>, vector<8x128xf32>
    %c56_110 = arith.constant 56 : index
    %c128_111 = arith.constant 128 : index
    %257 = vector.load %arg12[%c56_110, %c128_111] : memref<64x256xf32, #tpu.memory_space<vmem>>, vector<8x128xf32>
    %258 = vector.extract_strided_slice %254 {offsets = [0, 0], sizes = [8, 32], strides = [1, 1]} : vector<16x32xf32> to vector<8x32xf32>
    %cst_112 = arith.constant dense<0.000000e+00> : vector<8x128xf32>
    %259 = tpu.matmul %258, %247, %cst_112 {dimension_numbers = #tpu.dot_dimension_numbers<[1], [0], [0], [1], [0, 0, 1, 1], [], []>} : vector<8x32xf32>, vector<32x128xf32>, vector<8x128xf32> -> vector<8x128xf32>
    %260 = arith.addf %256, %259 : vector<8x128xf32>
    %261 = vector.extract_strided_slice %254 {offsets = [8, 0], sizes = [8, 32], strides = [1, 1]} : vector<16x32xf32> to vector<8x32xf32>
    %cst_113 = arith.constant dense<0.000000e+00> : vector<8x128xf32>
    %262 = tpu.matmul %261, %248, %cst_113 {dimension_numbers = #tpu.dot_dimension_numbers<[1], [0], [0], [1], [0, 0, 1, 1], [], []>} : vector<8x32xf32>, vector<32x128xf32>, vector<8x128xf32> -> vector<8x128xf32>
    %263 = arith.addf %257, %262 : vector<8x128xf32>
    %264 = tpu.concatenate %260, %263 in 0 : vector<8x128xf32>, vector<8x128xf32> -> vector<16x128xf32>
    %265 = vector.extract_strided_slice %264 {offsets = [0, 0], sizes = [16, 96], strides = [1, 1]} : vector<16x128xf32> to vector<16x96xf32>
    %266 = arith.negf %265 : vector<16x96xf32>
    %267 = math.exp %266 : vector<16x96xf32>
    %cst_114 = arith.constant 1.000000e+00 : f32
    %268 = vector.broadcast %cst_114 : f32 to vector<16x96xf32>
    %269 = arith.addf %268, %267 : vector<16x96xf32>
    %270 = arith.divf %268, %269 : vector<16x96xf32>
    %271 = vector.extract_strided_slice %264 {offsets = [0, 96], sizes = [16, 32], strides = [1, 1]} : vector<16x128xf32> to vector<16x32xf32>
    %272 = math.tanh %271 : vector<16x32xf32>
    %273 = vector.extract_strided_slice %270 {offsets = [0, 32], sizes = [16, 32], strides = [1, 1]} : vector<16x96xf32> to vector<16x32xf32>
    %274 = arith.mulf %273, %255 : vector<16x32xf32>
    %275 = vector.extract_strided_slice %270 {offsets = [0, 0], sizes = [16, 32], strides = [1, 1]} : vector<16x96xf32> to vector<16x32xf32>
    %276 = arith.mulf %275, %272 : vector<16x32xf32>
    %277 = arith.addf %274, %276 : vector<16x32xf32>
    %278 = vector.extract_strided_slice %270 {offsets = [0, 64], sizes = [16, 32], strides = [1, 1]} : vector<16x96xf32> to vector<16x32xf32>
    %279 = math.tanh %277 : vector<16x32xf32>
    %280 = arith.mulf %278, %279 : vector<16x32xf32>
    %281 = vector.extract_strided_slice %280 {offsets = [0, 0], sizes = [8, 32], strides = [1, 1]} : vector<16x32xf32> to vector<8x32xf32>
    %c0_115 = arith.constant 0 : index
    %c0_116 = arith.constant 0 : index
    %282 = vector.load %arg14[%c0_115, %c0_116] : memref<64x64xf32, #tpu.memory_space<vmem>>, vector<8x32xf32>
    tpu.vector_store %arg14[%c0_115, %c0_116], %281 {strides = array<i32>} : memref<64x64xf32, #tpu.memory_space<vmem>>, vector<8x32xf32>,
    %283 = vector.extract_strided_slice %280 {offsets = [8, 0], sizes = [8, 32], strides = [1, 1]} : vector<16x32xf32> to vector<8x32xf32>
    %c56_117 = arith.constant 56 : index
    %c32_118 = arith.constant 32 : index
    %284 = vector.load %arg14[%c56_117, %c32_118] : memref<64x64xf32, #tpu.memory_space<vmem>>, vector<8x32xf32>
    tpu.vector_store %arg14[%c56_117, %c32_118], %283 {strides = array<i32>} : memref<64x64xf32, #tpu.memory_space<vmem>>, vector<8x32xf32>,
    %c8_119 = arith.constant 8 : index
    %c0_120 = arith.constant 0 : index
    %285 = vector.load %arg12[%c8_119, %c0_120] : memref<64x256xf32, #tpu.memory_space<vmem>>, vector<8x128xf32>
    %c48_121 = arith.constant 48 : index
    %c128_122 = arith.constant 128 : index
    %286 = vector.load %arg12[%c48_121, %c128_122] : memref<64x256xf32, #tpu.memory_space<vmem>>, vector<8x128xf32>
    %287 = vector.extract_strided_slice %280 {offsets = [0, 0], sizes = [8, 32], strides = [1, 1]} : vector<16x32xf32> to vector<8x32xf32>
    %cst_123 = arith.constant dense<0.000000e+00> : vector<8x128xf32>
    %288 = tpu.matmul %287, %247, %cst_123 {dimension_numbers = #tpu.dot_dimension_numbers<[1], [0], [0], [1], [0, 0, 1, 1], [], []>} : vector<8x32xf32>, vector<32x128xf32>, vector<8x128xf32> -> vector<8x128xf32>
    %289 = arith.addf %285, %288 : vector<8x128xf32>
    %290 = vector.extract_strided_slice %280 {offsets = [8, 0], sizes = [8, 32], strides = [1, 1]} : vector<16x32xf32> to vector<8x32xf32>
    %cst_124 = arith.constant dense<0.000000e+00> : vector<8x128xf32>
    %291 = tpu.matmul %290, %248, %cst_124 {dimension_numbers = #tpu.dot_dimension_numbers<[1], [0], [0], [1], [0, 0, 1, 1], [], []>} : vector<8x32xf32>, vector<32x128xf32>, vector<8x128xf32> -> vector<8x128xf32>
    %292 = arith.addf %286, %291 : vector<8x128xf32>
    %293 = tpu.concatenate %289, %292 in 0 : vector<8x128xf32>, vector<8x128xf32> -> vector<16x128xf32>
    %294 = vector.extract_strided_slice %293 {offsets = [0, 0], sizes = [16, 96], strides = [1, 1]} : vector<16x128xf32> to vector<16x96xf32>
    %295 = arith.negf %294 : vector<16x96xf32>
    %296 = math.exp %295 : vector<16x96xf32>
    %cst_125 = arith.constant 1.000000e+00 : f32
    %297 = vector.broadcast %cst_125 : f32 to vector<16x96xf32>
    %298 = arith.addf %297, %296 : vector<16x96xf32>
    %299 = arith.divf %297, %298 : vector<16x96xf32>
    %300 = vector.extract_strided_slice %293 {offsets = [0, 96], sizes = [16, 32], strides = [1, 1]} : vector<16x128xf32> to vector<16x32xf32>
    %301 = math.tanh %300 : vector<16x32xf32>
    %302 = vector.extract_strided_slice %299 {offsets = [0, 32], sizes = [16, 32], strides = [1, 1]} : vector<16x96xf32> to vector<16x32xf32>
    %303 = arith.mulf %302, %277 : vector<16x32xf32>
    %304 = vector.extract_strided_slice %299 {offsets = [0, 0], sizes = [16, 32], strides = [1, 1]} : vector<16x96xf32> to vector<16x32xf32>
    %305 = arith.mulf %304, %301 : vector<16x32xf32>
    %306 = arith.addf %303, %305 : vector<16x32xf32>
    %307 = vector.extract_strided_slice %299 {offsets = [0, 64], sizes = [16, 32], strides = [1, 1]} : vector<16x96xf32> to vector<16x32xf32>
    %308 = math.tanh %306 : vector<16x32xf32>
    %309 = arith.mulf %307, %308 : vector<16x32xf32>
    %310 = vector.extract_strided_slice %309 {offsets = [0, 0], sizes = [8, 32], strides = [1, 1]} : vector<16x32xf32> to vector<8x32xf32>
    %c8_126 = arith.constant 8 : index
    %c0_127 = arith.constant 0 : index
    %311 = vector.load %arg14[%c8_126, %c0_127] : memref<64x64xf32, #tpu.memory_space<vmem>>, vector<8x32xf32>
    tpu.vector_store %arg14[%c8_126, %c0_127], %310 {strides = array<i32>} : memref<64x64xf32, #tpu.memory_space<vmem>>, vector<8x32xf32>,
    %312 = vector.extract_strided_slice %309 {offsets = [8, 0], sizes = [8, 32], strides = [1, 1]} : vector<16x32xf32> to vector<8x32xf32>
    %c48_128 = arith.constant 48 : index
    %c32_129 = arith.constant 32 : index
    %313 = vector.load %arg14[%c48_128, %c32_129] : memref<64x64xf32, #tpu.memory_space<vmem>>, vector<8x32xf32>
    tpu.vector_store %arg14[%c48_128, %c32_129], %312 {strides = array<i32>} : memref<64x64xf32, #tpu.memory_space<vmem>>, vector<8x32xf32>,
    %c16_130 = arith.constant 16 : index
    %c0_131 = arith.constant 0 : index
    %314 = vector.load %arg12[%c16_130, %c0_131] : memref<64x256xf32, #tpu.memory_space<vmem>>, vector<8x128xf32>
    %c40_132 = arith.constant 40 : index
    %c128_133 = arith.constant 128 : index
    %315 = vector.load %arg12[%c40_132, %c128_133] : memref<64x256xf32, #tpu.memory_space<vmem>>, vector<8x128xf32>
    %316 = vector.extract_strided_slice %309 {offsets = [0, 0], sizes = [8, 32], strides = [1, 1]} : vector<16x32xf32> to vector<8x32xf32>
    %cst_134 = arith.constant dense<0.000000e+00> : vector<8x128xf32>
    %317 = tpu.matmul %316, %247, %cst_134 {dimension_numbers = #tpu.dot_dimension_numbers<[1], [0], [0], [1], [0, 0, 1, 1], [], []>} : vector<8x32xf32>, vector<32x128xf32>, vector<8x128xf32> -> vector<8x128xf32>
    %318 = arith.addf %314, %317 : vector<8x128xf32>
    %319 = vector.extract_strided_slice %309 {offsets = [8, 0], sizes = [8, 32], strides = [1, 1]} : vector<16x32xf32> to vector<8x32xf32>
    %cst_135 = arith.constant dense<0.000000e+00> : vector<8x128xf32>
    %320 = tpu.matmul %319, %248, %cst_135 {dimension_numbers = #tpu.dot_dimension_numbers<[1], [0], [0], [1], [0, 0, 1, 1], [], []>} : vector<8x32xf32>, vector<32x128xf32>, vector<8x128xf32> -> vector<8x128xf32>
    %321 = arith.addf %315, %320 : vector<8x128xf32>
    %322 = tpu.concatenate %318, %321 in 0 : vector<8x128xf32>, vector<8x128xf32> -> vector<16x128xf32>
    %323 = vector.extract_strided_slice %322 {offsets = [0, 0], sizes = [16, 96], strides = [1, 1]} : vector<16x128xf32> to vector<16x96xf32>
    %324 = arith.negf %323 : vector<16x96xf32>
    %325 = math.exp %324 : vector<16x96xf32>
    %cst_136 = arith.constant 1.000000e+00 : f32
    %326 = vector.broadcast %cst_136 : f32 to vector<16x96xf32>
    %327 = arith.addf %326, %325 : vector<16x96xf32>
    %328 = arith.divf %326, %327 : vector<16x96xf32>
    %329 = vector.extract_strided_slice %322 {offsets = [0, 96], sizes = [16, 32], strides = [1, 1]} : vector<16x128xf32> to vector<16x32xf32>
    %330 = math.tanh %329 : vector<16x32xf32>
    %331 = vector.extract_strided_slice %328 {offsets = [0, 32], sizes = [16, 32], strides = [1, 1]} : vector<16x96xf32> to vector<16x32xf32>
    %332 = arith.mulf %331, %306 : vector<16x32xf32>
    %333 = vector.extract_strided_slice %328 {offsets = [0, 0], sizes = [16, 32], strides = [1, 1]} : vector<16x96xf32> to vector<16x32xf32>
    %334 = arith.mulf %333, %330 : vector<16x32xf32>
    %335 = arith.addf %332, %334 : vector<16x32xf32>
    %336 = vector.extract_strided_slice %328 {offsets = [0, 64], sizes = [16, 32], strides = [1, 1]} : vector<16x96xf32> to vector<16x32xf32>
    %337 = math.tanh %335 : vector<16x32xf32>
    %338 = arith.mulf %336, %337 : vector<16x32xf32>
    %339 = vector.extract_strided_slice %338 {offsets = [0, 0], sizes = [8, 32], strides = [1, 1]} : vector<16x32xf32> to vector<8x32xf32>
    %c16_137 = arith.constant 16 : index
    %c0_138 = arith.constant 0 : index
    %340 = vector.load %arg14[%c16_137, %c0_138] : memref<64x64xf32, #tpu.memory_space<vmem>>, vector<8x32xf32>
    tpu.vector_store %arg14[%c16_137, %c0_138], %339 {strides = array<i32>} : memref<64x64xf32, #tpu.memory_space<vmem>>, vector<8x32xf32>,
    %341 = vector.extract_strided_slice %338 {offsets = [8, 0], sizes = [8, 32], strides = [1, 1]} : vector<16x32xf32> to vector<8x32xf32>
    %c40_139 = arith.constant 40 : index
    %c32_140 = arith.constant 32 : index
    %342 = vector.load %arg14[%c40_139, %c32_140] : memref<64x64xf32, #tpu.memory_space<vmem>>, vector<8x32xf32>
    tpu.vector_store %arg14[%c40_139, %c32_140], %341 {strides = array<i32>} : memref<64x64xf32, #tpu.memory_space<vmem>>, vector<8x32xf32>,
    %c24_141 = arith.constant 24 : index
    %c0_142 = arith.constant 0 : index
    %343 = vector.load %arg12[%c24_141, %c0_142] : memref<64x256xf32, #tpu.memory_space<vmem>>, vector<8x128xf32>
    %c32_143 = arith.constant 32 : index
    %c128_144 = arith.constant 128 : index
    %344 = vector.load %arg12[%c32_143, %c128_144] : memref<64x256xf32, #tpu.memory_space<vmem>>, vector<8x128xf32>
    %345 = vector.extract_strided_slice %338 {offsets = [0, 0], sizes = [8, 32], strides = [1, 1]} : vector<16x32xf32> to vector<8x32xf32>
    %cst_145 = arith.constant dense<0.000000e+00> : vector<8x128xf32>
    %346 = tpu.matmul %345, %247, %cst_145 {dimension_numbers = #tpu.dot_dimension_numbers<[1], [0], [0], [1], [0, 0, 1, 1], [], []>} : vector<8x32xf32>, vector<32x128xf32>, vector<8x128xf32> -> vector<8x128xf32>
    %347 = arith.addf %343, %346 : vector<8x128xf32>
    %348 = vector.extract_strided_slice %338 {offsets = [8, 0], sizes = [8, 32], strides = [1, 1]} : vector<16x32xf32> to vector<8x32xf32>
    %cst_146 = arith.constant dense<0.000000e+00> : vector<8x128xf32>
    %349 = tpu.matmul %348, %248, %cst_146 {dimension_numbers = #tpu.dot_dimension_numbers<[1], [0], [0], [1], [0, 0, 1, 1], [], []>} : vector<8x32xf32>, vector<32x128xf32>, vector<8x128xf32> -> vector<8x128xf32>
    %350 = arith.addf %344, %349 : vector<8x128xf32>
    %351 = tpu.concatenate %347, %350 in 0 : vector<8x128xf32>, vector<8x128xf32> -> vector<16x128xf32>
    %352 = vector.extract_strided_slice %351 {offsets = [0, 0], sizes = [16, 96], strides = [1, 1]} : vector<16x128xf32> to vector<16x96xf32>
    %353 = arith.negf %352 : vector<16x96xf32>
    %354 = math.exp %353 : vector<16x96xf32>
    %cst_147 = arith.constant 1.000000e+00 : f32
    %355 = vector.broadcast %cst_147 : f32 to vector<16x96xf32>
    %356 = arith.addf %355, %354 : vector<16x96xf32>
    %357 = arith.divf %355, %356 : vector<16x96xf32>
    %358 = vector.extract_strided_slice %351 {offsets = [0, 96], sizes = [16, 32], strides = [1, 1]} : vector<16x128xf32> to vector<16x32xf32>
    %359 = math.tanh %358 : vector<16x32xf32>
    %360 = vector.extract_strided_slice %357 {offsets = [0, 32], sizes = [16, 32], strides = [1, 1]} : vector<16x96xf32> to vector<16x32xf32>
    %361 = arith.mulf %360, %335 : vector<16x32xf32>
    %362 = vector.extract_strided_slice %357 {offsets = [0, 0], sizes = [16, 32], strides = [1, 1]} : vector<16x96xf32> to vector<16x32xf32>
    %363 = arith.mulf %362, %359 : vector<16x32xf32>
    %364 = arith.addf %361, %363 : vector<16x32xf32>
    %365 = vector.extract_strided_slice %357 {offsets = [0, 64], sizes = [16, 32], strides = [1, 1]} : vector<16x96xf32> to vector<16x32xf32>
    %366 = math.tanh %364 : vector<16x32xf32>
    %367 = arith.mulf %365, %366 : vector<16x32xf32>
    %368 = vector.extract_strided_slice %367 {offsets = [0, 0], sizes = [8, 32], strides = [1, 1]} : vector<16x32xf32> to vector<8x32xf32>
    %c24_148 = arith.constant 24 : index
    %c0_149 = arith.constant 0 : index
    %369 = vector.load %arg14[%c24_148, %c0_149] : memref<64x64xf32, #tpu.memory_space<vmem>>, vector<8x32xf32>
    tpu.vector_store %arg14[%c24_148, %c0_149], %368 {strides = array<i32>} : memref<64x64xf32, #tpu.memory_space<vmem>>, vector<8x32xf32>,
    %370 = vector.extract_strided_slice %367 {offsets = [8, 0], sizes = [8, 32], strides = [1, 1]} : vector<16x32xf32> to vector<8x32xf32>
    %c32_150 = arith.constant 32 : index
    %c32_151 = arith.constant 32 : index
    %371 = vector.load %arg14[%c32_150, %c32_151] : memref<64x64xf32, #tpu.memory_space<vmem>>, vector<8x32xf32>
    tpu.vector_store %arg14[%c32_150, %c32_151], %370 {strides = array<i32>} : memref<64x64xf32, #tpu.memory_space<vmem>>, vector<8x32xf32>,
    %c32_152 = arith.constant 32 : index
    %c0_153 = arith.constant 0 : index
    %372 = vector.load %arg12[%c32_152, %c0_153] : memref<64x256xf32, #tpu.memory_space<vmem>>, vector<8x128xf32>
    %c24_154 = arith.constant 24 : index
    %c128_155 = arith.constant 128 : index
    %373 = vector.load %arg12[%c24_154, %c128_155] : memref<64x256xf32, #tpu.memory_space<vmem>>, vector<8x128xf32>
    %374 = vector.extract_strided_slice %367 {offsets = [0, 0], sizes = [8, 32], strides = [1, 1]} : vector<16x32xf32> to vector<8x32xf32>
    %cst_156 = arith.constant dense<0.000000e+00> : vector<8x128xf32>
    %375 = tpu.matmul %374, %247, %cst_156 {dimension_numbers = #tpu.dot_dimension_numbers<[1], [0], [0], [1], [0, 0, 1, 1], [], []>} : vector<8x32xf32>, vector<32x128xf32>, vector<8x128xf32> -> vector<8x128xf32>
    %376 = arith.addf %372, %375 : vector<8x128xf32>
    %377 = vector.extract_strided_slice %367 {offsets = [8, 0], sizes = [8, 32], strides = [1, 1]} : vector<16x32xf32> to vector<8x32xf32>
    %cst_157 = arith.constant dense<0.000000e+00> : vector<8x128xf32>
    %378 = tpu.matmul %377, %248, %cst_157 {dimension_numbers = #tpu.dot_dimension_numbers<[1], [0], [0], [1], [0, 0, 1, 1], [], []>} : vector<8x32xf32>, vector<32x128xf32>, vector<8x128xf32> -> vector<8x128xf32>
    %379 = arith.addf %373, %378 : vector<8x128xf32>
    %380 = tpu.concatenate %376, %379 in 0 : vector<8x128xf32>, vector<8x128xf32> -> vector<16x128xf32>
    %381 = vector.extract_strided_slice %380 {offsets = [0, 0], sizes = [16, 96], strides = [1, 1]} : vector<16x128xf32> to vector<16x96xf32>
    %382 = arith.negf %381 : vector<16x96xf32>
    %383 = math.exp %382 : vector<16x96xf32>
    %cst_158 = arith.constant 1.000000e+00 : f32
    %384 = vector.broadcast %cst_158 : f32 to vector<16x96xf32>
    %385 = arith.addf %384, %383 : vector<16x96xf32>
    %386 = arith.divf %384, %385 : vector<16x96xf32>
    %387 = vector.extract_strided_slice %380 {offsets = [0, 96], sizes = [16, 32], strides = [1, 1]} : vector<16x128xf32> to vector<16x32xf32>
    %388 = math.tanh %387 : vector<16x32xf32>
    %389 = vector.extract_strided_slice %386 {offsets = [0, 32], sizes = [16, 32], strides = [1, 1]} : vector<16x96xf32> to vector<16x32xf32>
    %390 = arith.mulf %389, %364 : vector<16x32xf32>
    %391 = vector.extract_strided_slice %386 {offsets = [0, 0], sizes = [16, 32], strides = [1, 1]} : vector<16x96xf32> to vector<16x32xf32>
    %392 = arith.mulf %391, %388 : vector<16x32xf32>
    %393 = arith.addf %390, %392 : vector<16x32xf32>
    %394 = vector.extract_strided_slice %386 {offsets = [0, 64], sizes = [16, 32], strides = [1, 1]} : vector<16x96xf32> to vector<16x32xf32>
    %395 = math.tanh %393 : vector<16x32xf32>
    %396 = arith.mulf %394, %395 : vector<16x32xf32>
    %397 = vector.extract_strided_slice %396 {offsets = [0, 0], sizes = [8, 32], strides = [1, 1]} : vector<16x32xf32> to vector<8x32xf32>
    %c32_159 = arith.constant 32 : index
    %c0_160 = arith.constant 0 : index
    %398 = vector.load %arg14[%c32_159, %c0_160] : memref<64x64xf32, #tpu.memory_space<vmem>>, vector<8x32xf32>
    tpu.vector_store %arg14[%c32_159, %c0_160], %397 {strides = array<i32>} : memref<64x64xf32, #tpu.memory_space<vmem>>, vector<8x32xf32>,
    %399 = vector.extract_strided_slice %396 {offsets = [8, 0], sizes = [8, 32], strides = [1, 1]} : vector<16x32xf32> to vector<8x32xf32>
    %c24_161 = arith.constant 24 : index
    %c32_162 = arith.constant 32 : index
    %400 = vector.load %arg14[%c24_161, %c32_162] : memref<64x64xf32, #tpu.memory_space<vmem>>, vector<8x32xf32>
    tpu.vector_store %arg14[%c24_161, %c32_162], %399 {strides = array<i32>} : memref<64x64xf32, #tpu.memory_space<vmem>>, vector<8x32xf32>,
    %c40_163 = arith.constant 40 : index
    %c0_164 = arith.constant 0 : index
    %401 = vector.load %arg12[%c40_163, %c0_164] : memref<64x256xf32, #tpu.memory_space<vmem>>, vector<8x128xf32>
    %c16_165 = arith.constant 16 : index
    %c128_166 = arith.constant 128 : index
    %402 = vector.load %arg12[%c16_165, %c128_166] : memref<64x256xf32, #tpu.memory_space<vmem>>, vector<8x128xf32>
    %403 = vector.extract_strided_slice %396 {offsets = [0, 0], sizes = [8, 32], strides = [1, 1]} : vector<16x32xf32> to vector<8x32xf32>
    %cst_167 = arith.constant dense<0.000000e+00> : vector<8x128xf32>
    %404 = tpu.matmul %403, %247, %cst_167 {dimension_numbers = #tpu.dot_dimension_numbers<[1], [0], [0], [1], [0, 0, 1, 1], [], []>} : vector<8x32xf32>, vector<32x128xf32>, vector<8x128xf32> -> vector<8x128xf32>
    %405 = arith.addf %401, %404 : vector<8x128xf32>
    %406 = vector.extract_strided_slice %396 {offsets = [8, 0], sizes = [8, 32], strides = [1, 1]} : vector<16x32xf32> to vector<8x32xf32>
    %cst_168 = arith.constant dense<0.000000e+00> : vector<8x128xf32>
    %407 = tpu.matmul %406, %248, %cst_168 {dimension_numbers = #tpu.dot_dimension_numbers<[1], [0], [0], [1], [0, 0, 1, 1], [], []>} : vector<8x32xf32>, vector<32x128xf32>, vector<8x128xf32> -> vector<8x128xf32>
    %408 = arith.addf %402, %407 : vector<8x128xf32>
    %409 = tpu.concatenate %405, %408 in 0 : vector<8x128xf32>, vector<8x128xf32> -> vector<16x128xf32>
    %410 = vector.extract_strided_slice %409 {offsets = [0, 0], sizes = [16, 96], strides = [1, 1]} : vector<16x128xf32> to vector<16x96xf32>
    %411 = arith.negf %410 : vector<16x96xf32>
    %412 = math.exp %411 : vector<16x96xf32>
    %cst_169 = arith.constant 1.000000e+00 : f32
    %413 = vector.broadcast %cst_169 : f32 to vector<16x96xf32>
    %414 = arith.addf %413, %412 : vector<16x96xf32>
    %415 = arith.divf %413, %414 : vector<16x96xf32>
    %416 = vector.extract_strided_slice %409 {offsets = [0, 96], sizes = [16, 32], strides = [1, 1]} : vector<16x128xf32> to vector<16x32xf32>
    %417 = math.tanh %416 : vector<16x32xf32>
    %418 = vector.extract_strided_slice %415 {offsets = [0, 32], sizes = [16, 32], strides = [1, 1]} : vector<16x96xf32> to vector<16x32xf32>
    %419 = arith.mulf %418, %393 : vector<16x32xf32>
    %420 = vector.extract_strided_slice %415 {offsets = [0, 0], sizes = [16, 32], strides = [1, 1]} : vector<16x96xf32> to vector<16x32xf32>
    %421 = arith.mulf %420, %417 : vector<16x32xf32>
    %422 = arith.addf %419, %421 : vector<16x32xf32>
    %423 = vector.extract_strided_slice %415 {offsets = [0, 64], sizes = [16, 32], strides = [1, 1]} : vector<16x96xf32> to vector<16x32xf32>
    %424 = math.tanh %422 : vector<16x32xf32>
    %425 = arith.mulf %423, %424 : vector<16x32xf32>
    %426 = vector.extract_strided_slice %425 {offsets = [0, 0], sizes = [8, 32], strides = [1, 1]} : vector<16x32xf32> to vector<8x32xf32>
    %c40_170 = arith.constant 40 : index
    %c0_171 = arith.constant 0 : index
    %427 = vector.load %arg14[%c40_170, %c0_171] : memref<64x64xf32, #tpu.memory_space<vmem>>, vector<8x32xf32>
    tpu.vector_store %arg14[%c40_170, %c0_171], %426 {strides = array<i32>} : memref<64x64xf32, #tpu.memory_space<vmem>>, vector<8x32xf32>,
    %428 = vector.extract_strided_slice %425 {offsets = [8, 0], sizes = [8, 32], strides = [1, 1]} : vector<16x32xf32> to vector<8x32xf32>
    %c16_172 = arith.constant 16 : index
    %c32_173 = arith.constant 32 : index
    %429 = vector.load %arg14[%c16_172, %c32_173] : memref<64x64xf32, #tpu.memory_space<vmem>>, vector<8x32xf32>
    tpu.vector_store %arg14[%c16_172, %c32_173], %428 {strides = array<i32>} : memref<64x64xf32, #tpu.memory_space<vmem>>, vector<8x32xf32>,
    %c48_174 = arith.constant 48 : index
    %c0_175 = arith.constant 0 : index
    %430 = vector.load %arg12[%c48_174, %c0_175] : memref<64x256xf32, #tpu.memory_space<vmem>>, vector<8x128xf32>
    %c8_176 = arith.constant 8 : index
    %c128_177 = arith.constant 128 : index
    %431 = vector.load %arg12[%c8_176, %c128_177] : memref<64x256xf32, #tpu.memory_space<vmem>>, vector<8x128xf32>
    %432 = vector.extract_strided_slice %425 {offsets = [0, 0], sizes = [8, 32], strides = [1, 1]} : vector<16x32xf32> to vector<8x32xf32>
    %cst_178 = arith.constant dense<0.000000e+00> : vector<8x128xf32>
    %433 = tpu.matmul %432, %247, %cst_178 {dimension_numbers = #tpu.dot_dimension_numbers<[1], [0], [0], [1], [0, 0, 1, 1], [], []>} : vector<8x32xf32>, vector<32x128xf32>, vector<8x128xf32> -> vector<8x128xf32>
    %434 = arith.addf %430, %433 : vector<8x128xf32>
    %435 = vector.extract_strided_slice %425 {offsets = [8, 0], sizes = [8, 32], strides = [1, 1]} : vector<16x32xf32> to vector<8x32xf32>
    %cst_179 = arith.constant dense<0.000000e+00> : vector<8x128xf32>
    %436 = tpu.matmul %435, %248, %cst_179 {dimension_numbers = #tpu.dot_dimension_numbers<[1], [0], [0], [1], [0, 0, 1, 1], [], []>} : vector<8x32xf32>, vector<32x128xf32>, vector<8x128xf32> -> vector<8x128xf32>
    %437 = arith.addf %431, %436 : vector<8x128xf32>
    %438 = tpu.concatenate %434, %437 in 0 : vector<8x128xf32>, vector<8x128xf32> -> vector<16x128xf32>
    %439 = vector.extract_strided_slice %438 {offsets = [0, 0], sizes = [16, 96], strides = [1, 1]} : vector<16x128xf32> to vector<16x96xf32>
    %440 = arith.negf %439 : vector<16x96xf32>
    %441 = math.exp %440 : vector<16x96xf32>
    %cst_180 = arith.constant 1.000000e+00 : f32
    %442 = vector.broadcast %cst_180 : f32 to vector<16x96xf32>
    %443 = arith.addf %442, %441 : vector<16x96xf32>
    %444 = arith.divf %442, %443 : vector<16x96xf32>
    %445 = vector.extract_strided_slice %438 {offsets = [0, 96], sizes = [16, 32], strides = [1, 1]} : vector<16x128xf32> to vector<16x32xf32>
    %446 = math.tanh %445 : vector<16x32xf32>
    %447 = vector.extract_strided_slice %444 {offsets = [0, 32], sizes = [16, 32], strides = [1, 1]} : vector<16x96xf32> to vector<16x32xf32>
    %448 = arith.mulf %447, %422 : vector<16x32xf32>
    %449 = vector.extract_strided_slice %444 {offsets = [0, 0], sizes = [16, 32], strides = [1, 1]} : vector<16x96xf32> to vector<16x32xf32>
    %450 = arith.mulf %449, %446 : vector<16x32xf32>
    %451 = arith.addf %448, %450 : vector<16x32xf32>
    %452 = vector.extract_strided_slice %444 {offsets = [0, 64], sizes = [16, 32], strides = [1, 1]} : vector<16x96xf32> to vector<16x32xf32>
    %453 = math.tanh %451 : vector<16x32xf32>
    %454 = arith.mulf %452, %453 : vector<16x32xf32>
    %455 = vector.extract_strided_slice %454 {offsets = [0, 0], sizes = [8, 32], strides = [1, 1]} : vector<16x32xf32> to vector<8x32xf32>
    %c48_181 = arith.constant 48 : index
    %c0_182 = arith.constant 0 : index
    %456 = vector.load %arg14[%c48_181, %c0_182] : memref<64x64xf32, #tpu.memory_space<vmem>>, vector<8x32xf32>
    tpu.vector_store %arg14[%c48_181, %c0_182], %455 {strides = array<i32>} : memref<64x64xf32, #tpu.memory_space<vmem>>, vector<8x32xf32>,
    %457 = vector.extract_strided_slice %454 {offsets = [8, 0], sizes = [8, 32], strides = [1, 1]} : vector<16x32xf32> to vector<8x32xf32>
    %c8_183 = arith.constant 8 : index
    %c32_184 = arith.constant 32 : index
    %458 = vector.load %arg14[%c8_183, %c32_184] : memref<64x64xf32, #tpu.memory_space<vmem>>, vector<8x32xf32>
    tpu.vector_store %arg14[%c8_183, %c32_184], %457 {strides = array<i32>} : memref<64x64xf32, #tpu.memory_space<vmem>>, vector<8x32xf32>,
    %c56_185 = arith.constant 56 : index
    %c0_186 = arith.constant 0 : index
    %459 = vector.load %arg12[%c56_185, %c0_186] : memref<64x256xf32, #tpu.memory_space<vmem>>, vector<8x128xf32>
    %c0_187 = arith.constant 0 : index
    %c128_188 = arith.constant 128 : index
    %460 = vector.load %arg12[%c0_187, %c128_188] : memref<64x256xf32, #tpu.memory_space<vmem>>, vector<8x128xf32>
    %461 = vector.extract_strided_slice %454 {offsets = [0, 0], sizes = [8, 32], strides = [1, 1]} : vector<16x32xf32> to vector<8x32xf32>
    %cst_189 = arith.constant dense<0.000000e+00> : vector<8x128xf32>
    %462 = tpu.matmul %461, %247, %cst_189 {dimension_numbers = #tpu.dot_dimension_numbers<[1], [0], [0], [1], [0, 0, 1, 1], [], []>} : vector<8x32xf32>, vector<32x128xf32>, vector<8x128xf32> -> vector<8x128xf32>
    %463 = arith.addf %459, %462 : vector<8x128xf32>
    %464 = vector.extract_strided_slice %454 {offsets = [8, 0], sizes = [8, 32], strides = [1, 1]} : vector<16x32xf32> to vector<8x32xf32>
    %cst_190 = arith.constant dense<0.000000e+00> : vector<8x128xf32>
    %465 = tpu.matmul %464, %248, %cst_190 {dimension_numbers = #tpu.dot_dimension_numbers<[1], [0], [0], [1], [0, 0, 1, 1], [], []>} : vector<8x32xf32>, vector<32x128xf32>, vector<8x128xf32> -> vector<8x128xf32>
    %466 = arith.addf %460, %465 : vector<8x128xf32>
    %467 = tpu.concatenate %463, %466 in 0 : vector<8x128xf32>, vector<8x128xf32> -> vector<16x128xf32>
    %468 = vector.extract_strided_slice %467 {offsets = [0, 0], sizes = [16, 96], strides = [1, 1]} : vector<16x128xf32> to vector<16x96xf32>
    %469 = arith.negf %468 : vector<16x96xf32>
    %470 = math.exp %469 : vector<16x96xf32>
    %cst_191 = arith.constant 1.000000e+00 : f32
    %471 = vector.broadcast %cst_191 : f32 to vector<16x96xf32>
    %472 = arith.addf %471, %470 : vector<16x96xf32>
    %473 = arith.divf %471, %472 : vector<16x96xf32>
    %474 = vector.extract_strided_slice %467 {offsets = [0, 96], sizes = [16, 32], strides = [1, 1]} : vector<16x128xf32> to vector<16x32xf32>
    %475 = math.tanh %474 : vector<16x32xf32>
    %476 = vector.extract_strided_slice %473 {offsets = [0, 32], sizes = [16, 32], strides = [1, 1]} : vector<16x96xf32> to vector<16x32xf32>
    %477 = arith.mulf %476, %451 : vector<16x32xf32>
    %478 = vector.extract_strided_slice %473 {offsets = [0, 0], sizes = [16, 32], strides = [1, 1]} : vector<16x96xf32> to vector<16x32xf32>
    %479 = arith.mulf %478, %475 : vector<16x32xf32>
    %480 = arith.addf %477, %479 : vector<16x32xf32>
    %481 = vector.extract_strided_slice %473 {offsets = [0, 64], sizes = [16, 32], strides = [1, 1]} : vector<16x96xf32> to vector<16x32xf32>
    %482 = math.tanh %480 : vector<16x32xf32>
    %483 = arith.mulf %481, %482 : vector<16x32xf32>
    %484 = vector.extract_strided_slice %483 {offsets = [0, 0], sizes = [8, 32], strides = [1, 1]} : vector<16x32xf32> to vector<8x32xf32>
    %c56_192 = arith.constant 56 : index
    %c0_193 = arith.constant 0 : index
    %485 = vector.load %arg14[%c56_192, %c0_193] : memref<64x64xf32, #tpu.memory_space<vmem>>, vector<8x32xf32>
    tpu.vector_store %arg14[%c56_192, %c0_193], %484 {strides = array<i32>} : memref<64x64xf32, #tpu.memory_space<vmem>>, vector<8x32xf32>,
    %486 = vector.extract_strided_slice %483 {offsets = [8, 0], sizes = [8, 32], strides = [1, 1]} : vector<16x32xf32> to vector<8x32xf32>
    %c0_194 = arith.constant 0 : index
    %c32_195 = arith.constant 32 : index
    %487 = vector.load %arg14[%c0_194, %c32_195] : memref<64x64xf32, #tpu.memory_space<vmem>>, vector<8x32xf32>
    tpu.vector_store %arg14[%c0_194, %c32_195], %486 {strides = array<i32>} : memref<64x64xf32, #tpu.memory_space<vmem>>, vector<8x32xf32>,
    %c0_196 = arith.constant 0 : index
    %c0_197 = arith.constant 0 : index
    %488 = vector.load %arg14[%c0_196, %c0_197] : memref<64x64xf32, #tpu.memory_space<vmem>>, vector<64x64xf32>
    %c0_198 = arith.constant 0 : index
    %c0_199 = arith.constant 0 : index
    %489 = vector.load %arg9[%c0_198, %c0_199] : memref<64x4xf32, #tpu.memory_space<vmem>>, vector<64x4xf32>
    %cst_200 = arith.constant dense<0.000000e+00> : vector<64x4xf32>
    %490 = tpu.matmul %488, %489, %cst_200 {dimension_numbers = #tpu.dot_dimension_numbers<[1], [0], [0], [1], [0, 0, 1, 1], [], []>} : vector<64x64xf32>, vector<64x4xf32>, vector<64x4xf32> -> vector<64x4xf32>
    %c0_201 = arith.constant 0 : index
    %c0_202 = arith.constant 0 : index
    %491 = vector.load %arg10[%c0_201, %c0_202] : memref<1x4xf32, #tpu.memory_space<vmem>>, vector<1x4xf32>
    %492 = vector.broadcast %491 : vector<1x4xf32> to vector<64x4xf32>
    %493 = arith.addf %490, %492 : vector<64x4xf32>
    %c0_203 = arith.constant 0 : index
    %c0_204 = arith.constant 0 : index
    %494 = vector.load %arg11[%c0_203, %c0_204] : memref<64x4xf32, #tpu.memory_space<vmem>>, vector<64x4xf32>
    tpu.vector_store %arg11[%c0_203, %c0_204], %493 {strides = array<i32>} : memref<64x4xf32, #tpu.memory_space<vmem>>, vector<64x4xf32>,
    return
  }
}

</mosaic_0001>

<llo_original>
// kernel: lstm_model_forward.1
$region0: #{lstm_model_forward.1}
  #allocation0 [shape = 'u32[]', space=smem, size = 0x4, offset = 0x4, fixed_abs, tag = 'smem constant byte address 0x4 - core index']
  #allocation1 [shape = 'u32[144,128]{1,0:T(1,128)}', space=vmem, size = 0x12000, scoped, tag = 'internal scratch']
  #allocation2 [shape = 'f32[64,256]{1,0:T(8,128)}', space=vmem, size = 0x10000, scoped, tag = 'scratch operand']
  #allocation3 [shape = 'f32[64,64]{1,0:T(8,128)}', space=vmem, size = 0x8000, scoped, tag = 'scratch operand']
  #allocation4 [shape = 'f32[64,64]{1,0:T(8,128)}', space=vmem, size = 0x8000, scoped, tag = 'scratch operand']
  %s0 = inlined_call_operand.hbm [shape: f32[64,8], index: 0, kind: input, shape index: {}]
  %s1 = inlined_call_operand.hbm [shape: f32[8,256], index: 1, kind: input, shape index: {}]
  %s2 = inlined_call_operand.hbm [shape: f32[32,256], index: 2, kind: input, shape index: {}]
  %s3 = inlined_call_operand.hbm [shape: f32[1,256], index: 3, kind: input, shape index: {}]
  %s4 = inlined_call_operand.hbm [shape: f32[64,256], index: 4, kind: input, shape index: {}]
  %s5 = inlined_call_operand.hbm [shape: f32[32,256], index: 5, kind: input, shape index: {}]
  %s6 = inlined_call_operand.hbm [shape: f32[1,256], index: 6, kind: input, shape index: {}]
  %s7 = inlined_call_operand.hbm [shape: f32[32,32], index: 7, kind: input, shape index: {}]
  %s8 = inlined_call_operand.hbm [shape: f32[32,32], index: 8, kind: input, shape index: {}]
  %s9 = inlined_call_operand.hbm [shape: f32[64,4], index: 9, kind: input, shape index: {}]
  %s10 = inlined_call_operand.hbm [shape: f32[1,4], index: 10, kind: input, shape index: {}]
  %s11 = inlined_call_operand.hbm [shape: f32[64,4], index: 11, kind: output, shape index: {}]
  %s12 = sld [smem:[#allocation0]]
  $region98: #{lstm_model_forward.1} parent=0
    _
  %s14 = ssub.s32 1, %s12
  %s15 = scalar_select 0, %s14, %s12
  $region1: #{lstm_model_forward.1} parent=0
    #allocation5 [shape = 'u8[32768]{0}', space=vmem, size = 0x8000, scoped, tag = 'input window, operand 0, single buffered']
    #allocation6 [shape = 's32[1]{0}', space=sflag, size = 0x4, scoped, tag = 'scoped memory for lstm_model_forward.1']
    #allocation7 [shape = 's32[1]{0}', space=sflag, size = 0x4, scoped, tag = 'scoped memory for lstm_model_forward.1']
    #allocation8 [shape = 'u8[8192]{0}', space=vmem, size = 0x2000, scoped, tag = 'input window, operand 1, single buffered']
    #allocation9 [shape = 's32[1]{0}', space=sflag, size = 0x4, scoped, tag = 'scoped memory for lstm_model_forward.1']
    #allocation10 [shape = 'u8[32768]{0}', space=vmem, size = 0x8000, scoped, tag = 'input window, operand 2, single buffered']
    #allocation11 [shape = 'u8[1024]{0}', space=vmem, size = 0x400, scoped, tag = 'input window, operand 3, single buffered']
    #allocation12 [shape = 's32[1]{0}', space=sflag, size = 0x4, scoped, tag = 'scoped memory for lstm_model_forward.1']
    #allocation13 [shape = 'u8[65536]{0}', space=vmem, size = 0x10000, scoped, tag = 'input window, operand 4, single buffered']
    #allocation14 [shape = 'u8[32768]{0}', space=vmem, size = 0x8000, scoped, tag = 'input window, operand 5, single buffered']
    #allocation15 [shape = 's32[1]{0}', space=sflag, size = 0x4, scoped, tag = 'scoped memory for lstm_model_forward.1']
    #allocation16 [shape = 'u8[1024]{0}', space=vmem, size = 0x400, scoped, tag = 'input window, operand 6, single buffered']
    #allocation17 [shape = 'u8[16384]{0}', space=vmem, size = 0x4000, scoped, tag = 'input window, operand 7, single buffered']
    #allocation18 [shape = 's32[1]{0}', space=sflag, size = 0x4, scoped, tag = 'scoped memory for lstm_model_forward.1']
    #allocation19 [shape = 'u8[16384]{0}', space=vmem, size = 0x4000, scoped, tag = 'input window, operand 8, single buffered']
    #allocation20 [shape = 'u8[32768]{0}', space=vmem, size = 0x8000, scoped, tag = 'input window, operand 9, single buffered']
    #allocation21 [shape = 's32[1]{0}', space=sflag, size = 0x4, scoped, tag = 'scoped memory for lstm_model_forward.1']
    #allocation22 [shape = 'u8[512]{0}', space=vmem, size = 0x400, scoped, tag = 'input window, operand 10, single buffered']
    #allocation23 [shape = 'u8[32768]{0}', space=vmem, size = 0x8000, scoped, tag = 'output window, operand 0, single buffered']
    %16 = vsyncpa [#allocation6], 0
    %17 = vsyncpa [#allocation9], 0
    %18 = vsyncpa [#allocation12], 0
    %19 = vsyncpa [#allocation15], 0
    %20 = vsyncpa [#allocation18], 0
    %21 = vsyncpa [#allocation21], 0
    %22 = vsyncpa [#allocation7], 0
    // Predicated region
    $region2: #{lstm_model_forward.1} parent=1 // pred_check
      _
    $region3: #{lstm_model_forward.1} parent=1 // pred_check_branch
      %24 = sbr.rel (0) target = $region5
    $region4: #{lstm_model_forward.1} parent=1 // pred_region
      %s26 = ssub.s32 1024, 1024
      %27 = vsyncadd [#allocation6], %s26
      %s28 = sshll.u32 [#allocation5], 4
      %s29 = int_to_ptr.vmem [resolvable:$true] %s28
      %34 = dma.hbm_to_vmem [thread:$0]  %s0, 1024, %s29, [#allocation6], 128, 128, 8
    $region5: #{lstm_model_forward.1} parent=1 // pred_fallthru
      _
    // Predicated region
    $region6: #{lstm_model_forward.1} parent=1 // pred_check
      _
    $region7: #{lstm_model_forward.1} parent=1 // pred_check_branch
      %36 = sbr.rel (0) target = $region9
    $region8: #{lstm_model_forward.1} parent=1 // pred_region
      %s38 = ssub.s32 256, 256
      %39 = vsyncadd [#allocation9], %s38
      %s41 = sshll.u32 [#allocation8], 4
      %s42 = int_to_ptr.vmem [resolvable:$true] %s41
      %44 = dma.hbm_to_vmem [thread:$0]  %s1, 256, %s42, [#allocation9]
    $region9: #{lstm_model_forward.1} parent=1 // pred_fallthru
      _
    // Predicated region
    $region10: #{lstm_model_forward.1} parent=1 // pred_check
      _
    $region11: #{lstm_model_forward.1} parent=1 // pred_check_branch
      %46 = sbr.rel (0) target = $region13
    $region12: #{lstm_model_forward.1} parent=1 // pred_region
      %s48 = ssub.s32 1024, 1024
      %49 = vsyncadd [#allocation9], %s48
      %s50 = sshll.u32 [#allocation10], 4
      %s51 = int_to_ptr.vmem [resolvable:$true] %s50
      %56 = dma.hbm_to_vmem [thread:$0]  %s2, 1024, %s51, [#allocation9], 256, 256, 16
    $region13: #{lstm_model_forward.1} parent=1 // pred_fallthru
      _
    // Predicated region
    $region14: #{lstm_model_forward.1} parent=1 // pred_check
      _
    $region15: #{lstm_model_forward.1} parent=1 // pred_check_branch
      %58 = sbr.rel (0) target = $region17
    $region16: #{lstm_model_forward.1} parent=1 // pred_region
      %s60 = ssub.s32 32, 32
      %61 = vsyncadd [#allocation12], %s60
      %s63 = sshll.u32 [#allocation11], 4
      %s64 = int_to_ptr.vmem [resolvable:$true] %s63
      %66 = dma.hbm_to_vmem [thread:$0]  %s3, 32, %s64, [#allocation12]
    $region17: #{lstm_model_forward.1} parent=1 // pred_fallthru
      _
    // Predicated region
    $region18: #{lstm_model_forward.1} parent=1 // pred_check
      _
    $region19: #{lstm_model_forward.1} parent=1 // pred_check_branch
      %68 = sbr.rel (0) target = $region21
    $region20: #{lstm_model_forward.1} parent=1 // pred_region
      %s70 = ssub.s32 2048, 2048
      %71 = vsyncadd [#allocation12], %s70
      %s72 = sshll.u32 [#allocation13], 4
      %s73 = int_to_ptr.vmem [resolvable:$true] %s72
      %78 = dma.hbm_to_vmem [thread:$0]  %s4, 2048, %s73, [#allocation12], 256, 256, 16
    $region21: #{lstm_model_forward.1} parent=1 // pred_fallthru
      _
    // Predicated region
    $region22: #{lstm_model_forward.1} parent=1 // pred_check
      _
    $region23: #{lstm_model_forward.1} parent=1 // pred_check_branch
      %80 = sbr.rel (0) target = $region25
    $region24: #{lstm_model_forward.1} parent=1 // pred_region
      %s82 = ssub.s32 1024, 1024
      %83 = vsyncadd [#allocation15], %s82
      %s84 = sshll.u32 [#allocation14], 4
      %s85 = int_to_ptr.vmem [resolvable:$true] %s84
      %90 = dma.hbm_to_vmem [thread:$0]  %s5, 1024, %s85, [#allocation15], 256, 256, 16
    $region25: #{lstm_model_forward.1} parent=1 // pred_fallthru
      _
    // Predicated region
    $region26: #{lstm_model_forward.1} parent=1 // pred_check
      _
    $region27: #{lstm_model_forward.1} parent=1 // pred_check_branch
      %92 = sbr.rel (0) target = $region29
    $region28: #{lstm_model_forward.1} parent=1 // pred_region
      %s94 = ssub.s32 32, 32
      %95 = vsyncadd [#allocation15], %s94
      %s97 = sshll.u32 [#allocation16], 4
      %s98 = int_to_ptr.vmem [resolvable:$true] %s97
      %100 = dma.hbm_to_vmem [thread:$0]  %s6, 32, %s98, [#allocation15]
    $region29: #{lstm_model_forward.1} parent=1 // pred_fallthru
      _
    // Predicated region
    $region30: #{lstm_model_forward.1} parent=1 // pred_check
      _
    $region31: #{lstm_model_forward.1} parent=1 // pred_check_branch
      %102 = sbr.rel (0) target = $region33
    $region32: #{lstm_model_forward.1} parent=1 // pred_region
      %s104 = ssub.s32 512, 512
      %105 = vsyncadd [#allocation18], %s104
      %s106 = sshll.u32 [#allocation17], 4
      %s107 = int_to_ptr.vmem [resolvable:$true] %s106
      %112 = dma.hbm_to_vmem [thread:$0]  %s7, 512, %s107, [#allocation18], 128, 128, 8
    $region33: #{lstm_model_forward.1} parent=1 // pred_fallthru
      _
    // Predicated region
    $region34: #{lstm_model_forward.1} parent=1 // pred_check
      _
    $region35: #{lstm_model_forward.1} parent=1 // pred_check_branch
      %114 = sbr.rel (0) target = $region37
    $region36: #{lstm_model_forward.1} parent=1 // pred_region
      %s116 = ssub.s32 512, 512
      %117 = vsyncadd [#allocation18], %s116
      %s118 = sshll.u32 [#allocation19], 4
      %s119 = int_to_ptr.vmem [resolvable:$true] %s118
      %124 = dma.hbm_to_vmem [thread:$0]  %s8, 512, %s119, [#allocation18], 128, 128, 8
    $region37: #{lstm_model_forward.1} parent=1 // pred_fallthru
      _
    // Predicated region
    $region38: #{lstm_model_forward.1} parent=1 // pred_check
      _
    $region39: #{lstm_model_forward.1} parent=1 // pred_check_branch
      %126 = sbr.rel (0) target = $region41
    $region40: #{lstm_model_forward.1} parent=1 // pred_region
      %s128 = ssub.s32 1024, 1024
      %129 = vsyncadd [#allocation21], %s128
      %s130 = sshll.u32 [#allocation20], 4
      %s131 = int_to_ptr.vmem [resolvable:$true] %s130
      %136 = dma.hbm_to_vmem [thread:$0]  %s9, 1024, %s131, [#allocation21], 128, 128, 8
    $region41: #{lstm_model_forward.1} parent=1 // pred_fallthru
      _
    // Predicated region
    $region42: #{lstm_model_forward.1} parent=1 // pred_check
      _
    $region43: #{lstm_model_forward.1} parent=1 // pred_check_branch
      %138 = sbr.rel (0) target = $region45
    $region44: #{lstm_model_forward.1} parent=1 // pred_region
      %s140 = ssub.s32 16, 16
      %141 = vsyncadd [#allocation21], %s140
      %s143 = sshll.u32 [#allocation22], 4
      %s144 = int_to_ptr.vmem [resolvable:$true] %s143
      %146 = dma.hbm_to_vmem [thread:$0]  %s10, 16, %s144, [#allocation21]
    $region45: #{lstm_model_forward.1} parent=1 // pred_fallthru
      _
    // Predicated region
    $region46: #{lstm_model_forward.1} parent=1 // pred_check
      _
    $region47: #{lstm_model_forward.1} parent=1 // pred_check_branch
      %148 = sbr.rel (0) target = $region49
    $region48: #{lstm_model_forward.1} parent=1 // pred_region
      %149 = dma.done [#allocation6], 1024
    $region49: #{lstm_model_forward.1} parent=1 // pred_fallthru
      _
    // Predicated region
    $region50: #{lstm_model_forward.1} parent=1 // pred_check
      _
    $region51: #{lstm_model_forward.1} parent=1 // pred_check_branch
      %151 = sbr.rel (0) target = $region53
    $region52: #{lstm_model_forward.1} parent=1 // pred_region
      %152 = dma.done [#allocation9], 256
    $region53: #{lstm_model_forward.1} parent=1 // pred_fallthru
      _
    // Predicated region
    $region54: #{lstm_model_forward.1} parent=1 // pred_check
      _
    $region55: #{lstm_model_forward.1} parent=1 // pred_check_branch
      %154 = sbr.rel (0) target = $region57
    $region56: #{lstm_model_forward.1} parent=1 // pred_region
      %155 = dma.done [#allocation9], 1024
    $region57: #{lstm_model_forward.1} parent=1 // pred_fallthru
      _
    // Predicated region
    $region58: #{lstm_model_forward.1} parent=1 // pred_check
      _
    $region59: #{lstm_model_forward.1} parent=1 // pred_check_branch
      %157 = sbr.rel (0) target = $region61
    $region60: #{lstm_model_forward.1} parent=1 // pred_region
      %158 = dma.done [#allocation12], 32
    $region61: #{lstm_model_forward.1} parent=1 // pred_fallthru
      _
    // Predicated region
    $region62: #{lstm_model_forward.1} parent=1 // pred_check
      _
    $region63: #{lstm_model_forward.1} parent=1 // pred_check_branch
      %160 = sbr.rel (0) target = $region65
    $region64: #{lstm_model_forward.1} parent=1 // pred_region
      %161 = dma.done [#allocation12], 2048
    $region65: #{lstm_model_forward.1} parent=1 // pred_fallthru
      _
    // Predicated region
    $region66: #{lstm_model_forward.1} parent=1 // pred_check
      _
    $region67: #{lstm_model_forward.1} parent=1 // pred_check_branch
      %163 = sbr.rel (0) target = $region69
    $region68: #{lstm_model_forward.1} parent=1 // pred_region
      %164 = dma.done [#allocation15], 1024
    $region69: #{lstm_model_forward.1} parent=1 // pred_fallthru
      _
    // Predicated region
    $region70: #{lstm_model_forward.1} parent=1 // pred_check
      _
    $region71: #{lstm_model_forward.1} parent=1 // pred_check_branch
      %166 = sbr.rel (0) target = $region73
    $region72: #{lstm_model_forward.1} parent=1 // pred_region
      %167 = dma.done [#allocation15], 32
    $region73: #{lstm_model_forward.1} parent=1 // pred_fallthru
      _
    // Predicated region
    $region74: #{lstm_model_forward.1} parent=1 // pred_check
      _
    $region75: #{lstm_model_forward.1} parent=1 // pred_check_branch
      %169 = sbr.rel (0) target = $region77
    $region76: #{lstm_model_forward.1} parent=1 // pred_region
      %170 = dma.done [#allocation18], 512
    $region77: #{lstm_model_forward.1} parent=1 // pred_fallthru
      _
    // Predicated region
    $region78: #{lstm_model_forward.1} parent=1 // pred_check
      _
    $region79: #{lstm_model_forward.1} parent=1 // pred_check_branch
      %172 = sbr.rel (0) target = $region81
    $region80: #{lstm_model_forward.1} parent=1 // pred_region
      %173 = dma.done [#allocation18], 512
    $region81: #{lstm_model_forward.1} parent=1 // pred_fallthru
      _
    // Predicated region
    $region82: #{lstm_model_forward.1} parent=1 // pred_check
      _
    $region83: #{lstm_model_forward.1} parent=1 // pred_check_branch
      %175 = sbr.rel (0) target = $region85
    $region84: #{lstm_model_forward.1} parent=1 // pred_region
      %176 = dma.done [#allocation21], 1024
    $region85: #{lstm_model_forward.1} parent=1 // pred_fallthru
      _
    // Predicated region
    $region86: #{lstm_model_forward.1} parent=1 // pred_check
      _
    $region87: #{lstm_model_forward.1} parent=1 // pred_check_branch
      %178 = sbr.rel (0) target = $region89
    $region88: #{lstm_model_forward.1} parent=1 // pred_region
      %179 = dma.done [#allocation21], 16
    $region89: #{lstm_model_forward.1} parent=1 // pred_fallthru
      _
    %v180 = vld [vmem:[#allocation8] sm:$0xff]
    %v181 = vld [vmem:[#allocation8 + $0x8] sm:$0xff]
    %v182 = vld [vmem:[#allocation10] sm:$0xff]
    %v183 = vld [vmem:[#allocation10 + $0x8] sm:$0xff]
    %v184 = vld [vmem:[#allocation10 + $0x10] sm:$0xff]
    %v185 = vld [vmem:[#allocation10 + $0x18] sm:$0xff]
    %v186 = vld [vmem:[#allocation10 + $0x20] sm:$0xff]
    %v187 = vld [vmem:[#allocation10 + $0x28] sm:$0xff]
    %v188 = vld [vmem:[#allocation10 + $0x30] sm:$0xff]
    %v189 = vld [vmem:[#allocation10 + $0x38] sm:$0xff]
    %v190 = vld [vmem:[#allocation11] sm:$0x3]
    %v191 = vld [vmem:[#allocation5] sm:$0xff]
    %v192 = vld [vmem:[#allocation5 + $0x8] sm:$0xff]
    %v193 = vld [vmem:[#allocation5 + $0x10] sm:$0xff]
    %v194 = vld [vmem:[#allocation5 + $0x18] sm:$0xff]
    %v195 = vld [vmem:[#allocation5 + $0x20] sm:$0xff]
    %v196 = vld [vmem:[#allocation5 + $0x28] sm:$0xff]
    %v197 = vld [vmem:[#allocation5 + $0x30] sm:$0xff]
    %v198 = vld [vmem:[#allocation5 + $0x38] sm:$0xff]
    %v200 = vlaneseq
    %v201 = vshrl.u32 %v200, 7
    %v202 = vsub.s32 0, %v201
    %v203 = vrot.slane %v190, %v202
    %v204 = vlaneseq
    %v205 = vshrl.u32 %v204, 7
    %v206 = vsub.s32 1, %v205
    %v207 = vrot.slane %v190, %v206
    %vm210 = vcmask 64512
    %v212 = vsel %vm210, %v191, 0
    %v215 = vsel %vm210, %v192, 0
    %v218 = vsel %vm210, %v193, 0
    %v221 = vsel %vm210, %v194, 0
    %v224 = vsel %vm210, %v195, 0
    %v227 = vsel %vm210, %v196, 0
    %v230 = vsel %vm210, %v197, 0
    %v233 = vsel %vm210, %v198, 0
    %235 = vmatprep.subr.mxu0 %v181
    %236 = vmatpush1.msra.mxu0 %v180
    %237 = vmatprep.subr.mxu0 0.0
    %238 = vmatpush1.msra.mxu0 0.0
    %239 = vmatprep.subr.mxu0 0.0
    %240 = vmatpush1.msra.mxu0 0.0
    %241 = vmatprep.subr.mxu0 0.0
    %242 = vmatpush1.msra.mxu0 0.0
    %243 = vmatprep.subr.mxu0 0.0
    %244 = vmatpush1.msra.mxu0 0.0
    %245 = vmatprep.subr.mxu0 0.0
    %246 = vmatpush1.msra.mxu0 0.0
    %247 = vmatprep.subr.mxu0 0.0
    %248 = vmatpush1.msra.mxu0 0.0
    %249 = vmatprep.subr.mxu0 0.0
    %250 = vmatpush1.msra.mxu0 0.0
    %251 = vmatprep.subr.mxu0 0.0
    %252 = vmatpush1.msra.mxu0 0.0
    %253 = vmatprep.subr.mxu0 0.0
    %254 = vmatpush1.msra.mxu0 0.0
    %255 = vmatprep.subr.mxu0 0.0
    %256 = vmatpush1.msra.mxu0 0.0
    %257 = vmatprep.subr.mxu0 0.0
    %258 = vmatpush1.msra.mxu0 0.0
    %259 = vmatprep.subr.mxu0 0.0
    %260 = vmatpush1.msra.mxu0 0.0
    %261 = vmatprep.subr.mxu0 0.0
    %262 = vmatpush1.msra.mxu0 0.0
    %263 = vmatprep.subr.mxu0 0.0
    %264 = vmatpush1.msra.mxu0 0.0
    %265 = vmatprep.subr.mxu0 0.0
    %266 = vmatpush1.msra.mxu0 0.0
    %267 = vmatprep.subr.mxu0 0.0
    %268 = vmatpush1.msra.mxu0 0.0
    %269 = vmatprep.subr.mxu0 0.0
    %270 = vmatpush1.msra.mxu0 0.0
    %271 = vmatprep.subr.mxu0 0.0
    %272 = vmatpush1.msra.mxu0 0.0
    %273 = vmatprep.subr.mxu0 0.0
    %274 = vmatpush1.msra.mxu0 0.0
    %275 = vmatprep.subr.mxu0 0.0
    %276 = vmatpush1.msra.mxu0 0.0
    %277 = vmatprep.subr.mxu0 0.0
    %278 = vmatpush1.msra.mxu0 0.0
    %279 = vmatprep.subr.mxu0 0.0
    %280 = vmatpush1.msra.mxu0 0.0
    %281 = vmatprep.subr.mxu0 0.0
    %282 = vmatpush1.msra.mxu0 0.0
    %283 = vmatprep.subr.mxu0 0.0
    %284 = vmatpush1.msra.mxu0 0.0
    %285 = vmatprep.subr.mxu0 0.0
    %286 = vmatpush1.msra.mxu0 0.0
    %287 = vmatprep.subr.mxu0 0.0
    %288 = vmatpush1.msra.mxu0 0.0
    %289 = vmatprep.subr.mxu0 0.0
    %290 = vmatpush1.msra.mxu0 0.0
    %291 = vmatprep.subr.mxu0 0.0
    %292 = vmatpush1.msra.mxu0 0.0
    %293 = vmatprep.subr.mxu0 0.0
    %294 = vmatpush1.msra.mxu0 0.0
    %295 = vmatprep.subr.mxu0 0.0
    %296 = vmatpush1.msra.mxu0 0.0
    %297 = vmatprep.subr.mxu0 0.0
    %298 = vmatpush1.msra.mxu0 0.0
    %299 = vmatprep.mubr.f32.mxu0 0.0
    %300 = vmatmul.mubr.f32.gmra.mrb[0].mxu0 %v212
    %v301 = vpop.f32.mrb[0].mxu0
    %v302 = vadd.f32 %v203, %v301
    %v303 = vpop.f32.mrb[0].mxu0
    %v304 = vadd.f32 %v207, %v303
    %305 = vmatprep.mubr.f32.mxu0 0.0
    %306 = vmatmul.mubr.f32.gmra.mrb[0].mxu0 %v215
    %v307 = vpop.f32.mrb[0].mxu0
    %v308 = vadd.f32 %v203, %v307
    %v309 = vpop.f32.mrb[0].mxu0
    %v310 = vadd.f32 %v207, %v309
    %311 = vmatprep.mubr.f32.mxu0 0.0
    %312 = vmatmul.mubr.f32.gmra.mrb[0].mxu0 %v218
    %v313 = vpop.f32.mrb[0].mxu0
    %v314 = vadd.f32 %v203, %v313
    %v315 = vpop.f32.mrb[0].mxu0
    %v316 = vadd.f32 %v207, %v315
    %317 = vmatprep.mubr.f32.mxu0 0.0
    %318 = vmatmul.mubr.f32.gmra.mrb[0].mxu0 %v221
    %v319 = vpop.f32.mrb[0].mxu0
    %v320 = vadd.f32 %v203, %v319
    %v321 = vpop.f32.mrb[0].mxu0
    %v322 = vadd.f32 %v207, %v321
    %323 = vmatprep.mubr.f32.mxu0 0.0
    %324 = vmatmul.mubr.f32.gmra.mrb[0].mxu0 %v224
    %v325 = vpop.f32.mrb[0].mxu0
    %v326 = vadd.f32 %v203, %v325
    %v327 = vpop.f32.mrb[0].mxu0
    %v328 = vadd.f32 %v207, %v327
    %329 = vmatprep.mubr.f32.mxu0 0.0
    %330 = vmatmul.mubr.f32.gmra.mrb[0].mxu0 %v227
    %v331 = vpop.f32.mrb[0].mxu0
    %v332 = vadd.f32 %v203, %v331
    %v333 = vpop.f32.mrb[0].mxu0
    %v334 = vadd.f32 %v207, %v333
    %335 = vmatprep.mubr.f32.mxu0 0.0
    %336 = vmatmul.mubr.f32.gmra.mrb[0].mxu0 %v230
    %v337 = vpop.f32.mrb[0].mxu0
    %v338 = vadd.f32 %v203, %v337
    %v339 = vpop.f32.mrb[0].mxu0
    %v340 = vadd.f32 %v207, %v339
    %341 = vmatprep.mubr.f32.mxu0 0.0
    %342 = vmatmul.mubr.f32.gmra.mrb[0].mxu0 %v233
    %v343 = vpop.f32.mrb[0].mxu0
    %v344 = vadd.f32 %v203, %v343
    %v345 = vpop.f32.mrb[0].mxu0
    %v346 = vadd.f32 %v207, %v345
    %347 = vdwg.mxu0
    %348 = vst [vmem:[#allocation2] sm:$0xff] %v302
    %349 = vst [vmem:[#allocation2 + $0x8] sm:$0xff] %v304
    %350 = vst [vmem:[#allocation2 + $0x10] sm:$0xff] %v308
    %351 = vst [vmem:[#allocation2 + $0x18] sm:$0xff] %v310
    %352 = vst [vmem:[#allocation2 + $0x20] sm:$0xff] %v314
    %353 = vst [vmem:[#allocation2 + $0x28] sm:$0xff] %v316
    %354 = vst [vmem:[#allocation2 + $0x30] sm:$0xff] %v320
    %355 = vst [vmem:[#allocation2 + $0x38] sm:$0xff] %v322
    %356 = vst [vmem:[#allocation2 + $0x40] sm:$0xff] %v326
    %357 = vst [vmem:[#allocation2 + $0x48] sm:$0xff] %v328
    %358 = vst [vmem:[#allocation2 + $0x50] sm:$0xff] %v332
    %359 = vst [vmem:[#allocation2 + $0x58] sm:$0xff] %v334
    %360 = vst [vmem:[#allocation2 + $0x60] sm:$0xff] %v338
    %361 = vst [vmem:[#allocation2 + $0x68] sm:$0xff] %v340
    %362 = vst [vmem:[#allocation2 + $0x70] sm:$0xff] %v344
    %363 = vst [vmem:[#allocation2 + $0x78] sm:$0xff] %v346
    %v364 = vld [vmem:[#allocation17] sm:$0xff]
    %v365 = vld [vmem:[#allocation17 + $0x8] sm:$0xff]
    %v366 = vld [vmem:[#allocation19] sm:$0xff]
    %v367 = vld [vmem:[#allocation19 + $0x8] sm:$0xff]
    %v368 = vld [vmem:[#allocation2] sm:$0xff]
    %v369 = vld [vmem:[#allocation2 + $0x78] sm:$0xff]
    %vm370 = vcmask 261120
    %v372 = vsel %vm370, %v364, 0
    %374 = vmatprep.subr.mxu0 0.0
    %375 = vmatpush1.msra.mxu0 %v182
    %376 = vmatprep.subr.mxu0 0.0
    %377 = vmatpush1.msra.mxu0 %v184
    %378 = vmatprep.subr.mxu0 0.0
    %379 = vmatpush1.msra.mxu0 %v186
    %380 = vmatprep.subr.mxu0 0.0
    %381 = vmatpush1.msra.mxu0 %v188
    %382 = vmatprep.subr.mxu0 0.0
    %383 = vmatpush1.msra.mxu0 0.0
    %384 = vmatprep.subr.mxu0 0.0
    %385 = vmatpush1.msra.mxu0 0.0
    %386 = vmatprep.subr.mxu0 0.0
    %387 = vmatpush1.msra.mxu0 0.0
    %388 = vmatprep.subr.mxu0 0.0
    %389 = vmatpush1.msra.mxu0 0.0
    %390 = vmatprep.subr.mxu0 0.0
    %391 = vmatpush1.msra.mxu0 0.0
    %392 = vmatprep.subr.mxu0 0.0
    %393 = vmatpush1.msra.mxu0 0.0
    %394 = vmatprep.subr.mxu0 0.0
    %395 = vmatpush1.msra.mxu0 0.0
    %396 = vmatprep.subr.mxu0 0.0
    %397 = vmatpush1.msra.mxu0 0.0
    %398 = vmatprep.subr.mxu0 0.0
    %399 = vmatpush1.msra.mxu0 0.0
    %400 = vmatprep.subr.mxu0 0.0
    %401 = vmatpush1.msra.mxu0 0.0
    %402 = vmatprep.subr.mxu0 0.0
    %403 = vmatpush1.msra.mxu0 0.0
    %404 = vmatprep.subr.mxu0 0.0
    %405 = vmatpush1.msra.mxu0 0.0
    %406 = vmatprep.subr.mxu0 0.0
    %407 = vmatpush1.msra.mxu0 0.0
    %408 = vmatprep.subr.mxu0 0.0
    %409 = vmatpush1.msra.mxu0 0.0
    %410 = vmatprep.subr.mxu0 0.0
    %411 = vmatpush1.msra.mxu0 0.0
    %412 = vmatprep.subr.mxu0 0.0
    %413 = vmatpush1.msra.mxu0 0.0
    %414 = vmatprep.subr.mxu0 0.0
    %415 = vmatpush1.msra.mxu0 0.0
    %416 = vmatprep.subr.mxu0 0.0
    %417 = vmatpush1.msra.mxu0 0.0
    %418 = vmatprep.subr.mxu0 0.0
    %419 = vmatpush1.msra.mxu0 0.0
    %420 = vmatprep.subr.mxu0 0.0
    %421 = vmatpush1.msra.mxu0 0.0
    %422 = vmatprep.subr.mxu0 0.0
    %423 = vmatpush1.msra.mxu0 0.0
    %424 = vmatprep.subr.mxu0 0.0
    %425 = vmatpush1.msra.mxu0 0.0
    %426 = vmatprep.subr.mxu0 0.0
    %427 = vmatpush1.msra.mxu0 0.0
    %428 = vmatprep.subr.mxu0 0.0
    %429 = vmatpush1.msra.mxu0 0.0
    %430 = vmatprep.subr.mxu0 0.0
    %431 = vmatpush1.msra.mxu0 0.0
    %432 = vmatprep.subr.mxu0 0.0
    %433 = vmatpush1.msra.mxu0 0.0
    %434 = vmatprep.subr.mxu0 0.0
    %435 = vmatpush1.msra.mxu0 0.0
    %436 = vmatprep.subr.mxu0 0.0
    %437 = vmatpush1.msra.mxu0 0.0
    %438 = vmatprep.mubr.f32.mxu0 0.0
    %439 = vmatmul.mubr.f32.gmra.mrb[0].mxu0 %v372
    %v440 = vpop.f32.mrb[0].mxu0
    %v441 = vadd.f32 0.0, %v440
    %v442 = vpop.f32.mrb[0].mxu0
    %443 = vdwg.mxu0
    %v444 = vadd.f32 %v368, %v441
    %v446 = vsel %vm370, %v365, 0
    %448 = vmatprep.subr.mxu0 0.0
    %449 = vmatpush1.msra.mxu0 %v183
    %450 = vmatprep.subr.mxu0 0.0
    %451 = vmatpush1.msra.mxu0 %v185
    %452 = vmatprep.subr.mxu0 0.0
    %453 = vmatpush1.msra.mxu0 %v187
    %454 = vmatprep.subr.mxu0 0.0
    %455 = vmatpush1.msra.mxu0 %v189
    %456 = vmatprep.subr.mxu0 0.0
    %457 = vmatpush1.msra.mxu0 0.0
    %458 = vmatprep.subr.mxu0 0.0
    %459 = vmatpush1.msra.mxu0 0.0
    %460 = vmatprep.subr.mxu0 0.0
    %461 = vmatpush1.msra.mxu0 0.0
    %462 = vmatprep.subr.mxu0 0.0
    %463 = vmatpush1.msra.mxu0 0.0
    %464 = vmatprep.subr.mxu0 0.0
    %465 = vmatpush1.msra.mxu0 0.0
    %466 = vmatprep.subr.mxu0 0.0
    %467 = vmatpush1.msra.mxu0 0.0
    %468 = vmatprep.subr.mxu0 0.0
    %469 = vmatpush1.msra.mxu0 0.0
    %470 = vmatprep.subr.mxu0 0.0
    %471 = vmatpush1.msra.mxu0 0.0
    %472 = vmatprep.subr.mxu0 0.0
    %473 = vmatpush1.msra.mxu0 0.0
    %474 = vmatprep.subr.mxu0 0.0
    %475 = vmatpush1.msra.mxu0 0.0
    %476 = vmatprep.subr.mxu0 0.0
    %477 = vmatpush1.msra.mxu0 0.0
    %478 = vmatprep.subr.mxu0 0.0
    %479 = vmatpush1.msra.mxu0 0.0
    %480 = vmatprep.subr.mxu0 0.0
    %481 = vmatpush1.msra.mxu0 0.0
    %482 = vmatprep.subr.mxu0 0.0
    %483 = vmatpush1.msra.mxu0 0.0
    %484 = vmatprep.subr.mxu0 0.0
    %485 = vmatpush1.msra.mxu0 0.0
    %486 = vmatprep.subr.mxu0 0.0
    %487 = vmatpush1.msra.mxu0 0.0
    %488 = vmatprep.subr.mxu0 0.0
    %489 = vmatpush1.msra.mxu0 0.0
    %490 = vmatprep.subr.mxu0 0.0
    %491 = vmatpush1.msra.mxu0 0.0
    %492 = vmatprep.subr.mxu0 0.0
    %493 = vmatpush1.msra.mxu0 0.0
    %494 = vmatprep.subr.mxu0 0.0
    %495 = vmatpush1.msra.mxu0 0.0
    %496 = vmatprep.subr.mxu0 0.0
    %497 = vmatpush1.msra.mxu0 0.0
    %498 = vmatprep.subr.mxu0 0.0
    %499 = vmatpush1.msra.mxu0 0.0
    %500 = vmatprep.subr.mxu0 0.0
    %501 = vmatpush1.msra.mxu0 0.0
    %502 = vmatprep.subr.mxu0 0.0
    %503 = vmatpush1.msra.mxu0 0.0
    %504 = vmatprep.subr.mxu0 0.0
    %505 = vmatpush1.msra.mxu0 0.0
    %506 = vmatprep.subr.mxu0 0.0
    %507 = vmatpush1.msra.mxu0 0.0
    %508 = vmatprep.subr.mxu0 0.0
    %509 = vmatpush1.msra.mxu0 0.0
    %510 = vmatprep.subr.mxu0 0.0
    %511 = vmatpush1.msra.mxu0 0.0
    %512 = vmatprep.mubr.f32.mxu0 0.0
    %513 = vmatmul.mubr.f32.gmra.mrb[0].mxu0 %v446
    %v514 = vpop.f32.mrb[0].mxu0
    %v515 = vadd.f32 0.0, %v514
    %v516 = vpop.f32.mrb[0].mxu0
    %517 = vdwg.mxu0
    %v518 = vadd.f32 %v369, %v515
    %v519 = vxor.u32 %v444, 2147483648
    %v520 = vxor.u32 %v518, 2147483648
    %v521 = vmul.f32 %v519, 1.442695
    %v522 = vpow.pop %v521
    %v523 = vmul.f32 %v520, 1.442695
    %v524 = vpow.pop %v523
    %v525 = vadd.f32 %v522, 1.0
    %v526 = vadd.f32 %v524, 1.0
    %v527 = vrcp.pop %v525
    %v528 = vmul.f32 1.0, %v527
    %v529 = vrcp.pop %v526
    %v530 = vmul.f32 1.0, %v529
    %v531 = vtanh.pop %v444
    %v532 = vtanh.pop %v518
    %535 = vrot.lane.b32.xlu0 %v366, 32
    %v536 = vpop.permute.xlu0 %535
    %537 = vrot.lane.b32.xlu0 %v367, 32
    %v538 = vpop.permute.xlu0 %537
    %v541 = vmul.f32 %v528, %v536
    %v542 = vmul.f32 %v530, %v538
    %545 = vrot.lane.b32.xlu0 %v531, 32
    %v546 = vpop.permute.xlu0 %545
    %547 = vrot.lane.b32.xlu0 %v532, 32
    %v548 = vpop.permute.xlu0 %547
    %v551 = vmul.f32 %v528, %v546
    %v552 = vmul.f32 %v530, %v548
    %555 = vrot.lane.b32.xlu0 %v551, 32
    %v556 = vpop.permute.xlu0 %555
    %557 = vrot.lane.b32.xlu0 %v552, 32
    %v558 = vpop.permute.xlu0 %557
    %v561 = vadd.f32 %v541, %v556
    %v562 = vadd.f32 %v542, %v558
    %v563 = vtanh.pop %v561
    %v564 = vtanh.pop %v562
    %567 = vrot.lane.b32.xlu0 %v563, 32
    %v568 = vpop.permute.xlu0 %567
    %569 = vrot.lane.b32.xlu0 %v564, 32
    %v570 = vpop.permute.xlu0 %569
    %v573 = vmul.f32 %v528, %v568
    %v574 = vmul.f32 %v530, %v570
    %576 = vrot.lane.b32.xlu0 %v573, 64
    %v577 = vpop.permute.xlu0 %576
    %579 = vst.msk [vmem:[#allocation3] sm:$0xff] %vm370, %v577
    %581 = vrot.lane.b32.xlu0 %v574, 96
    %v582 = vpop.permute.xlu0 %581
    %vm584 = vcmask 523520
    %585 = vst.msk [vmem:[#allocation3 + $0x38] sm:$0xff] %vm584, %v582
    %v586 = vld [vmem:[#allocation2 + $0x10] sm:$0xff]
    %v587 = vld [vmem:[#allocation2 + $0x68] sm:$0xff]
    %v588 = vsel %vm370, %v577, 0
    %590 = vmatprep.subr.mxu0 0.0
    %591 = vmatpush1.msra.mxu0 %v182
    %592 = vmatprep.subr.mxu0 0.0
    %593 = vmatpush1.msra.mxu0 %v184
    %594 = vmatprep.subr.mxu0 0.0
    %595 = vmatpush1.msra.mxu0 %v186
    %596 = vmatprep.subr.mxu0 0.0
    %597 = vmatpush1.msra.mxu0 %v188
    %598 = vmatprep.subr.mxu0 0.0
    %599 = vmatpush1.msra.mxu0 0.0
    %600 = vmatprep.subr.mxu0 0.0
    %601 = vmatpush1.msra.mxu0 0.0
    %602 = vmatprep.subr.mxu0 0.0
    %603 = vmatpush1.msra.mxu0 0.0
    %604 = vmatprep.subr.mxu0 0.0
    %605 = vmatpush1.msra.mxu0 0.0
    %606 = vmatprep.subr.mxu0 0.0
    %607 = vmatpush1.msra.mxu0 0.0
    %608 = vmatprep.subr.mxu0 0.0
    %609 = vmatpush1.msra.mxu0 0.0
    %610 = vmatprep.subr.mxu0 0.0
    %611 = vmatpush1.msra.mxu0 0.0
    %612 = vmatprep.subr.mxu0 0.0
    %613 = vmatpush1.msra.mxu0 0.0
    %614 = vmatprep.subr.mxu0 0.0
    %615 = vmatpush1.msra.mxu0 0.0
    %616 = vmatprep.subr.mxu0 0.0
    %617 = vmatpush1.msra.mxu0 0.0
    %618 = vmatprep.subr.mxu0 0.0
    %619 = vmatpush1.msra.mxu0 0.0
    %620 = vmatprep.subr.mxu0 0.0
    %621 = vmatpush1.msra.mxu0 0.0
    %622 = vmatprep.subr.mxu0 0.0
    %623 = vmatpush1.msra.mxu0 0.0
    %624 = vmatprep.subr.mxu0 0.0
    %625 = vmatpush1.msra.mxu0 0.0
    %626 = vmatprep.subr.mxu0 0.0
    %627 = vmatpush1.msra.mxu0 0.0
    %628 = vmatprep.subr.mxu0 0.0
    %629 = vmatpush1.msra.mxu0 0.0
    %630 = vmatprep.subr.mxu0 0.0
    %631 = vmatpush1.msra.mxu0 0.0
    %632 = vmatprep.subr.mxu0 0.0
    %633 = vmatpush1.msra.mxu0 0.0
    %634 = vmatprep.subr.mxu0 0.0
    %635 = vmatpush1.msra.mxu0 0.0
    %636 = vmatprep.subr.mxu0 0.0
    %637 = vmatpush1.msra.mxu0 0.0
    %638 = vmatprep.subr.mxu0 0.0
    %639 = vmatpush1.msra.mxu0 0.0
    %640 = vmatprep.subr.mxu0 0.0
    %641 = vmatpush1.msra.mxu0 0.0
    %642 = vmatprep.subr.mxu0 0.0
    %643 = vmatpush1.msra.mxu0 0.0
    %644 = vmatprep.subr.mxu0 0.0
    %645 = vmatpush1.msra.mxu0 0.0
    %646 = vmatprep.subr.mxu0 0.0
    %647 = vmatpush1.msra.mxu0 0.0
    %648 = vmatprep.subr.mxu0 0.0
    %649 = vmatpush1.msra.mxu0 0.0
    %650 = vmatprep.subr.mxu0 0.0
    %651 = vmatpush1.msra.mxu0 0.0
    %652 = vmatprep.subr.mxu0 0.0
    %653 = vmatpush1.msra.mxu0 0.0
    %654 = vmatprep.mubr.f32.mxu0 0.0
    %655 = vmatmul.mubr.f32.gmra.mrb[0].mxu0 %v588
    %v656 = vpop.f32.mrb[0].mxu0
    %v657 = vadd.f32 0.0, %v656
    %v658 = vpop.f32.mrb[0].mxu0
    %659 = vdwg.mxu0
    %v660 = vadd.f32 %v586, %v657
    %661 = vrot.lane.b32.xlu0 %v574, 64
    %v662 = vpop.permute.xlu0 %661
    %v663 = vsel %vm370, %v662, 0
    %665 = vmatprep.subr.mxu0 0.0
    %666 = vmatpush1.msra.mxu0 %v183
    %667 = vmatprep.subr.mxu0 0.0
    %668 = vmatpush1.msra.mxu0 %v185
    %669 = vmatprep.subr.mxu0 0.0
    %670 = vmatpush1.msra.mxu0 %v187
    %671 = vmatprep.subr.mxu0 0.0
    %672 = vmatpush1.msra.mxu0 %v189
    %673 = vmatprep.subr.mxu0 0.0
    %674 = vmatpush1.msra.mxu0 0.0
    %675 = vmatprep.subr.mxu0 0.0
    %676 = vmatpush1.msra.mxu0 0.0
    %677 = vmatprep.subr.mxu0 0.0
    %678 = vmatpush1.msra.mxu0 0.0
    %679 = vmatprep.subr.mxu0 0.0
    %680 = vmatpush1.msra.mxu0 0.0
    %681 = vmatprep.subr.mxu0 0.0
    %682 = vmatpush1.msra.mxu0 0.0
    %683 = vmatprep.subr.mxu0 0.0
    %684 = vmatpush1.msra.mxu0 0.0
    %685 = vmatprep.subr.mxu0 0.0
    %686 = vmatpush1.msra.mxu0 0.0
    %687 = vmatprep.subr.mxu0 0.0
    %688 = vmatpush1.msra.mxu0 0.0
    %689 = vmatprep.subr.mxu0 0.0
    %690 = vmatpush1.msra.mxu0 0.0
    %691 = vmatprep.subr.mxu0 0.0
    %692 = vmatpush1.msra.mxu0 0.0
    %693 = vmatprep.subr.mxu0 0.0
    %694 = vmatpush1.msra.mxu0 0.0
    %695 = vmatprep.subr.mxu0 0.0
    %696 = vmatpush1.msra.mxu0 0.0
    %697 = vmatprep.subr.mxu0 0.0
    %698 = vmatpush1.msra.mxu0 0.0
    %699 = vmatprep.subr.mxu0 0.0
    %700 = vmatpush1.msra.mxu0 0.0
    %701 = vmatprep.subr.mxu0 0.0
    %702 = vmatpush1.msra.mxu0 0.0
    %703 = vmatprep.subr.mxu0 0.0
    %704 = vmatpush1.msra.mxu0 0.0
    %705 = vmatprep.subr.mxu0 0.0
    %706 = vmatpush1.msra.mxu0 0.0
    %707 = vmatprep.subr.mxu0 0.0
    %708 = vmatpush1.msra.mxu0 0.0
    %709 = vmatprep.subr.mxu0 0.0
    %710 = vmatpush1.msra.mxu0 0.0
    %711 = vmatprep.subr.mxu0 0.0
    %712 = vmatpush1.msra.mxu0 0.0
    %713 = vmatprep.subr.mxu0 0.0
    %714 = vmatpush1.msra.mxu0 0.0
    %715 = vmatprep.subr.mxu0 0.0
    %716 = vmatpush1.msra.mxu0 0.0
    %717 = vmatprep.subr.mxu0 0.0
    %718 = vmatpush1.msra.mxu0 0.0
    %719 = vmatprep.subr.mxu0 0.0
    %720 = vmatpush1.msra.mxu0 0.0
    %721 = vmatprep.subr.mxu0 0.0
    %722 = vmatpush1.msra.mxu0 0.0
    %723 = vmatprep.subr.mxu0 0.0
    %724 = vmatpush1.msra.mxu0 0.0
    %725 = vmatprep.subr.mxu0 0.0
    %726 = vmatpush1.msra.mxu0 0.0
    %727 = vmatprep.subr.mxu0 0.0
    %728 = vmatpush1.msra.mxu0 0.0
    %729 = vmatprep.mubr.f32.mxu0 0.0
    %730 = vmatmul.mubr.f32.gmra.mrb[0].mxu0 %v663
    %v731 = vpop.f32.mrb[0].mxu0
    %v732 = vadd.f32 0.0, %v731
    %v733 = vpop.f32.mrb[0].mxu0
    %734 = vdwg.mxu0
    %v735 = vadd.f32 %v587, %v732
    %v736 = vxor.u32 %v660, 2147483648
    %v737 = vxor.u32 %v735, 2147483648
    %v738 = vmul.f32 %v736, 1.442695
    %v739 = vpow.pop %v738
    %v740 = vmul.f32 %v737, 1.442695
    %v741 = vpow.pop %v740
    %v742 = vadd.f32 %v739, 1.0
    %v743 = vadd.f32 %v741, 1.0
    %v744 = vrcp.pop %v742
    %v745 = vmul.f32 1.0, %v744
    %v746 = vrcp.pop %v743
    %v747 = vmul.f32 1.0, %v746
    %v748 = vtanh.pop %v660
    %v749 = vtanh.pop %v735
    %v750 = vmul.f32 %v745, %v561
    %v751 = vmul.f32 %v747, %v562
    %754 = vrot.lane.b32.xlu0 %v748, 32
    %v755 = vpop.permute.xlu0 %754
    %756 = vrot.lane.b32.xlu0 %v749, 32
    %v757 = vpop.permute.xlu0 %756
    %v760 = vmul.f32 %v745, %v755
    %v761 = vmul.f32 %v747, %v757
    %764 = vrot.lane.b32.xlu0 %v760, 32
    %v765 = vpop.permute.xlu0 %764
    %766 = vrot.lane.b32.xlu0 %v761, 32
    %v767 = vpop.permute.xlu0 %766
    %v770 = vadd.f32 %v750, %v765
    %v771 = vadd.f32 %v751, %v767
    %v772 = vtanh.pop %v770
    %v773 = vtanh.pop %v771
    %776 = vrot.lane.b32.xlu0 %v772, 32
    %v777 = vpop.permute.xlu0 %776
    %778 = vrot.lane.b32.xlu0 %v773, 32
    %v779 = vpop.permute.xlu0 %778
    %v782 = vmul.f32 %v745, %v777
    %v783 = vmul.f32 %v747, %v779
    %785 = vrot.lane.b32.xlu0 %v782, 64
    %v786 = vpop.permute.xlu0 %785
    %788 = vst.msk [vmem:[#allocation3 + $0x8] sm:$0xff] %vm370, %v786
    %790 = vrot.lane.b32.xlu0 %v783, 96
    %v791 = vpop.permute.xlu0 %790
    %793 = vst.msk [vmem:[#allocation3 + $0x30] sm:$0xff] %vm584, %v791
    %v794 = vld [vmem:[#allocation2 + $0x20] sm:$0xff]
    %v795 = vld [vmem:[#allocation2 + $0x58] sm:$0xff]
    %v796 = vsel %vm370, %v786, 0
    %798 = vmatprep.subr.mxu0 0.0
    %799 = vmatpush1.msra.mxu0 %v182
    %800 = vmatprep.subr.mxu0 0.0
    %801 = vmatpush1.msra.mxu0 %v184
    %802 = vmatprep.subr.mxu0 0.0
    %803 = vmatpush1.msra.mxu0 %v186
    %804 = vmatprep.subr.mxu0 0.0
    %805 = vmatpush1.msra.mxu0 %v188
    %806 = vmatprep.subr.mxu0 0.0
    %807 = vmatpush1.msra.mxu0 0.0
    %808 = vmatprep.subr.mxu0 0.0
    %809 = vmatpush1.msra.mxu0 0.0
    %810 = vmatprep.subr.mxu0 0.0
    %811 = vmatpush1.msra.mxu0 0.0
    %812 = vmatprep.subr.mxu0 0.0
    %813 = vmatpush1.msra.mxu0 0.0
    %814 = vmatprep.subr.mxu0 0.0
    %815 = vmatpush1.msra.mxu0 0.0
    %816 = vmatprep.subr.mxu0 0.0
    %817 = vmatpush1.msra.mxu0 0.0
    %818 = vmatprep.subr.mxu0 0.0
    %819 = vmatpush1.msra.mxu0 0.0
    %820 = vmatprep.subr.mxu0 0.0
    %821 = vmatpush1.msra.mxu0 0.0
    %822 = vmatprep.subr.mxu0 0.0
    %823 = vmatpush1.msra.mxu0 0.0
    %824 = vmatprep.subr.mxu0 0.0
    %825 = vmatpush1.msra.mxu0 0.0
    %826 = vmatprep.subr.mxu0 0.0
    %827 = vmatpush1.msra.mxu0 0.0
    %828 = vmatprep.subr.mxu0 0.0
    %829 = vmatpush1.msra.mxu0 0.0
    %830 = vmatprep.subr.mxu0 0.0
    %831 = vmatpush1.msra.mxu0 0.0
    %832 = vmatprep.subr.mxu0 0.0
    %833 = vmatpush1.msra.mxu0 0.0
    %834 = vmatprep.subr.mxu0 0.0
    %835 = vmatpush1.msra.mxu0 0.0
    %836 = vmatprep.subr.mxu0 0.0
    %837 = vmatpush1.msra.mxu0 0.0
    %838 = vmatprep.subr.mxu0 0.0
    %839 = vmatpush1.msra.mxu0 0.0
    %840 = vmatprep.subr.mxu0 0.0
    %841 = vmatpush1.msra.mxu0 0.0
    %842 = vmatprep.subr.mxu0 0.0
    %843 = vmatpush1.msra.mxu0 0.0
    %844 = vmatprep.subr.mxu0 0.0
    %845 = vmatpush1.msra.mxu0 0.0
    %846 = vmatprep.subr.mxu0 0.0
    %847 = vmatpush1.msra.mxu0 0.0
    %848 = vmatprep.subr.mxu0 0.0
    %849 = vmatpush1.msra.mxu0 0.0
    %850 = vmatprep.subr.mxu0 0.0
    %851 = vmatpush1.msra.mxu0 0.0
    %852 = vmatprep.subr.mxu0 0.0
    %853 = vmatpush1.msra.mxu0 0.0
    %854 = vmatprep.subr.mxu0 0.0
    %855 = vmatpush1.msra.mxu0 0.0
    %856 = vmatprep.subr.mxu0 0.0
    %857 = vmatpush1.msra.mxu0 0.0
    %858 = vmatprep.subr.mxu0 0.0
    %859 = vmatpush1.msra.mxu0 0.0
    %860 = vmatprep.subr.mxu0 0.0
    %861 = vmatpush1.msra.mxu0 0.0
    %862 = vmatprep.mubr.f32.mxu0 0.0
    %863 = vmatmul.mubr.f32.gmra.mrb[0].mxu0 %v796
    %v864 = vpop.f32.mrb[0].mxu0
    %v865 = vadd.f32 0.0, %v864
    %v866 = vpop.f32.mrb[0].mxu0
    %867 = vdwg.mxu0
    %v868 = vadd.f32 %v794, %v865
    %869 = vrot.lane.b32.xlu0 %v783, 64
    %v870 = vpop.permute.xlu0 %869
    %v871 = vsel %vm370, %v870, 0
    %873 = vmatprep.subr.mxu0 0.0
    %874 = vmatpush1.msra.mxu0 %v183
    %875 = vmatprep.subr.mxu0 0.0
    %876 = vmatpush1.msra.mxu0 %v185
    %877 = vmatprep.subr.mxu0 0.0
    %878 = vmatpush1.msra.mxu0 %v187
    %879 = vmatprep.subr.mxu0 0.0
    %880 = vmatpush1.msra.mxu0 %v189
    %881 = vmatprep.subr.mxu0 0.0
    %882 = vmatpush1.msra.mxu0 0.0
    %883 = vmatprep.subr.mxu0 0.0
    %884 = vmatpush1.msra.mxu0 0.0
    %885 = vmatprep.subr.mxu0 0.0
    %886 = vmatpush1.msra.mxu0 0.0
    %887 = vmatprep.subr.mxu0 0.0
    %888 = vmatpush1.msra.mxu0 0.0
    %889 = vmatprep.subr.mxu0 0.0
    %890 = vmatpush1.msra.mxu0 0.0
    %891 = vmatprep.subr.mxu0 0.0
    %892 = vmatpush1.msra.mxu0 0.0
    %893 = vmatprep.subr.mxu0 0.0
    %894 = vmatpush1.msra.mxu0 0.0
    %895 = vmatprep.subr.mxu0 0.0
    %896 = vmatpush1.msra.mxu0 0.0
    %897 = vmatprep.subr.mxu0 0.0
    %898 = vmatpush1.msra.mxu0 0.0
    %899 = vmatprep.subr.mxu0 0.0
    %900 = vmatpush1.msra.mxu0 0.0
    %901 = vmatprep.subr.mxu0 0.0
    %902 = vmatpush1.msra.mxu0 0.0
    %903 = vmatprep.subr.mxu0 0.0
    %904 = vmatpush1.msra.mxu0 0.0
    %905 = vmatprep.subr.mxu0 0.0
    %906 = vmatpush1.msra.mxu0 0.0
    %907 = vmatprep.subr.mxu0 0.0
    %908 = vmatpush1.msra.mxu0 0.0
    %909 = vmatprep.subr.mxu0 0.0
    %910 = vmatpush1.msra.mxu0 0.0
    %911 = vmatprep.subr.mxu0 0.0
    %912 = vmatpush1.msra.mxu0 0.0
    %913 = vmatprep.subr.mxu0 0.0
    %914 = vmatpush1.msra.mxu0 0.0
    %915 = vmatprep.subr.mxu0 0.0
    %916 = vmatpush1.msra.mxu0 0.0
    %917 = vmatprep.subr.mxu0 0.0
    %918 = vmatpush1.msra.mxu0 0.0
    %919 = vmatprep.subr.mxu0 0.0
    %920 = vmatpush1.msra.mxu0 0.0
    %921 = vmatprep.subr.mxu0 0.0
    %922 = vmatpush1.msra.mxu0 0.0
    %923 = vmatprep.subr.mxu0 0.0
    %924 = vmatpush1.msra.mxu0 0.0
    %925 = vmatprep.subr.mxu0 0.0
    %926 = vmatpush1.msra.mxu0 0.0
    %927 = vmatprep.subr.mxu0 0.0
    %928 = vmatpush1.msra.mxu0 0.0
    %929 = vmatprep.subr.mxu0 0.0
    %930 = vmatpush1.msra.mxu0 0.0
    %931 = vmatprep.subr.mxu0 0.0
    %932 = vmatpush1.msra.mxu0 0.0
    %933 = vmatprep.subr.mxu0 0.0
    %934 = vmatpush1.msra.mxu0 0.0
    %935 = vmatprep.subr.mxu0 0.0
    %936 = vmatpush1.msra.mxu0 0.0
    %937 = vmatprep.mubr.f32.mxu0 0.0
    %938 = vmatmul.mubr.f32.gmra.mrb[0].mxu0 %v871
    %v939 = vpop.f32.mrb[0].mxu0
    %v940 = vadd.f32 0.0, %v939
    %v941 = vpop.f32.mrb[0].mxu0
    %942 = vdwg.mxu0
    %v943 = vadd.f32 %v795, %v940
    %v944 = vxor.u32 %v868, 2147483648
    %v945 = vxor.u32 %v943, 2147483648
    %v946 = vmul.f32 %v944, 1.442695
    %v947 = vpow.pop %v946
    %v948 = vmul.f32 %v945, 1.442695
    %v949 = vpow.pop %v948
    %v950 = vadd.f32 %v947, 1.0
    %v951 = vadd.f32 %v949, 1.0
    %v952 = vrcp.pop %v950
    %v953 = vmul.f32 1.0, %v952
    %v954 = vrcp.pop %v951
    %v955 = vmul.f32 1.0, %v954
    %v956 = vtanh.pop %v868
    %v957 = vtanh.pop %v943
    %v958 = vmul.f32 %v953, %v770
    %v959 = vmul.f32 %v955, %v771
    %962 = vrot.lane.b32.xlu0 %v956, 32
    %v963 = vpop.permute.xlu0 %962
    %964 = vrot.lane.b32.xlu0 %v957, 32
    %v965 = vpop.permute.xlu0 %964
    %v968 = vmul.f32 %v953, %v963
    %v969 = vmul.f32 %v955, %v965
    %972 = vrot.lane.b32.xlu0 %v968, 32
    %v973 = vpop.permute.xlu0 %972
    %974 = vrot.lane.b32.xlu0 %v969, 32
    %v975 = vpop.permute.xlu0 %974
    %v978 = vadd.f32 %v958, %v973
    %v979 = vadd.f32 %v959, %v975
    %v980 = vtanh.pop %v978
    %v981 = vtanh.pop %v979
    %984 = vrot.lane.b32.xlu0 %v980, 32
    %v985 = vpop.permute.xlu0 %984
    %986 = vrot.lane.b32.xlu0 %v981, 32
    %v987 = vpop.permute.xlu0 %986
    %v990 = vmul.f32 %v953, %v985
    %v991 = vmul.f32 %v955, %v987
    %993 = vrot.lane.b32.xlu0 %v990, 64
    %v994 = vpop.permute.xlu0 %993
    %996 = vst.msk [vmem:[#allocation3 + $0x10] sm:$0xff] %vm370, %v994
    %998 = vrot.lane.b32.xlu0 %v991, 96
    %v999 = vpop.permute.xlu0 %998
    %1001 = vst.msk [vmem:[#allocation3 + $0x28] sm:$0xff] %vm584, %v999
    %v1002 = vld [vmem:[#allocation2 + $0x30] sm:$0xff]
    %v1003 = vld [vmem:[#allocation2 + $0x48] sm:$0xff]
    %v1004 = vsel %vm370, %v994, 0
    %1006 = vmatprep.subr.mxu0 0.0
    %1007 = vmatpush1.msra.mxu0 %v182
    %1008 = vmatprep.subr.mxu0 0.0
    %1009 = vmatpush1.msra.mxu0 %v184
    %1010 = vmatprep.subr.mxu0 0.0
    %1011 = vmatpush1.msra.mxu0 %v186
    %1012 = vmatprep.subr.mxu0 0.0
    %1013 = vmatpush1.msra.mxu0 %v188
    %1014 = vmatprep.subr.mxu0 0.0
    %1015 = vmatpush1.msra.mxu0 0.0
    %1016 = vmatprep.subr.mxu0 0.0
    %1017 = vmatpush1.msra.mxu0 0.0
    %1018 = vmatprep.subr.mxu0 0.0
    %1019 = vmatpush1.msra.mxu0 0.0
    %1020 = vmatprep.subr.mxu0 0.0
    %1021 = vmatpush1.msra.mxu0 0.0
    %1022 = vmatprep.subr.mxu0 0.0
    %1023 = vmatpush1.msra.mxu0 0.0
    %1024 = vmatprep.subr.mxu0 0.0
    %1025 = vmatpush1.msra.mxu0 0.0
    %1026 = vmatprep.subr.mxu0 0.0
    %1027 = vmatpush1.msra.mxu0 0.0
    %1028 = vmatprep.subr.mxu0 0.0
    %1029 = vmatpush1.msra.mxu0 0.0
    %1030 = vmatprep.subr.mxu0 0.0
    %1031 = vmatpush1.msra.mxu0 0.0
    %1032 = vmatprep.subr.mxu0 0.0
    %1033 = vmatpush1.msra.mxu0 0.0
    %1034 = vmatprep.subr.mxu0 0.0
    %1035 = vmatpush1.msra.mxu0 0.0
    %1036 = vmatprep.subr.mxu0 0.0
    %1037 = vmatpush1.msra.mxu0 0.0
    %1038 = vmatprep.subr.mxu0 0.0
    %1039 = vmatpush1.msra.mxu0 0.0
    %1040 = vmatprep.subr.mxu0 0.0
    %1041 = vmatpush1.msra.mxu0 0.0
    %1042 = vmatprep.subr.mxu0 0.0
    %1043 = vmatpush1.msra.mxu0 0.0
    %1044 = vmatprep.subr.mxu0 0.0
    %1045 = vmatpush1.msra.mxu0 0.0
    %1046 = vmatprep.subr.mxu0 0.0
    %1047 = vmatpush1.msra.mxu0 0.0
    %1048 = vmatprep.subr.mxu0 0.0
    %1049 = vmatpush1.msra.mxu0 0.0
    %1050 = vmatprep.subr.mxu0 0.0
    %1051 = vmatpush1.msra.mxu0 0.0
    %1052 = vmatprep.subr.mxu0 0.0
    %1053 = vmatpush1.msra.mxu0 0.0
    %1054 = vmatprep.subr.mxu0 0.0
    %1055 = vmatpush1.msra.mxu0 0.0
    %1056 = vmatprep.subr.mxu0 0.0
    %1057 = vmatpush1.msra.mxu0 0.0
    %1058 = vmatprep.subr.mxu0 0.0
    %1059 = vmatpush1.msra.mxu0 0.0
    %1060 = vmatprep.subr.mxu0 0.0
    %1061 = vmatpush1.msra.mxu0 0.0
    %1062 = vmatprep.subr.mxu0 0.0
    %1063 = vmatpush1.msra.mxu0 0.0
    %1064 = vmatprep.subr.mxu0 0.0
    %1065 = vmatpush1.msra.mxu0 0.0
    %1066 = vmatprep.subr.mxu0 0.0
    %1067 = vmatpush1.msra.mxu0 0.0
    %1068 = vmatprep.subr.mxu0 0.0
    %1069 = vmatpush1.msra.mxu0 0.0
    %1070 = vmatprep.mubr.f32.mxu0 0.0
    %1071 = vmatmul.mubr.f32.gmra.mrb[0].mxu0 %v1004
    %v1072 = vpop.f32.mrb[0].mxu0
    %v1073 = vadd.f32 0.0, %v1072
    %v1074 = vpop.f32.mrb[0].mxu0
    %1075 = vdwg.mxu0
    %v1076 = vadd.f32 %v1002, %v1073
    %1077 = vrot.lane.b32.xlu0 %v991, 64
    %v1078 = vpop.permute.xlu0 %1077
    %v1079 = vsel %vm370, %v1078, 0
    %1081 = vmatprep.subr.mxu0 0.0
    %1082 = vmatpush1.msra.mxu0 %v183
    %1083 = vmatprep.subr.mxu0 0.0
    %1084 = vmatpush1.msra.mxu0 %v185
    %1085 = vmatprep.subr.mxu0 0.0
    %1086 = vmatpush1.msra.mxu0 %v187
    %1087 = vmatprep.subr.mxu0 0.0
    %1088 = vmatpush1.msra.mxu0 %v189
    %1089 = vmatprep.subr.mxu0 0.0
    %1090 = vmatpush1.msra.mxu0 0.0
    %1091 = vmatprep.subr.mxu0 0.0
    %1092 = vmatpush1.msra.mxu0 0.0
    %1093 = vmatprep.subr.mxu0 0.0
    %1094 = vmatpush1.msra.mxu0 0.0
    %1095 = vmatprep.subr.mxu0 0.0
    %1096 = vmatpush1.msra.mxu0 0.0
    %1097 = vmatprep.subr.mxu0 0.0
    %1098 = vmatpush1.msra.mxu0 0.0
    %1099 = vmatprep.subr.mxu0 0.0
    %1100 = vmatpush1.msra.mxu0 0.0
    %1101 = vmatprep.subr.mxu0 0.0
    %1102 = vmatpush1.msra.mxu0 0.0
    %1103 = vmatprep.subr.mxu0 0.0
    %1104 = vmatpush1.msra.mxu0 0.0
    %1105 = vmatprep.subr.mxu0 0.0
    %1106 = vmatpush1.msra.mxu0 0.0
    %1107 = vmatprep.subr.mxu0 0.0
    %1108 = vmatpush1.msra.mxu0 0.0
    %1109 = vmatprep.subr.mxu0 0.0
    %1110 = vmatpush1.msra.mxu0 0.0
    %1111 = vmatprep.subr.mxu0 0.0
    %1112 = vmatpush1.msra.mxu0 0.0
    %1113 = vmatprep.subr.mxu0 0.0
    %1114 = vmatpush1.msra.mxu0 0.0
    %1115 = vmatprep.subr.mxu0 0.0
    %1116 = vmatpush1.msra.mxu0 0.0
    %1117 = vmatprep.subr.mxu0 0.0
    %1118 = vmatpush1.msra.mxu0 0.0
    %1119 = vmatprep.subr.mxu0 0.0
    %1120 = vmatpush1.msra.mxu0 0.0
    %1121 = vmatprep.subr.mxu0 0.0
    %1122 = vmatpush1.msra.mxu0 0.0
    %1123 = vmatprep.subr.mxu0 0.0
    %1124 = vmatpush1.msra.mxu0 0.0
    %1125 = vmatprep.subr.mxu0 0.0
    %1126 = vmatpush1.msra.mxu0 0.0
    %1127 = vmatprep.subr.mxu0 0.0
    %1128 = vmatpush1.msra.mxu0 0.0
    %1129 = vmatprep.subr.mxu0 0.0
    %1130 = vmatpush1.msra.mxu0 0.0
    %1131 = vmatprep.subr.mxu0 0.0
    %1132 = vmatpush1.msra.mxu0 0.0
    %1133 = vmatprep.subr.mxu0 0.0
    %1134 = vmatpush1.msra.mxu0 0.0
    %1135 = vmatprep.subr.mxu0 0.0
    %1136 = vmatpush1.msra.mxu0 0.0
    %1137 = vmatprep.subr.mxu0 0.0
    %1138 = vmatpush1.msra.mxu0 0.0
    %1139 = vmatprep.subr.mxu0 0.0
    %1140 = vmatpush1.msra.mxu0 0.0
    %1141 = vmatprep.subr.mxu0 0.0
    %1142 = vmatpush1.msra.mxu0 0.0
    %1143 = vmatprep.subr.mxu0 0.0
    %1144 = vmatpush1.msra.mxu0 0.0
    %1145 = vmatprep.mubr.f32.mxu0 0.0
    %1146 = vmatmul.mubr.f32.gmra.mrb[0].mxu0 %v1079
    %v1147 = vpop.f32.mrb[0].mxu0
    %v1148 = vadd.f32 0.0, %v1147
    %v1149 = vpop.f32.mrb[0].mxu0
    %1150 = vdwg.mxu0
    %v1151 = vadd.f32 %v1003, %v1148
    %v1152 = vxor.u32 %v1076, 2147483648
    %v1153 = vxor.u32 %v1151, 2147483648
    %v1154 = vmul.f32 %v1152, 1.442695
    %v1155 = vpow.pop %v1154
    %v1156 = vmul.f32 %v1153, 1.442695
    %v1157 = vpow.pop %v1156
    %v1158 = vadd.f32 %v1155, 1.0
    %v1159 = vadd.f32 %v1157, 1.0
    %v1160 = vrcp.pop %v1158
    %v1161 = vmul.f32 1.0, %v1160
    %v1162 = vrcp.pop %v1159
    %v1163 = vmul.f32 1.0, %v1162
    %v1164 = vtanh.pop %v1076
    %v1165 = vtanh.pop %v1151
    %v1166 = vmul.f32 %v1161, %v978
    %v1167 = vmul.f32 %v1163, %v979
    %1170 = vrot.lane.b32.xlu0 %v1164, 32
    %v1171 = vpop.permute.xlu0 %1170
    %1172 = vrot.lane.b32.xlu0 %v1165, 32
    %v1173 = vpop.permute.xlu0 %1172
    %v1176 = vmul.f32 %v1161, %v1171
    %v1177 = vmul.f32 %v1163, %v1173
    %1180 = vrot.lane.b32.xlu0 %v1176, 32
    %v1181 = vpop.permute.xlu0 %1180
    %1182 = vrot.lane.b32.xlu0 %v1177, 32
    %v1183 = vpop.permute.xlu0 %1182
    %v1186 = vadd.f32 %v1166, %v1181
    %v1187 = vadd.f32 %v1167, %v1183
    %v1188 = vtanh.pop %v1186
    %v1189 = vtanh.pop %v1187
    %1192 = vrot.lane.b32.xlu0 %v1188, 32
    %v1193 = vpop.permute.xlu0 %1192
    %1194 = vrot.lane.b32.xlu0 %v1189, 32
    %v1195 = vpop.permute.xlu0 %1194
    %v1198 = vmul.f32 %v1161, %v1193
    %v1199 = vmul.f32 %v1163, %v1195
    %1201 = vrot.lane.b32.xlu0 %v1198, 64
    %v1202 = vpop.permute.xlu0 %1201
    %1204 = vst.msk [vmem:[#allocation3 + $0x18] sm:$0xff] %vm370, %v1202
    %1206 = vrot.lane.b32.xlu0 %v1199, 96
    %v1207 = vpop.permute.xlu0 %1206
    %1209 = vst.msk [vmem:[#allocation3 + $0x20] sm:$0xff] %vm584, %v1207
    %v1210 = vld [vmem:[#allocation2 + $0x40] sm:$0xff]
    %v1211 = vld [vmem:[#allocation2 + $0x38] sm:$0xff]
    %v1212 = vsel %vm370, %v1202, 0
    %1214 = vmatprep.subr.mxu0 0.0
    %1215 = vmatpush1.msra.mxu0 %v182
    %1216 = vmatprep.subr.mxu0 0.0
    %1217 = vmatpush1.msra.mxu0 %v184
    %1218 = vmatprep.subr.mxu0 0.0
    %1219 = vmatpush1.msra.mxu0 %v186
    %1220 = vmatprep.subr.mxu0 0.0
    %1221 = vmatpush1.msra.mxu0 %v188
    %1222 = vmatprep.subr.mxu0 0.0
    %1223 = vmatpush1.msra.mxu0 0.0
    %1224 = vmatprep.subr.mxu0 0.0
    %1225 = vmatpush1.msra.mxu0 0.0
    %1226 = vmatprep.subr.mxu0 0.0
    %1227 = vmatpush1.msra.mxu0 0.0
    %1228 = vmatprep.subr.mxu0 0.0
    %1229 = vmatpush1.msra.mxu0 0.0
    %1230 = vmatprep.subr.mxu0 0.0
    %1231 = vmatpush1.msra.mxu0 0.0
    %1232 = vmatprep.subr.mxu0 0.0
    %1233 = vmatpush1.msra.mxu0 0.0
    %1234 = vmatprep.subr.mxu0 0.0
    %1235 = vmatpush1.msra.mxu0 0.0
    %1236 = vmatprep.subr.mxu0 0.0
    %1237 = vmatpush1.msra.mxu0 0.0
    %1238 = vmatprep.subr.mxu0 0.0
    %1239 = vmatpush1.msra.mxu0 0.0
    %1240 = vmatprep.subr.mxu0 0.0
    %1241 = vmatpush1.msra.mxu0 0.0
    %1242 = vmatprep.subr.mxu0 0.0
    %1243 = vmatpush1.msra.mxu0 0.0
    %1244 = vmatprep.subr.mxu0 0.0
    %1245 = vmatpush1.msra.mxu0 0.0
    %1246 = vmatprep.subr.mxu0 0.0
    %1247 = vmatpush1.msra.mxu0 0.0
    %1248 = vmatprep.subr.mxu0 0.0
    %1249 = vmatpush1.msra.mxu0 0.0
    %1250 = vmatprep.subr.mxu0 0.0
    %1251 = vmatpush1.msra.mxu0 0.0
    %1252 = vmatprep.subr.mxu0 0.0
    %1253 = vmatpush1.msra.mxu0 0.0
    %1254 = vmatprep.subr.mxu0 0.0
    %1255 = vmatpush1.msra.mxu0 0.0
    %1256 = vmatprep.subr.mxu0 0.0
    %1257 = vmatpush1.msra.mxu0 0.0
    %1258 = vmatprep.subr.mxu0 0.0
    %1259 = vmatpush1.msra.mxu0 0.0
    %1260 = vmatprep.subr.mxu0 0.0
    %1261 = vmatpush1.msra.mxu0 0.0
    %1262 = vmatprep.subr.mxu0 0.0
    %1263 = vmatpush1.msra.mxu0 0.0
    %1264 = vmatprep.subr.mxu0 0.0
    %1265 = vmatpush1.msra.mxu0 0.0
    %1266 = vmatprep.subr.mxu0 0.0
    %1267 = vmatpush1.msra.mxu0 0.0
    %1268 = vmatprep.subr.mxu0 0.0
    %1269 = vmatpush1.msra.mxu0 0.0
    %1270 = vmatprep.subr.mxu0 0.0
    %1271 = vmatpush1.msra.mxu0 0.0
    %1272 = vmatprep.subr.mxu0 0.0
    %1273 = vmatpush1.msra.mxu0 0.0
    %1274 = vmatprep.subr.mxu0 0.0
    %1275 = vmatpush1.msra.mxu0 0.0
    %1276 = vmatprep.subr.mxu0 0.0
    %1277 = vmatpush1.msra.mxu0 0.0
    %1278 = vmatprep.mubr.f32.mxu0 0.0
    %1279 = vmatmul.mubr.f32.gmra.mrb[0].mxu0 %v1212
    %v1280 = vpop.f32.mrb[0].mxu0
    %v1281 = vadd.f32 0.0, %v1280
    %v1282 = vpop.f32.mrb[0].mxu0
    %1283 = vdwg.mxu0
    %v1284 = vadd.f32 %v1210, %v1281
    %1285 = vrot.lane.b32.xlu0 %v1199, 64
    %v1286 = vpop.permute.xlu0 %1285
    %v1287 = vsel %vm370, %v1286, 0
    %1289 = vmatprep.subr.mxu0 0.0
    %1290 = vmatpush1.msra.mxu0 %v183
    %1291 = vmatprep.subr.mxu0 0.0
    %1292 = vmatpush1.msra.mxu0 %v185
    %1293 = vmatprep.subr.mxu0 0.0
    %1294 = vmatpush1.msra.mxu0 %v187
    %1295 = vmatprep.subr.mxu0 0.0
    %1296 = vmatpush1.msra.mxu0 %v189
    %1297 = vmatprep.subr.mxu0 0.0
    %1298 = vmatpush1.msra.mxu0 0.0
    %1299 = vmatprep.subr.mxu0 0.0
    %1300 = vmatpush1.msra.mxu0 0.0
    %1301 = vmatprep.subr.mxu0 0.0
    %1302 = vmatpush1.msra.mxu0 0.0
    %1303 = vmatprep.subr.mxu0 0.0
    %1304 = vmatpush1.msra.mxu0 0.0
    %1305 = vmatprep.subr.mxu0 0.0
    %1306 = vmatpush1.msra.mxu0 0.0
    %1307 = vmatprep.subr.mxu0 0.0
    %1308 = vmatpush1.msra.mxu0 0.0
    %1309 = vmatprep.subr.mxu0 0.0
    %1310 = vmatpush1.msra.mxu0 0.0
    %1311 = vmatprep.subr.mxu0 0.0
    %1312 = vmatpush1.msra.mxu0 0.0
    %1313 = vmatprep.subr.mxu0 0.0
    %1314 = vmatpush1.msra.mxu0 0.0
    %1315 = vmatprep.subr.mxu0 0.0
    %1316 = vmatpush1.msra.mxu0 0.0
    %1317 = vmatprep.subr.mxu0 0.0
    %1318 = vmatpush1.msra.mxu0 0.0
    %1319 = vmatprep.subr.mxu0 0.0
    %1320 = vmatpush1.msra.mxu0 0.0
    %1321 = vmatprep.subr.mxu0 0.0
    %1322 = vmatpush1.msra.mxu0 0.0
    %1323 = vmatprep.subr.mxu0 0.0
    %1324 = vmatpush1.msra.mxu0 0.0
    %1325 = vmatprep.subr.mxu0 0.0
    %1326 = vmatpush1.msra.mxu0 0.0
    %1327 = vmatprep.subr.mxu0 0.0
    %1328 = vmatpush1.msra.mxu0 0.0
    %1329 = vmatprep.subr.mxu0 0.0
    %1330 = vmatpush1.msra.mxu0 0.0
    %1331 = vmatprep.subr.mxu0 0.0
    %1332 = vmatpush1.msra.mxu0 0.0
    %1333 = vmatprep.subr.mxu0 0.0
    %1334 = vmatpush1.msra.mxu0 0.0
    %1335 = vmatprep.subr.mxu0 0.0
    %1336 = vmatpush1.msra.mxu0 0.0
    %1337 = vmatprep.subr.mxu0 0.0
    %1338 = vmatpush1.msra.mxu0 0.0
    %1339 = vmatprep.subr.mxu0 0.0
    %1340 = vmatpush1.msra.mxu0 0.0
    %1341 = vmatprep.subr.mxu0 0.0
    %1342 = vmatpush1.msra.mxu0 0.0
    %1343 = vmatprep.subr.mxu0 0.0
    %1344 = vmatpush1.msra.mxu0 0.0
    %1345 = vmatprep.subr.mxu0 0.0
    %1346 = vmatpush1.msra.mxu0 0.0
    %1347 = vmatprep.subr.mxu0 0.0
    %1348 = vmatpush1.msra.mxu0 0.0
    %1349 = vmatprep.subr.mxu0 0.0
    %1350 = vmatpush1.msra.mxu0 0.0
    %1351 = vmatprep.subr.mxu0 0.0
    %1352 = vmatpush1.msra.mxu0 0.0
    %1353 = vmatprep.mubr.f32.mxu0 0.0
    %1354 = vmatmul.mubr.f32.gmra.mrb[0].mxu0 %v1287
    %v1355 = vpop.f32.mrb[0].mxu0
    %v1356 = vadd.f32 0.0, %v1355
    %v1357 = vpop.f32.mrb[0].mxu0
    %1358 = vdwg.mxu0
    %v1359 = vadd.f32 %v1211, %v1356
    %v1360 = vxor.u32 %v1284, 2147483648
    %v1361 = vxor.u32 %v1359, 2147483648
    %v1362 = vmul.f32 %v1360, 1.442695
    %v1363 = vpow.pop %v1362
    %v1364 = vmul.f32 %v1361, 1.442695
    %v1365 = vpow.pop %v1364
    %v1366 = vadd.f32 %v1363, 1.0
    %v1367 = vadd.f32 %v1365, 1.0
    %v1368 = vrcp.pop %v1366
    %v1369 = vmul.f32 1.0, %v1368
    %v1370 = vrcp.pop %v1367
    %v1371 = vmul.f32 1.0, %v1370
    %v1372 = vtanh.pop %v1284
    %v1373 = vtanh.pop %v1359
    %v1374 = vmul.f32 %v1369, %v1186
    %v1375 = vmul.f32 %v1371, %v1187
    %1378 = vrot.lane.b32.xlu0 %v1372, 32
    %v1379 = vpop.permute.xlu0 %1378
    %1380 = vrot.lane.b32.xlu0 %v1373, 32
    %v1381 = vpop.permute.xlu0 %1380
    %v1384 = vmul.f32 %v1369, %v1379
    %v1385 = vmul.f32 %v1371, %v1381
    %1388 = vrot.lane.b32.xlu0 %v1384, 32
    %v1389 = vpop.permute.xlu0 %1388
    %1390 = vrot.lane.b32.xlu0 %v1385, 32
    %v1391 = vpop.permute.xlu0 %1390
    %v1394 = vadd.f32 %v1374, %v1389
    %v1395 = vadd.f32 %v1375, %v1391
    %v1396 = vtanh.pop %v1394
    %v1397 = vtanh.pop %v1395
    %1400 = vrot.lane.b32.xlu0 %v1396, 32
    %v1401 = vpop.permute.xlu0 %1400
    %1402 = vrot.lane.b32.xlu0 %v1397, 32
    %v1403 = vpop.permute.xlu0 %1402
    %v1406 = vmul.f32 %v1369, %v1401
    %v1407 = vmul.f32 %v1371, %v1403
    %1409 = vrot.lane.b32.xlu0 %v1406, 64
    %v1410 = vpop.permute.xlu0 %1409
    %1412 = vst.msk [vmem:[#allocation3 + $0x20] sm:$0xff] %vm370, %v1410
    %1414 = vrot.lane.b32.xlu0 %v1407, 96
    %v1415 = vpop.permute.xlu0 %1414
    %1417 = vst.msk [vmem:[#allocation3 + $0x18] sm:$0xff] %vm584, %v1415
    %v1418 = vld [vmem:[#allocation2 + $0x50] sm:$0xff]
    %v1419 = vld [vmem:[#allocation2 + $0x28] sm:$0xff]
    %v1420 = vsel %vm370, %v1410, 0
    %1422 = vmatprep.subr.mxu0 0.0
    %1423 = vmatpush1.msra.mxu0 %v182
    %1424 = vmatprep.subr.mxu0 0.0
    %1425 = vmatpush1.msra.mxu0 %v184
    %1426 = vmatprep.subr.mxu0 0.0
    %1427 = vmatpush1.msra.mxu0 %v186
    %1428 = vmatprep.subr.mxu0 0.0
    %1429 = vmatpush1.msra.mxu0 %v188
    %1430 = vmatprep.subr.mxu0 0.0
    %1431 = vmatpush1.msra.mxu0 0.0
    %1432 = vmatprep.subr.mxu0 0.0
    %1433 = vmatpush1.msra.mxu0 0.0
    %1434 = vmatprep.subr.mxu0 0.0
    %1435 = vmatpush1.msra.mxu0 0.0
    %1436 = vmatprep.subr.mxu0 0.0
    %1437 = vmatpush1.msra.mxu0 0.0
    %1438 = vmatprep.subr.mxu0 0.0
    %1439 = vmatpush1.msra.mxu0 0.0
    %1440 = vmatprep.subr.mxu0 0.0
    %1441 = vmatpush1.msra.mxu0 0.0
    %1442 = vmatprep.subr.mxu0 0.0
    %1443 = vmatpush1.msra.mxu0 0.0
    %1444 = vmatprep.subr.mxu0 0.0
    %1445 = vmatpush1.msra.mxu0 0.0
    %1446 = vmatprep.subr.mxu0 0.0
    %1447 = vmatpush1.msra.mxu0 0.0
    %1448 = vmatprep.subr.mxu0 0.0
    %1449 = vmatpush1.msra.mxu0 0.0
    %1450 = vmatprep.subr.mxu0 0.0
    %1451 = vmatpush1.msra.mxu0 0.0
    %1452 = vmatprep.subr.mxu0 0.0
    %1453 = vmatpush1.msra.mxu0 0.0
    %1454 = vmatprep.subr.mxu0 0.0
    %1455 = vmatpush1.msra.mxu0 0.0
    %1456 = vmatprep.subr.mxu0 0.0
    %1457 = vmatpush1.msra.mxu0 0.0
    %1458 = vmatprep.subr.mxu0 0.0
    %1459 = vmatpush1.msra.mxu0 0.0
    %1460 = vmatprep.subr.mxu0 0.0
    %1461 = vmatpush1.msra.mxu0 0.0
    %1462 = vmatprep.subr.mxu0 0.0
    %1463 = vmatpush1.msra.mxu0 0.0
    %1464 = vmatprep.subr.mxu0 0.0
    %1465 = vmatpush1.msra.mxu0 0.0
    %1466 = vmatprep.subr.mxu0 0.0
    %1467 = vmatpush1.msra.mxu0 0.0
    %1468 = vmatprep.subr.mxu0 0.0
    %1469 = vmatpush1.msra.mxu0 0.0
    %1470 = vmatprep.subr.mxu0 0.0
    %1471 = vmatpush1.msra.mxu0 0.0
    %1472 = vmatprep.subr.mxu0 0.0
    %1473 = vmatpush1.msra.mxu0 0.0
    %1474 = vmatprep.subr.mxu0 0.0
    %1475 = vmatpush1.msra.mxu0 0.0
    %1476 = vmatprep.subr.mxu0 0.0
    %1477 = vmatpush1.msra.mxu0 0.0
    %1478 = vmatprep.subr.mxu0 0.0
    %1479 = vmatpush1.msra.mxu0 0.0
    %1480 = vmatprep.subr.mxu0 0.0
    %1481 = vmatpush1.msra.mxu0 0.0
    %1482 = vmatprep.subr.mxu0 0.0
    %1483 = vmatpush1.msra.mxu0 0.0
    %1484 = vmatprep.subr.mxu0 0.0
    %1485 = vmatpush1.msra.mxu0 0.0
    %1486 = vmatprep.mubr.f32.mxu0 0.0
    %1487 = vmatmul.mubr.f32.gmra.mrb[0].mxu0 %v1420
    %v1488 = vpop.f32.mrb[0].mxu0
    %v1489 = vadd.f32 0.0, %v1488
    %v1490 = vpop.f32.mrb[0].mxu0
    %1491 = vdwg.mxu0
    %v1492 = vadd.f32 %v1418, %v1489
    %1493 = vrot.lane.b32.xlu0 %v1407, 64
    %v1494 = vpop.permute.xlu0 %1493
    %v1495 = vsel %vm370, %v1494, 0
    %1497 = vmatprep.subr.mxu0 0.0
    %1498 = vmatpush1.msra.mxu0 %v183
    %1499 = vmatprep.subr.mxu0 0.0
    %1500 = vmatpush1.msra.mxu0 %v185
    %1501 = vmatprep.subr.mxu0 0.0
    %1502 = vmatpush1.msra.mxu0 %v187
    %1503 = vmatprep.subr.mxu0 0.0
    %1504 = vmatpush1.msra.mxu0 %v189
    %1505 = vmatprep.subr.mxu0 0.0
    %1506 = vmatpush1.msra.mxu0 0.0
    %1507 = vmatprep.subr.mxu0 0.0
    %1508 = vmatpush1.msra.mxu0 0.0
    %1509 = vmatprep.subr.mxu0 0.0
    %1510 = vmatpush1.msra.mxu0 0.0
    %1511 = vmatprep.subr.mxu0 0.0
    %1512 = vmatpush1.msra.mxu0 0.0
    %1513 = vmatprep.subr.mxu0 0.0
    %1514 = vmatpush1.msra.mxu0 0.0
    %1515 = vmatprep.subr.mxu0 0.0
    %1516 = vmatpush1.msra.mxu0 0.0
    %1517 = vmatprep.subr.mxu0 0.0
    %1518 = vmatpush1.msra.mxu0 0.0
    %1519 = vmatprep.subr.mxu0 0.0
    %1520 = vmatpush1.msra.mxu0 0.0
    %1521 = vmatprep.subr.mxu0 0.0
    %1522 = vmatpush1.msra.mxu0 0.0
    %1523 = vmatprep.subr.mxu0 0.0
    %1524 = vmatpush1.msra.mxu0 0.0
    %1525 = vmatprep.subr.mxu0 0.0
    %1526 = vmatpush1.msra.mxu0 0.0
    %1527 = vmatprep.subr.mxu0 0.0
    %1528 = vmatpush1.msra.mxu0 0.0
    %1529 = vmatprep.subr.mxu0 0.0
    %1530 = vmatpush1.msra.mxu0 0.0
    %1531 = vmatprep.subr.mxu0 0.0
    %1532 = vmatpush1.msra.mxu0 0.0
    %1533 = vmatprep.subr.mxu0 0.0
    %1534 = vmatpush1.msra.mxu0 0.0
    %1535 = vmatprep.subr.mxu0 0.0
    %1536 = vmatpush1.msra.mxu0 0.0
    %1537 = vmatprep.subr.mxu0 0.0
    %1538 = vmatpush1.msra.mxu0 0.0
    %1539 = vmatprep.subr.mxu0 0.0
    %1540 = vmatpush1.msra.mxu0 0.0
    %1541 = vmatprep.subr.mxu0 0.0
    %1542 = vmatpush1.msra.mxu0 0.0
    %1543 = vmatprep.subr.mxu0 0.0
    %1544 = vmatpush1.msra.mxu0 0.0
    %1545 = vmatprep.subr.mxu0 0.0
    %1546 = vmatpush1.msra.mxu0 0.0
    %1547 = vmatprep.subr.mxu0 0.0
    %1548 = vmatpush1.msra.mxu0 0.0
    %1549 = vmatprep.subr.mxu0 0.0
    %1550 = vmatpush1.msra.mxu0 0.0
    %1551 = vmatprep.subr.mxu0 0.0
    %1552 = vmatpush1.msra.mxu0 0.0
    %1553 = vmatprep.subr.mxu0 0.0
    %1554 = vmatpush1.msra.mxu0 0.0
    %1555 = vmatprep.subr.mxu0 0.0
    %1556 = vmatpush1.msra.mxu0 0.0
    %1557 = vmatprep.subr.mxu0 0.0
    %1558 = vmatpush1.msra.mxu0 0.0
    %1559 = vmatprep.subr.mxu0 0.0
    %1560 = vmatpush1.msra.mxu0 0.0
    %1561 = vmatprep.mubr.f32.mxu0 0.0
    %1562 = vmatmul.mubr.f32.gmra.mrb[0].mxu0 %v1495
    %v1563 = vpop.f32.mrb[0].mxu0
    %v1564 = vadd.f32 0.0, %v1563
    %v1565 = vpop.f32.mrb[0].mxu0
    %1566 = vdwg.mxu0
    %v1567 = vadd.f32 %v1419, %v1564
    %v1568 = vxor.u32 %v1492, 2147483648
    %v1569 = vxor.u32 %v1567, 2147483648
    %v1570 = vmul.f32 %v1568, 1.442695
    %v1571 = vpow.pop %v1570
    %v1572 = vmul.f32 %v1569, 1.442695
    %v1573 = vpow.pop %v1572
    %v1574 = vadd.f32 %v1571, 1.0
    %v1575 = vadd.f32 %v1573, 1.0
    %v1576 = vrcp.pop %v1574
    %v1577 = vmul.f32 1.0, %v1576
    %v1578 = vrcp.pop %v1575
    %v1579 = vmul.f32 1.0, %v1578
    %v1580 = vtanh.pop %v1492
    %v1581 = vtanh.pop %v1567
    %v1582 = vmul.f32 %v1577, %v1394
    %v1583 = vmul.f32 %v1579, %v1395
    %1586 = vrot.lane.b32.xlu0 %v1580, 32
    %v1587 = vpop.permute.xlu0 %1586
    %1588 = vrot.lane.b32.xlu0 %v1581, 32
    %v1589 = vpop.permute.xlu0 %1588
    %v1592 = vmul.f32 %v1577, %v1587
    %v1593 = vmul.f32 %v1579, %v1589
    %1596 = vrot.lane.b32.xlu0 %v1592, 32
    %v1597 = vpop.permute.xlu0 %1596
    %1598 = vrot.lane.b32.xlu0 %v1593, 32
    %v1599 = vpop.permute.xlu0 %1598
    %v1602 = vadd.f32 %v1582, %v1597
    %v1603 = vadd.f32 %v1583, %v1599
    %v1604 = vtanh.pop %v1602
    %v1605 = vtanh.pop %v1603
    %1608 = vrot.lane.b32.xlu0 %v1604, 32
    %v1609 = vpop.permute.xlu0 %1608
    %1610 = vrot.lane.b32.xlu0 %v1605, 32
    %v1611 = vpop.permute.xlu0 %1610
    %v1614 = vmul.f32 %v1577, %v1609
    %v1615 = vmul.f32 %v1579, %v1611
    %1617 = vrot.lane.b32.xlu0 %v1614, 64
    %v1618 = vpop.permute.xlu0 %1617
    %1620 = vst.msk [vmem:[#allocation3 + $0x28] sm:$0xff] %vm370, %v1618
    %1622 = vrot.lane.b32.xlu0 %v1615, 96
    %v1623 = vpop.permute.xlu0 %1622
    %1625 = vst.msk [vmem:[#allocation3 + $0x10] sm:$0xff] %vm584, %v1623
    %v1626 = vld [vmem:[#allocation2 + $0x60] sm:$0xff]
    %v1627 = vld [vmem:[#allocation2 + $0x18] sm:$0xff]
    %v1628 = vsel %vm370, %v1618, 0
    %1630 = vmatprep.subr.mxu0 0.0
    %1631 = vmatpush1.msra.mxu0 %v182
    %1632 = vmatprep.subr.mxu0 0.0
    %1633 = vmatpush1.msra.mxu0 %v184
    %1634 = vmatprep.subr.mxu0 0.0
    %1635 = vmatpush1.msra.mxu0 %v186
    %1636 = vmatprep.subr.mxu0 0.0
    %1637 = vmatpush1.msra.mxu0 %v188
    %1638 = vmatprep.subr.mxu0 0.0
    %1639 = vmatpush1.msra.mxu0 0.0
    %1640 = vmatprep.subr.mxu0 0.0
    %1641 = vmatpush1.msra.mxu0 0.0
    %1642 = vmatprep.subr.mxu0 0.0
    %1643 = vmatpush1.msra.mxu0 0.0
    %1644 = vmatprep.subr.mxu0 0.0
    %1645 = vmatpush1.msra.mxu0 0.0
    %1646 = vmatprep.subr.mxu0 0.0
    %1647 = vmatpush1.msra.mxu0 0.0
    %1648 = vmatprep.subr.mxu0 0.0
    %1649 = vmatpush1.msra.mxu0 0.0
    %1650 = vmatprep.subr.mxu0 0.0
    %1651 = vmatpush1.msra.mxu0 0.0
    %1652 = vmatprep.subr.mxu0 0.0
    %1653 = vmatpush1.msra.mxu0 0.0
    %1654 = vmatprep.subr.mxu0 0.0
    %1655 = vmatpush1.msra.mxu0 0.0
    %1656 = vmatprep.subr.mxu0 0.0
    %1657 = vmatpush1.msra.mxu0 0.0
    %1658 = vmatprep.subr.mxu0 0.0
    %1659 = vmatpush1.msra.mxu0 0.0
    %1660 = vmatprep.subr.mxu0 0.0
    %1661 = vmatpush1.msra.mxu0 0.0
    %1662 = vmatprep.subr.mxu0 0.0
    %1663 = vmatpush1.msra.mxu0 0.0
    %1664 = vmatprep.subr.mxu0 0.0
    %1665 = vmatpush1.msra.mxu0 0.0
    %1666 = vmatprep.subr.mxu0 0.0
    %1667 = vmatpush1.msra.mxu0 0.0
    %1668 = vmatprep.subr.mxu0 0.0
    %1669 = vmatpush1.msra.mxu0 0.0
    %1670 = vmatprep.subr.mxu0 0.0
    %1671 = vmatpush1.msra.mxu0 0.0
    %1672 = vmatprep.subr.mxu0 0.0
    %1673 = vmatpush1.msra.mxu0 0.0
    %1674 = vmatprep.subr.mxu0 0.0
    %1675 = vmatpush1.msra.mxu0 0.0
    %1676 = vmatprep.subr.mxu0 0.0
    %1677 = vmatpush1.msra.mxu0 0.0
    %1678 = vmatprep.subr.mxu0 0.0
    %1679 = vmatpush1.msra.mxu0 0.0
    %1680 = vmatprep.subr.mxu0 0.0
    %1681 = vmatpush1.msra.mxu0 0.0
    %1682 = vmatprep.subr.mxu0 0.0
    %1683 = vmatpush1.msra.mxu0 0.0
    %1684 = vmatprep.subr.mxu0 0.0
    %1685 = vmatpush1.msra.mxu0 0.0
    %1686 = vmatprep.subr.mxu0 0.0
    %1687 = vmatpush1.msra.mxu0 0.0
    %1688 = vmatprep.subr.mxu0 0.0
    %1689 = vmatpush1.msra.mxu0 0.0
    %1690 = vmatprep.subr.mxu0 0.0
    %1691 = vmatpush1.msra.mxu0 0.0
    %1692 = vmatprep.subr.mxu0 0.0
    %1693 = vmatpush1.msra.mxu0 0.0
    %1694 = vmatprep.mubr.f32.mxu0 0.0
    %1695 = vmatmul.mubr.f32.gmra.mrb[0].mxu0 %v1628
    %v1696 = vpop.f32.mrb[0].mxu0
    %v1697 = vadd.f32 0.0, %v1696
    %v1698 = vpop.f32.mrb[0].mxu0
    %1699 = vdwg.mxu0
    %v1700 = vadd.f32 %v1626, %v1697
    %1701 = vrot.lane.b32.xlu0 %v1615, 64
    %v1702 = vpop.permute.xlu0 %1701
    %v1703 = vsel %vm370, %v1702, 0
    %1705 = vmatprep.subr.mxu0 0.0
    %1706 = vmatpush1.msra.mxu0 %v183
    %1707 = vmatprep.subr.mxu0 0.0
    %1708 = vmatpush1.msra.mxu0 %v185
    %1709 = vmatprep.subr.mxu0 0.0
    %1710 = vmatpush1.msra.mxu0 %v187
    %1711 = vmatprep.subr.mxu0 0.0
    %1712 = vmatpush1.msra.mxu0 %v189
    %1713 = vmatprep.subr.mxu0 0.0
    %1714 = vmatpush1.msra.mxu0 0.0
    %1715 = vmatprep.subr.mxu0 0.0
    %1716 = vmatpush1.msra.mxu0 0.0
    %1717 = vmatprep.subr.mxu0 0.0
    %1718 = vmatpush1.msra.mxu0 0.0
    %1719 = vmatprep.subr.mxu0 0.0
    %1720 = vmatpush1.msra.mxu0 0.0
    %1721 = vmatprep.subr.mxu0 0.0
    %1722 = vmatpush1.msra.mxu0 0.0
    %1723 = vmatprep.subr.mxu0 0.0
    %1724 = vmatpush1.msra.mxu0 0.0
    %1725 = vmatprep.subr.mxu0 0.0
    %1726 = vmatpush1.msra.mxu0 0.0
    %1727 = vmatprep.subr.mxu0 0.0
    %1728 = vmatpush1.msra.mxu0 0.0
    %1729 = vmatprep.subr.mxu0 0.0
    %1730 = vmatpush1.msra.mxu0 0.0
    %1731 = vmatprep.subr.mxu0 0.0
    %1732 = vmatpush1.msra.mxu0 0.0
    %1733 = vmatprep.subr.mxu0 0.0
    %1734 = vmatpush1.msra.mxu0 0.0
    %1735 = vmatprep.subr.mxu0 0.0
    %1736 = vmatpush1.msra.mxu0 0.0
    %1737 = vmatprep.subr.mxu0 0.0
    %1738 = vmatpush1.msra.mxu0 0.0
    %1739 = vmatprep.subr.mxu0 0.0
    %1740 = vmatpush1.msra.mxu0 0.0
    %1741 = vmatprep.subr.mxu0 0.0
    %1742 = vmatpush1.msra.mxu0 0.0
    %1743 = vmatprep.subr.mxu0 0.0
    %1744 = vmatpush1.msra.mxu0 0.0
    %1745 = vmatprep.subr.mxu0 0.0
    %1746 = vmatpush1.msra.mxu0 0.0
    %1747 = vmatprep.subr.mxu0 0.0
    %1748 = vmatpush1.msra.mxu0 0.0
    %1749 = vmatprep.subr.mxu0 0.0
    %1750 = vmatpush1.msra.mxu0 0.0
    %1751 = vmatprep.subr.mxu0 0.0
    %1752 = vmatpush1.msra.mxu0 0.0
    %1753 = vmatprep.subr.mxu0 0.0
    %1754 = vmatpush1.msra.mxu0 0.0
    %1755 = vmatprep.subr.mxu0 0.0
    %1756 = vmatpush1.msra.mxu0 0.0
    %1757 = vmatprep.subr.mxu0 0.0
    %1758 = vmatpush1.msra.mxu0 0.0
    %1759 = vmatprep.subr.mxu0 0.0
    %1760 = vmatpush1.msra.mxu0 0.0
    %1761 = vmatprep.subr.mxu0 0.0
    %1762 = vmatpush1.msra.mxu0 0.0
    %1763 = vmatprep.subr.mxu0 0.0
    %1764 = vmatpush1.msra.mxu0 0.0
    %1765 = vmatprep.subr.mxu0 0.0
    %1766 = vmatpush1.msra.mxu0 0.0
    %1767 = vmatprep.subr.mxu0 0.0
    %1768 = vmatpush1.msra.mxu0 0.0
    %1769 = vmatprep.mubr.f32.mxu0 0.0
    %1770 = vmatmul.mubr.f32.gmra.mrb[0].mxu0 %v1703
    %v1771 = vpop.f32.mrb[0].mxu0
    %v1772 = vadd.f32 0.0, %v1771
    %v1773 = vpop.f32.mrb[0].mxu0
    %1774 = vdwg.mxu0
    %v1775 = vadd.f32 %v1627, %v1772
    %v1776 = vxor.u32 %v1700, 2147483648
    %v1777 = vxor.u32 %v1775, 2147483648
    %v1778 = vmul.f32 %v1776, 1.442695
    %v1779 = vpow.pop %v1778
    %v1780 = vmul.f32 %v1777, 1.442695
    %v1781 = vpow.pop %v1780
    %v1782 = vadd.f32 %v1779, 1.0
    %v1783 = vadd.f32 %v1781, 1.0
    %v1784 = vrcp.pop %v1782
    %v1785 = vmul.f32 1.0, %v1784
    %v1786 = vrcp.pop %v1783
    %v1787 = vmul.f32 1.0, %v1786
    %v1788 = vtanh.pop %v1700
    %v1789 = vtanh.pop %v1775
    %v1790 = vmul.f32 %v1785, %v1602
    %v1791 = vmul.f32 %v1787, %v1603
    %1794 = vrot.lane.b32.xlu0 %v1788, 32
    %v1795 = vpop.permute.xlu0 %1794
    %1796 = vrot.lane.b32.xlu0 %v1789, 32
    %v1797 = vpop.permute.xlu0 %1796
    %v1800 = vmul.f32 %v1785, %v1795
    %v1801 = vmul.f32 %v1787, %v1797
    %1804 = vrot.lane.b32.xlu0 %v1800, 32
    %v1805 = vpop.permute.xlu0 %1804
    %1806 = vrot.lane.b32.xlu0 %v1801, 32
    %v1807 = vpop.permute.xlu0 %1806
    %v1810 = vadd.f32 %v1790, %v1805
    %v1811 = vadd.f32 %v1791, %v1807
    %v1812 = vtanh.pop %v1810
    %v1813 = vtanh.pop %v1811
    %1816 = vrot.lane.b32.xlu0 %v1812, 32
    %v1817 = vpop.permute.xlu0 %1816
    %1818 = vrot.lane.b32.xlu0 %v1813, 32
    %v1819 = vpop.permute.xlu0 %1818
    %v1822 = vmul.f32 %v1785, %v1817
    %v1823 = vmul.f32 %v1787, %v1819
    %1825 = vrot.lane.b32.xlu0 %v1822, 64
    %v1826 = vpop.permute.xlu0 %1825
    %1828 = vst.msk [vmem:[#allocation3 + $0x30] sm:$0xff] %vm370, %v1826
    %1830 = vrot.lane.b32.xlu0 %v1823, 96
    %v1831 = vpop.permute.xlu0 %1830
    %1833 = vst.msk [vmem:[#allocation3 + $0x8] sm:$0xff] %vm584, %v1831
    %v1834 = vld [vmem:[#allocation2 + $0x70] sm:$0xff]
    %v1835 = vld [vmem:[#allocation2 + $0x8] sm:$0xff]
    %v1836 = vsel %vm370, %v1826, 0
    %1838 = vmatprep.subr.mxu0 0.0
    %1839 = vmatpush1.msra.mxu0 %v182
    %1840 = vmatprep.subr.mxu0 0.0
    %1841 = vmatpush1.msra.mxu0 %v184
    %1842 = vmatprep.subr.mxu0 0.0
    %1843 = vmatpush1.msra.mxu0 %v186
    %1844 = vmatprep.subr.mxu0 0.0
    %1845 = vmatpush1.msra.mxu0 %v188
    %1846 = vmatprep.subr.mxu0 0.0
    %1847 = vmatpush1.msra.mxu0 0.0
    %1848 = vmatprep.subr.mxu0 0.0
    %1849 = vmatpush1.msra.mxu0 0.0
    %1850 = vmatprep.subr.mxu0 0.0
    %1851 = vmatpush1.msra.mxu0 0.0
    %1852 = vmatprep.subr.mxu0 0.0
    %1853 = vmatpush1.msra.mxu0 0.0
    %1854 = vmatprep.subr.mxu0 0.0
    %1855 = vmatpush1.msra.mxu0 0.0
    %1856 = vmatprep.subr.mxu0 0.0
    %1857 = vmatpush1.msra.mxu0 0.0
    %1858 = vmatprep.subr.mxu0 0.0
    %1859 = vmatpush1.msra.mxu0 0.0
    %1860 = vmatprep.subr.mxu0 0.0
    %1861 = vmatpush1.msra.mxu0 0.0
    %1862 = vmatprep.subr.mxu0 0.0
    %1863 = vmatpush1.msra.mxu0 0.0
    %1864 = vmatprep.subr.mxu0 0.0
    %1865 = vmatpush1.msra.mxu0 0.0
    %1866 = vmatprep.subr.mxu0 0.0
    %1867 = vmatpush1.msra.mxu0 0.0
    %1868 = vmatprep.subr.mxu0 0.0
    %1869 = vmatpush1.msra.mxu0 0.0
    %1870 = vmatprep.subr.mxu0 0.0
    %1871 = vmatpush1.msra.mxu0 0.0
    %1872 = vmatprep.subr.mxu0 0.0
    %1873 = vmatpush1.msra.mxu0 0.0
    %1874 = vmatprep.subr.mxu0 0.0
    %1875 = vmatpush1.msra.mxu0 0.0
    %1876 = vmatprep.subr.mxu0 0.0
    %1877 = vmatpush1.msra.mxu0 0.0
    %1878 = vmatprep.subr.mxu0 0.0
    %1879 = vmatpush1.msra.mxu0 0.0
    %1880 = vmatprep.subr.mxu0 0.0
    %1881 = vmatpush1.msra.mxu0 0.0
    %1882 = vmatprep.subr.mxu0 0.0
    %1883 = vmatpush1.msra.mxu0 0.0
    %1884 = vmatprep.subr.mxu0 0.0
    %1885 = vmatpush1.msra.mxu0 0.0
    %1886 = vmatprep.subr.mxu0 0.0
    %1887 = vmatpush1.msra.mxu0 0.0
    %1888 = vmatprep.subr.mxu0 0.0
    %1889 = vmatpush1.msra.mxu0 0.0
    %1890 = vmatprep.subr.mxu0 0.0
    %1891 = vmatpush1.msra.mxu0 0.0
    %1892 = vmatprep.subr.mxu0 0.0
    %1893 = vmatpush1.msra.mxu0 0.0
    %1894 = vmatprep.subr.mxu0 0.0
    %1895 = vmatpush1.msra.mxu0 0.0
    %1896 = vmatprep.subr.mxu0 0.0
    %1897 = vmatpush1.msra.mxu0 0.0
    %1898 = vmatprep.subr.mxu0 0.0
    %1899 = vmatpush1.msra.mxu0 0.0
    %1900 = vmatprep.subr.mxu0 0.0
    %1901 = vmatpush1.msra.mxu0 0.0
    %1902 = vmatprep.mubr.f32.mxu0 0.0
    %1903 = vmatmul.mubr.f32.gmra.mrb[0].mxu0 %v1836
    %v1904 = vpop.f32.mrb[0].mxu0
    %v1905 = vadd.f32 0.0, %v1904
    %v1906 = vpop.f32.mrb[0].mxu0
    %1907 = vdwg.mxu0
    %v1908 = vadd.f32 %v1834, %v1905
    %1909 = vrot.lane.b32.xlu0 %v1823, 64
    %v1910 = vpop.permute.xlu0 %1909
    %v1911 = vsel %vm370, %v1910, 0
    %1913 = vmatprep.subr.mxu0 0.0
    %1914 = vmatpush1.msra.mxu0 %v183
    %1915 = vmatprep.subr.mxu0 0.0
    %1916 = vmatpush1.msra.mxu0 %v185
    %1917 = vmatprep.subr.mxu0 0.0
    %1918 = vmatpush1.msra.mxu0 %v187
    %1919 = vmatprep.subr.mxu0 0.0
    %1920 = vmatpush1.msra.mxu0 %v189
    %1921 = vmatprep.subr.mxu0 0.0
    %1922 = vmatpush1.msra.mxu0 0.0
    %1923 = vmatprep.subr.mxu0 0.0
    %1924 = vmatpush1.msra.mxu0 0.0
    %1925 = vmatprep.subr.mxu0 0.0
    %1926 = vmatpush1.msra.mxu0 0.0
    %1927 = vmatprep.subr.mxu0 0.0
    %1928 = vmatpush1.msra.mxu0 0.0
    %1929 = vmatprep.subr.mxu0 0.0
    %1930 = vmatpush1.msra.mxu0 0.0
    %1931 = vmatprep.subr.mxu0 0.0
    %1932 = vmatpush1.msra.mxu0 0.0
    %1933 = vmatprep.subr.mxu0 0.0
    %1934 = vmatpush1.msra.mxu0 0.0
    %1935 = vmatprep.subr.mxu0 0.0
    %1936 = vmatpush1.msra.mxu0 0.0
    %1937 = vmatprep.subr.mxu0 0.0
    %1938 = vmatpush1.msra.mxu0 0.0
    %1939 = vmatprep.subr.mxu0 0.0
    %1940 = vmatpush1.msra.mxu0 0.0
    %1941 = vmatprep.subr.mxu0 0.0
    %1942 = vmatpush1.msra.mxu0 0.0
    %1943 = vmatprep.subr.mxu0 0.0
    %1944 = vmatpush1.msra.mxu0 0.0
    %1945 = vmatprep.subr.mxu0 0.0
    %1946 = vmatpush1.msra.mxu0 0.0
    %1947 = vmatprep.subr.mxu0 0.0
    %1948 = vmatpush1.msra.mxu0 0.0
    %1949 = vmatprep.subr.mxu0 0.0
    %1950 = vmatpush1.msra.mxu0 0.0
    %1951 = vmatprep.subr.mxu0 0.0
    %1952 = vmatpush1.msra.mxu0 0.0
    %1953 = vmatprep.subr.mxu0 0.0
    %1954 = vmatpush1.msra.mxu0 0.0
    %1955 = vmatprep.subr.mxu0 0.0
    %1956 = vmatpush1.msra.mxu0 0.0
    %1957 = vmatprep.subr.mxu0 0.0
    %1958 = vmatpush1.msra.mxu0 0.0
    %1959 = vmatprep.subr.mxu0 0.0
    %1960 = vmatpush1.msra.mxu0 0.0
    %1961 = vmatprep.subr.mxu0 0.0
    %1962 = vmatpush1.msra.mxu0 0.0
    %1963 = vmatprep.subr.mxu0 0.0
    %1964 = vmatpush1.msra.mxu0 0.0
    %1965 = vmatprep.subr.mxu0 0.0
    %1966 = vmatpush1.msra.mxu0 0.0
    %1967 = vmatprep.subr.mxu0 0.0
    %1968 = vmatpush1.msra.mxu0 0.0
    %1969 = vmatprep.subr.mxu0 0.0
    %1970 = vmatpush1.msra.mxu0 0.0
    %1971 = vmatprep.subr.mxu0 0.0
    %1972 = vmatpush1.msra.mxu0 0.0
    %1973 = vmatprep.subr.mxu0 0.0
    %1974 = vmatpush1.msra.mxu0 0.0
    %1975 = vmatprep.subr.mxu0 0.0
    %1976 = vmatpush1.msra.mxu0 0.0
    %1977 = vmatprep.mubr.f32.mxu0 0.0
    %1978 = vmatmul.mubr.f32.gmra.mrb[0].mxu0 %v1911
    %v1979 = vpop.f32.mrb[0].mxu0
    %v1980 = vadd.f32 0.0, %v1979
    %v1981 = vpop.f32.mrb[0].mxu0
    %1982 = vdwg.mxu0
    %v1983 = vadd.f32 %v1835, %v1980
    %v1984 = vxor.u32 %v1908, 2147483648
    %v1985 = vxor.u32 %v1983, 2147483648
    %v1986 = vmul.f32 %v1984, 1.442695
    %v1987 = vpow.pop %v1986
    %v1988 = vmul.f32 %v1985, 1.442695
    %v1989 = vpow.pop %v1988
    %v1990 = vadd.f32 %v1987, 1.0
    %v1991 = vadd.f32 %v1989, 1.0
    %v1992 = vrcp.pop %v1990
    %v1993 = vmul.f32 1.0, %v1992
    %v1994 = vrcp.pop %v1991
    %v1995 = vmul.f32 1.0, %v1994
    %v1996 = vtanh.pop %v1908
    %v1997 = vtanh.pop %v1983
    %v1998 = vmul.f32 %v1993, %v1810
    %v1999 = vmul.f32 %v1995, %v1811
    %2002 = vrot.lane.b32.xlu0 %v1996, 32
    %v2003 = vpop.permute.xlu0 %2002
    %2004 = vrot.lane.b32.xlu0 %v1997, 32
    %v2005 = vpop.permute.xlu0 %2004
    %v2008 = vmul.f32 %v1993, %v2003
    %v2009 = vmul.f32 %v1995, %v2005
    %2012 = vrot.lane.b32.xlu0 %v2008, 32
    %v2013 = vpop.permute.xlu0 %2012
    %2014 = vrot.lane.b32.xlu0 %v2009, 32
    %v2015 = vpop.permute.xlu0 %2014
    %v2018 = vadd.f32 %v1998, %v2013
    %v2019 = vadd.f32 %v1999, %v2015
    %v2020 = vtanh.pop %v2018
    %v2021 = vtanh.pop %v2019
    %2024 = vrot.lane.b32.xlu0 %v2020, 32
    %v2025 = vpop.permute.xlu0 %2024
    %2026 = vrot.lane.b32.xlu0 %v2021, 32
    %v2027 = vpop.permute.xlu0 %2026
    %v2030 = vmul.f32 %v1993, %v2025
    %v2031 = vmul.f32 %v1995, %v2027
    %2033 = vrot.lane.b32.xlu0 %v2030, 64
    %v2034 = vpop.permute.xlu0 %2033
    %2036 = vst.msk [vmem:[#allocation3 + $0x38] sm:$0xff] %vm370, %v2034
    %2038 = vrot.lane.b32.xlu0 %v2031, 96
    %v2039 = vpop.permute.xlu0 %2038
    %2041 = vst.msk [vmem:[#allocation3] sm:$0xff] %vm584, %v2039
    %v2042 = vld [vmem:[#allocation13] sm:$0xff]
    %v2043 = vld [vmem:[#allocation13 + $0x8] sm:$0xff]
    %v2044 = vld [vmem:[#allocation13 + $0x10] sm:$0xff]
    %v2045 = vld [vmem:[#allocation13 + $0x18] sm:$0xff]
    %v2046 = vld [vmem:[#allocation13 + $0x20] sm:$0xff]
    %v2047 = vld [vmem:[#allocation13 + $0x28] sm:$0xff]
    %v2048 = vld [vmem:[#allocation13 + $0x30] sm:$0xff]
    %v2049 = vld [vmem:[#allocation13 + $0x38] sm:$0xff]
    %v2050 = vld [vmem:[#allocation13 + $0x40] sm:$0xff]
    %v2051 = vld [vmem:[#allocation13 + $0x48] sm:$0xff]
    %v2052 = vld [vmem:[#allocation13 + $0x50] sm:$0xff]
    %v2053 = vld [vmem:[#allocation13 + $0x58] sm:$0xff]
    %v2054 = vld [vmem:[#allocation13 + $0x60] sm:$0xff]
    %v2055 = vld [vmem:[#allocation13 + $0x68] sm:$0xff]
    %v2056 = vld [vmem:[#allocation13 + $0x70] sm:$0xff]
    %v2057 = vld [vmem:[#allocation13 + $0x78] sm:$0xff]
    %v2058 = vld [vmem:[#allocation14] sm:$0xff]
    %v2059 = vld [vmem:[#allocation14 + $0x8] sm:$0xff]
    %v2060 = vld [vmem:[#allocation14 + $0x10] sm:$0xff]
    %v2061 = vld [vmem:[#allocation14 + $0x18] sm:$0xff]
    %v2062 = vld [vmem:[#allocation14 + $0x20] sm:$0xff]
    %v2063 = vld [vmem:[#allocation14 + $0x28] sm:$0xff]
    %v2064 = vld [vmem:[#allocation14 + $0x30] sm:$0xff]
    %v2065 = vld [vmem:[#allocation14 + $0x38] sm:$0xff]
    %v2066 = vld [vmem:[#allocation16] sm:$0x3]
    %v2067 = vld [vmem:[#allocation3] sm:$0xff]
    %v2068 = vld [vmem:[#allocation3 + $0x8] sm:$0xff]
    %v2069 = vld [vmem:[#allocation3 + $0x10] sm:$0xff]
    %v2070 = vld [vmem:[#allocation3 + $0x18] sm:$0xff]
    %v2071 = vld [vmem:[#allocation3 + $0x20] sm:$0xff]
    %v2072 = vld [vmem:[#allocation3 + $0x28] sm:$0xff]
    %v2073 = vld [vmem:[#allocation3 + $0x30] sm:$0xff]
    %v2074 = vld [vmem:[#allocation3 + $0x38] sm:$0xff]
    %v2076 = vlaneseq
    %v2077 = vshrl.u32 %v2076, 7
    %v2078 = vsub.s32 0, %v2077
    %v2079 = vrot.slane %v2066, %v2078
    %v2080 = vlaneseq
    %v2081 = vshrl.u32 %v2080, 7
    %v2082 = vsub.s32 1, %v2081
    %v2083 = vrot.slane %v2066, %v2082
    %vm2086 = vcmask 523264
    %v2088 = vsel %vm2086, %v2067, 0
    %v2091 = vsel %vm2086, %v2068, 0
    %v2094 = vsel %vm2086, %v2069, 0
    %v2097 = vsel %vm2086, %v2070, 0
    %v2100 = vsel %vm2086, %v2071, 0
    %v2103 = vsel %vm2086, %v2072, 0
    %v2106 = vsel %vm2086, %v2073, 0
    %v2109 = vsel %vm2086, %v2074, 0
    %2111 = vmatprep.subr.mxu0 %v2043
    %2112 = vmatpush1.msra.mxu0 %v2042
    %2113 = vmatprep.subr.mxu0 %v2045
    %2114 = vmatpush1.msra.mxu0 %v2044
    %2115 = vmatprep.subr.mxu0 %v2047
    %2116 = vmatpush1.msra.mxu0 %v2046
    %2117 = vmatprep.subr.mxu0 %v2049
    %2118 = vmatpush1.msra.mxu0 %v2048
    %2119 = vmatprep.subr.mxu0 %v2051
    %2120 = vmatpush1.msra.mxu0 %v2050
    %2121 = vmatprep.subr.mxu0 %v2053
    %2122 = vmatpush1.msra.mxu0 %v2052
    %2123 = vmatprep.subr.mxu0 %v2055
    %2124 = vmatpush1.msra.mxu0 %v2054
    %2125 = vmatprep.subr.mxu0 %v2057
    %2126 = vmatpush1.msra.mxu0 %v2056
    %2127 = vmatprep.subr.mxu0 0.0
    %2128 = vmatpush1.msra.mxu0 0.0
    %2129 = vmatprep.subr.mxu0 0.0
    %2130 = vmatpush1.msra.mxu0 0.0
    %2131 = vmatprep.subr.mxu0 0.0
    %2132 = vmatpush1.msra.mxu0 0.0
    %2133 = vmatprep.subr.mxu0 0.0
    %2134 = vmatpush1.msra.mxu0 0.0
    %2135 = vmatprep.subr.mxu0 0.0
    %2136 = vmatpush1.msra.mxu0 0.0
    %2137 = vmatprep.subr.mxu0 0.0
    %2138 = vmatpush1.msra.mxu0 0.0
    %2139 = vmatprep.subr.mxu0 0.0
    %2140 = vmatpush1.msra.mxu0 0.0
    %2141 = vmatprep.subr.mxu0 0.0
    %2142 = vmatpush1.msra.mxu0 0.0
    %2143 = vmatprep.subr.mxu0 0.0
    %2144 = vmatpush1.msra.mxu0 0.0
    %2145 = vmatprep.subr.mxu0 0.0
    %2146 = vmatpush1.msra.mxu0 0.0
    %2147 = vmatprep.subr.mxu0 0.0
    %2148 = vmatpush1.msra.mxu0 0.0
    %2149 = vmatprep.subr.mxu0 0.0
    %2150 = vmatpush1.msra.mxu0 0.0
    %2151 = vmatprep.subr.mxu0 0.0
    %2152 = vmatpush1.msra.mxu0 0.0
    %2153 = vmatprep.subr.mxu0 0.0
    %2154 = vmatpush1.msra.mxu0 0.0
    %2155 = vmatprep.subr.mxu0 0.0
    %2156 = vmatpush1.msra.mxu0 0.0
    %2157 = vmatprep.subr.mxu0 0.0
    %2158 = vmatpush1.msra.mxu0 0.0
    %2159 = vmatprep.subr.mxu0 0.0
    %2160 = vmatpush1.msra.mxu0 0.0
    %2161 = vmatprep.subr.mxu0 0.0
    %2162 = vmatpush1.msra.mxu0 0.0
    %2163 = vmatprep.subr.mxu0 0.0
    %2164 = vmatpush1.msra.mxu0 0.0
    %2165 = vmatprep.subr.mxu0 0.0
    %2166 = vmatpush1.msra.mxu0 0.0
    %2167 = vmatprep.subr.mxu0 0.0
    %2168 = vmatpush1.msra.mxu0 0.0
    %2169 = vmatprep.subr.mxu0 0.0
    %2170 = vmatpush1.msra.mxu0 0.0
    %2171 = vmatprep.subr.mxu0 0.0
    %2172 = vmatpush1.msra.mxu0 0.0
    %2173 = vmatprep.subr.mxu0 0.0
    %2174 = vmatpush1.msra.mxu0 0.0
    %2175 = vmatprep.mubr.f32.mxu0 0.0
    %2176 = vmatmul.mubr.f32.gmra.mrb[0].mxu0 %v2088
    %v2177 = vpop.f32.mrb[0].mxu0
    %v2178 = vadd.f32 %v2079, %v2177
    %v2179 = vpop.f32.mrb[0].mxu0
    %v2180 = vadd.f32 %v2083, %v2179
    %2181 = vmatprep.mubr.f32.mxu0 0.0
    %2182 = vmatmul.mubr.f32.gmra.mrb[0].mxu0 %v2091
    %v2183 = vpop.f32.mrb[0].mxu0
    %v2184 = vadd.f32 %v2079, %v2183
    %v2185 = vpop.f32.mrb[0].mxu0
    %v2186 = vadd.f32 %v2083, %v2185
    %2187 = vmatprep.mubr.f32.mxu0 0.0
    %2188 = vmatmul.mubr.f32.gmra.mrb[0].mxu0 %v2094
    %v2189 = vpop.f32.mrb[0].mxu0
    %v2190 = vadd.f32 %v2079, %v2189
    %v2191 = vpop.f32.mrb[0].mxu0
    %v2192 = vadd.f32 %v2083, %v2191
    %2193 = vmatprep.mubr.f32.mxu0 0.0
    %2194 = vmatmul.mubr.f32.gmra.mrb[0].mxu0 %v2097
    %v2195 = vpop.f32.mrb[0].mxu0
    %v2196 = vadd.f32 %v2079, %v2195
    %v2197 = vpop.f32.mrb[0].mxu0
    %v2198 = vadd.f32 %v2083, %v2197
    %2199 = vmatprep.mubr.f32.mxu0 0.0
    %2200 = vmatmul.mubr.f32.gmra.mrb[0].mxu0 %v2100
    %v2201 = vpop.f32.mrb[0].mxu0
    %v2202 = vadd.f32 %v2079, %v2201
    %v2203 = vpop.f32.mrb[0].mxu0
    %v2204 = vadd.f32 %v2083, %v2203
    %2205 = vmatprep.mubr.f32.mxu0 0.0
    %2206 = vmatmul.mubr.f32.gmra.mrb[0].mxu0 %v2103
    %v2207 = vpop.f32.mrb[0].mxu0
    %v2208 = vadd.f32 %v2079, %v2207
    %v2209 = vpop.f32.mrb[0].mxu0
    %v2210 = vadd.f32 %v2083, %v2209
    %2211 = vmatprep.mubr.f32.mxu0 0.0
    %2212 = vmatmul.mubr.f32.gmra.mrb[0].mxu0 %v2106
    %v2213 = vpop.f32.mrb[0].mxu0
    %v2214 = vadd.f32 %v2079, %v2213
    %v2215 = vpop.f32.mrb[0].mxu0
    %v2216 = vadd.f32 %v2083, %v2215
    %2217 = vmatprep.mubr.f32.mxu0 0.0
    %2218 = vmatmul.mubr.f32.gmra.mrb[0].mxu0 %v2109
    %v2219 = vpop.f32.mrb[0].mxu0
    %v2220 = vadd.f32 %v2079, %v2219
    %v2221 = vpop.f32.mrb[0].mxu0
    %v2222 = vadd.f32 %v2083, %v2221
    %2223 = vdwg.mxu0
    %2224 = vst [vmem:[#allocation2] sm:$0xff] %v2178
    %2225 = vst [vmem:[#allocation2 + $0x8] sm:$0xff] %v2180
    %2226 = vst [vmem:[#allocation2 + $0x10] sm:$0xff] %v2184
    %2227 = vst [vmem:[#allocation2 + $0x18] sm:$0xff] %v2186
    %2228 = vst [vmem:[#allocation2 + $0x20] sm:$0xff] %v2190
    %2229 = vst [vmem:[#allocation2 + $0x28] sm:$0xff] %v2192
    %2230 = vst [vmem:[#allocation2 + $0x30] sm:$0xff] %v2196
    %2231 = vst [vmem:[#allocation2 + $0x38] sm:$0xff] %v2198
    %2232 = vst [vmem:[#allocation2 + $0x40] sm:$0xff] %v2202
    %2233 = vst [vmem:[#allocation2 + $0x48] sm:$0xff] %v2204
    %2234 = vst [vmem:[#allocation2 + $0x50] sm:$0xff] %v2208
    %2235 = vst [vmem:[#allocation2 + $0x58] sm:$0xff] %v2210
    %2236 = vst [vmem:[#allocation2 + $0x60] sm:$0xff] %v2214
    %2237 = vst [vmem:[#allocation2 + $0x68] sm:$0xff] %v2216
    %2238 = vst [vmem:[#allocation2 + $0x70] sm:$0xff] %v2220
    %2239 = vst [vmem:[#allocation2 + $0x78] sm:$0xff] %v2222
    %v2240 = vld [vmem:[#allocation17 + $0x10] sm:$0xff]
    %v2241 = vld [vmem:[#allocation17 + $0x18] sm:$0xff]
    %v2242 = vld [vmem:[#allocation19 + $0x10] sm:$0xff]
    %v2243 = vld [vmem:[#allocation19 + $0x18] sm:$0xff]
    %v2244 = vld [vmem:[#allocation2] sm:$0xff]
    %v2245 = vld [vmem:[#allocation2 + $0x78] sm:$0xff]
    %v2247 = vsel %vm370, %v2240, 0
    %2249 = vmatprep.subr.mxu0 0.0
    %2250 = vmatpush1.msra.mxu0 %v2058
    %2251 = vmatprep.subr.mxu0 0.0
    %2252 = vmatpush1.msra.mxu0 %v2060
    %2253 = vmatprep.subr.mxu0 0.0
    %2254 = vmatpush1.msra.mxu0 %v2062
    %2255 = vmatprep.subr.mxu0 0.0
    %2256 = vmatpush1.msra.mxu0 %v2064
    %2257 = vmatprep.subr.mxu0 0.0
    %2258 = vmatpush1.msra.mxu0 0.0
    %2259 = vmatprep.subr.mxu0 0.0
    %2260 = vmatpush1.msra.mxu0 0.0
    %2261 = vmatprep.subr.mxu0 0.0
    %2262 = vmatpush1.msra.mxu0 0.0
    %2263 = vmatprep.subr.mxu0 0.0
    %2264 = vmatpush1.msra.mxu0 0.0
    %2265 = vmatprep.subr.mxu0 0.0
    %2266 = vmatpush1.msra.mxu0 0.0
    %2267 = vmatprep.subr.mxu0 0.0
    %2268 = vmatpush1.msra.mxu0 0.0
    %2269 = vmatprep.subr.mxu0 0.0
    %2270 = vmatpush1.msra.mxu0 0.0
    %2271 = vmatprep.subr.mxu0 0.0
    %2272 = vmatpush1.msra.mxu0 0.0
    %2273 = vmatprep.subr.mxu0 0.0
    %2274 = vmatpush1.msra.mxu0 0.0
    %2275 = vmatprep.subr.mxu0 0.0
    %2276 = vmatpush1.msra.mxu0 0.0
    %2277 = vmatprep.subr.mxu0 0.0
    %2278 = vmatpush1.msra.mxu0 0.0
    %2279 = vmatprep.subr.mxu0 0.0
    %2280 = vmatpush1.msra.mxu0 0.0
    %2281 = vmatprep.subr.mxu0 0.0
    %2282 = vmatpush1.msra.mxu0 0.0
    %2283 = vmatprep.subr.mxu0 0.0
    %2284 = vmatpush1.msra.mxu0 0.0
    %2285 = vmatprep.subr.mxu0 0.0
    %2286 = vmatpush1.msra.mxu0 0.0
    %2287 = vmatprep.subr.mxu0 0.0
    %2288 = vmatpush1.msra.mxu0 0.0
    %2289 = vmatprep.subr.mxu0 0.0
    %2290 = vmatpush1.msra.mxu0 0.0
    %2291 = vmatprep.subr.mxu0 0.0
    %2292 = vmatpush1.msra.mxu0 0.0
    %2293 = vmatprep.subr.mxu0 0.0
    %2294 = vmatpush1.msra.mxu0 0.0
    %2295 = vmatprep.subr.mxu0 0.0
    %2296 = vmatpush1.msra.mxu0 0.0
    %2297 = vmatprep.subr.mxu0 0.0
    %2298 = vmatpush1.msra.mxu0 0.0
    %2299 = vmatprep.subr.mxu0 0.0
    %2300 = vmatpush1.msra.mxu0 0.0
    %2301 = vmatprep.subr.mxu0 0.0
    %2302 = vmatpush1.msra.mxu0 0.0
    %2303 = vmatprep.subr.mxu0 0.0
    %2304 = vmatpush1.msra.mxu0 0.0
    %2305 = vmatprep.subr.mxu0 0.0
    %2306 = vmatpush1.msra.mxu0 0.0
    %2307 = vmatprep.subr.mxu0 0.0
    %2308 = vmatpush1.msra.mxu0 0.0
    %2309 = vmatprep.subr.mxu0 0.0
    %2310 = vmatpush1.msra.mxu0 0.0
    %2311 = vmatprep.subr.mxu0 0.0
    %2312 = vmatpush1.msra.mxu0 0.0
    %2313 = vmatprep.mubr.f32.mxu0 0.0
    %2314 = vmatmul.mubr.f32.gmra.mrb[0].mxu0 %v2247
    %v2315 = vpop.f32.mrb[0].mxu0
    %v2316 = vadd.f32 0.0, %v2315
    %v2317 = vpop.f32.mrb[0].mxu0
    %2318 = vdwg.mxu0
    %v2319 = vadd.f32 %v2244, %v2316
    %v2321 = vsel %vm370, %v2241, 0
    %2323 = vmatprep.subr.mxu0 0.0
    %2324 = vmatpush1.msra.mxu0 %v2059
    %2325 = vmatprep.subr.mxu0 0.0
    %2326 = vmatpush1.msra.mxu0 %v2061
    %2327 = vmatprep.subr.mxu0 0.0
    %2328 = vmatpush1.msra.mxu0 %v2063
    %2329 = vmatprep.subr.mxu0 0.0
    %2330 = vmatpush1.msra.mxu0 %v2065
    %2331 = vmatprep.subr.mxu0 0.0
    %2332 = vmatpush1.msra.mxu0 0.0
    %2333 = vmatprep.subr.mxu0 0.0
    %2334 = vmatpush1.msra.mxu0 0.0
    %2335 = vmatprep.subr.mxu0 0.0
    %2336 = vmatpush1.msra.mxu0 0.0
    %2337 = vmatprep.subr.mxu0 0.0
    %2338 = vmatpush1.msra.mxu0 0.0
    %2339 = vmatprep.subr.mxu0 0.0
    %2340 = vmatpush1.msra.mxu0 0.0
    %2341 = vmatprep.subr.mxu0 0.0
    %2342 = vmatpush1.msra.mxu0 0.0
    %2343 = vmatprep.subr.mxu0 0.0
    %2344 = vmatpush1.msra.mxu0 0.0
    %2345 = vmatprep.subr.mxu0 0.0
    %2346 = vmatpush1.msra.mxu0 0.0
    %2347 = vmatprep.subr.mxu0 0.0
    %2348 = vmatpush1.msra.mxu0 0.0
    %2349 = vmatprep.subr.mxu0 0.0
    %2350 = vmatpush1.msra.mxu0 0.0
    %2351 = vmatprep.subr.mxu0 0.0
    %2352 = vmatpush1.msra.mxu0 0.0
    %2353 = vmatprep.subr.mxu0 0.0
    %2354 = vmatpush1.msra.mxu0 0.0
    %2355 = vmatprep.subr.mxu0 0.0
    %2356 = vmatpush1.msra.mxu0 0.0
    %2357 = vmatprep.subr.mxu0 0.0
    %2358 = vmatpush1.msra.mxu0 0.0
    %2359 = vmatprep.subr.mxu0 0.0
    %2360 = vmatpush1.msra.mxu0 0.0
    %2361 = vmatprep.subr.mxu0 0.0
    %2362 = vmatpush1.msra.mxu0 0.0
    %2363 = vmatprep.subr.mxu0 0.0
    %2364 = vmatpush1.msra.mxu0 0.0
    %2365 = vmatprep.subr.mxu0 0.0
    %2366 = vmatpush1.msra.mxu0 0.0
    %2367 = vmatprep.subr.mxu0 0.0
    %2368 = vmatpush1.msra.mxu0 0.0
    %2369 = vmatprep.subr.mxu0 0.0
    %2370 = vmatpush1.msra.mxu0 0.0
    %2371 = vmatprep.subr.mxu0 0.0
    %2372 = vmatpush1.msra.mxu0 0.0
    %2373 = vmatprep.subr.mxu0 0.0
    %2374 = vmatpush1.msra.mxu0 0.0
    %2375 = vmatprep.subr.mxu0 0.0
    %2376 = vmatpush1.msra.mxu0 0.0
    %2377 = vmatprep.subr.mxu0 0.0
    %2378 = vmatpush1.msra.mxu0 0.0
    %2379 = vmatprep.subr.mxu0 0.0
    %2380 = vmatpush1.msra.mxu0 0.0
    %2381 = vmatprep.subr.mxu0 0.0
    %2382 = vmatpush1.msra.mxu0 0.0
    %2383 = vmatprep.subr.mxu0 0.0
    %2384 = vmatpush1.msra.mxu0 0.0
    %2385 = vmatprep.subr.mxu0 0.0
    %2386 = vmatpush1.msra.mxu0 0.0
    %2387 = vmatprep.mubr.f32.mxu0 0.0
    %2388 = vmatmul.mubr.f32.gmra.mrb[0].mxu0 %v2321
    %v2389 = vpop.f32.mrb[0].mxu0
    %v2390 = vadd.f32 0.0, %v2389
    %v2391 = vpop.f32.mrb[0].mxu0
    %2392 = vdwg.mxu0
    %v2393 = vadd.f32 %v2245, %v2390
    %v2394 = vxor.u32 %v2319, 2147483648
    %v2395 = vxor.u32 %v2393, 2147483648
    %v2396 = vmul.f32 %v2394, 1.442695
    %v2397 = vpow.pop %v2396
    %v2398 = vmul.f32 %v2395, 1.442695
    %v2399 = vpow.pop %v2398
    %v2400 = vadd.f32 %v2397, 1.0
    %v2401 = vadd.f32 %v2399, 1.0
    %v2402 = vrcp.pop %v2400
    %v2403 = vmul.f32 1.0, %v2402
    %v2404 = vrcp.pop %v2401
    %v2405 = vmul.f32 1.0, %v2404
    %v2406 = vtanh.pop %v2319
    %v2407 = vtanh.pop %v2393
    %2410 = vrot.lane.b32.xlu0 %v2242, 32
    %v2411 = vpop.permute.xlu0 %2410
    %2412 = vrot.lane.b32.xlu0 %v2243, 32
    %v2413 = vpop.permute.xlu0 %2412
    %v2416 = vmul.f32 %v2403, %v2411
    %v2417 = vmul.f32 %v2405, %v2413
    %2420 = vrot.lane.b32.xlu0 %v2406, 32
    %v2421 = vpop.permute.xlu0 %2420
    %2422 = vrot.lane.b32.xlu0 %v2407, 32
    %v2423 = vpop.permute.xlu0 %2422
    %v2426 = vmul.f32 %v2403, %v2421
    %v2427 = vmul.f32 %v2405, %v2423
    %2430 = vrot.lane.b32.xlu0 %v2426, 32
    %v2431 = vpop.permute.xlu0 %2430
    %2432 = vrot.lane.b32.xlu0 %v2427, 32
    %v2433 = vpop.permute.xlu0 %2432
    %v2436 = vadd.f32 %v2416, %v2431
    %v2437 = vadd.f32 %v2417, %v2433
    %v2438 = vtanh.pop %v2436
    %v2439 = vtanh.pop %v2437
    %2442 = vrot.lane.b32.xlu0 %v2438, 32
    %v2443 = vpop.permute.xlu0 %2442
    %2444 = vrot.lane.b32.xlu0 %v2439, 32
    %v2445 = vpop.permute.xlu0 %2444
    %v2448 = vmul.f32 %v2403, %v2443
    %v2449 = vmul.f32 %v2405, %v2445
    %2451 = vrot.lane.b32.xlu0 %v2448, 64
    %v2452 = vpop.permute.xlu0 %2451
    %2454 = vst.msk [vmem:[#allocation4] sm:$0xff] %vm370, %v2452
    %2456 = vrot.lane.b32.xlu0 %v2449, 96
    %v2457 = vpop.permute.xlu0 %2456
    %2459 = vst.msk [vmem:[#allocation4 + $0x38] sm:$0xff] %vm584, %v2457
    %v2460 = vld [vmem:[#allocation2 + $0x10] sm:$0xff]
    %v2461 = vld [vmem:[#allocation2 + $0x68] sm:$0xff]
    %v2462 = vsel %vm370, %v2452, 0
    %2464 = vmatprep.subr.mxu0 0.0
    %2465 = vmatpush1.msra.mxu0 %v2058
    %2466 = vmatprep.subr.mxu0 0.0
    %2467 = vmatpush1.msra.mxu0 %v2060
    %2468 = vmatprep.subr.mxu0 0.0
    %2469 = vmatpush1.msra.mxu0 %v2062
    %2470 = vmatprep.subr.mxu0 0.0
    %2471 = vmatpush1.msra.mxu0 %v2064
    %2472 = vmatprep.subr.mxu0 0.0
    %2473 = vmatpush1.msra.mxu0 0.0
    %2474 = vmatprep.subr.mxu0 0.0
    %2475 = vmatpush1.msra.mxu0 0.0
    %2476 = vmatprep.subr.mxu0 0.0
    %2477 = vmatpush1.msra.mxu0 0.0
    %2478 = vmatprep.subr.mxu0 0.0
    %2479 = vmatpush1.msra.mxu0 0.0
    %2480 = vmatprep.subr.mxu0 0.0
    %2481 = vmatpush1.msra.mxu0 0.0
    %2482 = vmatprep.subr.mxu0 0.0
    %2483 = vmatpush1.msra.mxu0 0.0
    %2484 = vmatprep.subr.mxu0 0.0
    %2485 = vmatpush1.msra.mxu0 0.0
    %2486 = vmatprep.subr.mxu0 0.0
    %2487 = vmatpush1.msra.mxu0 0.0
    %2488 = vmatprep.subr.mxu0 0.0
    %2489 = vmatpush1.msra.mxu0 0.0
    %2490 = vmatprep.subr.mxu0 0.0
    %2491 = vmatpush1.msra.mxu0 0.0
    %2492 = vmatprep.subr.mxu0 0.0
    %2493 = vmatpush1.msra.mxu0 0.0
    %2494 = vmatprep.subr.mxu0 0.0
    %2495 = vmatpush1.msra.mxu0 0.0
    %2496 = vmatprep.subr.mxu0 0.0
    %2497 = vmatpush1.msra.mxu0 0.0
    %2498 = vmatprep.subr.mxu0 0.0
    %2499 = vmatpush1.msra.mxu0 0.0
    %2500 = vmatprep.subr.mxu0 0.0
    %2501 = vmatpush1.msra.mxu0 0.0
    %2502 = vmatprep.subr.mxu0 0.0
    %2503 = vmatpush1.msra.mxu0 0.0
    %2504 = vmatprep.subr.mxu0 0.0
    %2505 = vmatpush1.msra.mxu0 0.0
    %2506 = vmatprep.subr.mxu0 0.0
    %2507 = vmatpush1.msra.mxu0 0.0
    %2508 = vmatprep.subr.mxu0 0.0
    %2509 = vmatpush1.msra.mxu0 0.0
    %2510 = vmatprep.subr.mxu0 0.0
    %2511 = vmatpush1.msra.mxu0 0.0
    %2512 = vmatprep.subr.mxu0 0.0
    %2513 = vmatpush1.msra.mxu0 0.0
    %2514 = vmatprep.subr.mxu0 0.0
    %2515 = vmatpush1.msra.mxu0 0.0
    %2516 = vmatprep.subr.mxu0 0.0
    %2517 = vmatpush1.msra.mxu0 0.0
    %2518 = vmatprep.subr.mxu0 0.0
    %2519 = vmatpush1.msra.mxu0 0.0
    %2520 = vmatprep.subr.mxu0 0.0
    %2521 = vmatpush1.msra.mxu0 0.0
    %2522 = vmatprep.subr.mxu0 0.0
    %2523 = vmatpush1.msra.mxu0 0.0
    %2524 = vmatprep.subr.mxu0 0.0
    %2525 = vmatpush1.msra.mxu0 0.0
    %2526 = vmatprep.subr.mxu0 0.0
    %2527 = vmatpush1.msra.mxu0 0.0
    %2528 = vmatprep.mubr.f32.mxu0 0.0
    %2529 = vmatmul.mubr.f32.gmra.mrb[0].mxu0 %v2462
    %v2530 = vpop.f32.mrb[0].mxu0
    %v2531 = vadd.f32 0.0, %v2530
    %v2532 = vpop.f32.mrb[0].mxu0
    %2533 = vdwg.mxu0
    %v2534 = vadd.f32 %v2460, %v2531
    %2535 = vrot.lane.b32.xlu0 %v2449, 64
    %v2536 = vpop.permute.xlu0 %2535
    %v2537 = vsel %vm370, %v2536, 0
    %2539 = vmatprep.subr.mxu0 0.0
    %2540 = vmatpush1.msra.mxu0 %v2059
    %2541 = vmatprep.subr.mxu0 0.0
    %2542 = vmatpush1.msra.mxu0 %v2061
    %2543 = vmatprep.subr.mxu0 0.0
    %2544 = vmatpush1.msra.mxu0 %v2063
    %2545 = vmatprep.subr.mxu0 0.0
    %2546 = vmatpush1.msra.mxu0 %v2065
    %2547 = vmatprep.subr.mxu0 0.0
    %2548 = vmatpush1.msra.mxu0 0.0
    %2549 = vmatprep.subr.mxu0 0.0
    %2550 = vmatpush1.msra.mxu0 0.0
    %2551 = vmatprep.subr.mxu0 0.0
    %2552 = vmatpush1.msra.mxu0 0.0
    %2553 = vmatprep.subr.mxu0 0.0
    %2554 = vmatpush1.msra.mxu0 0.0
    %2555 = vmatprep.subr.mxu0 0.0
    %2556 = vmatpush1.msra.mxu0 0.0
    %2557 = vmatprep.subr.mxu0 0.0
    %2558 = vmatpush1.msra.mxu0 0.0
    %2559 = vmatprep.subr.mxu0 0.0
    %2560 = vmatpush1.msra.mxu0 0.0
    %2561 = vmatprep.subr.mxu0 0.0
    %2562 = vmatpush1.msra.mxu0 0.0
    %2563 = vmatprep.subr.mxu0 0.0
    %2564 = vmatpush1.msra.mxu0 0.0
    %2565 = vmatprep.subr.mxu0 0.0
    %2566 = vmatpush1.msra.mxu0 0.0
    %2567 = vmatprep.subr.mxu0 0.0
    %2568 = vmatpush1.msra.mxu0 0.0
    %2569 = vmatprep.subr.mxu0 0.0
    %2570 = vmatpush1.msra.mxu0 0.0
    %2571 = vmatprep.subr.mxu0 0.0
    %2572 = vmatpush1.msra.mxu0 0.0
    %2573 = vmatprep.subr.mxu0 0.0
    %2574 = vmatpush1.msra.mxu0 0.0
    %2575 = vmatprep.subr.mxu0 0.0
    %2576 = vmatpush1.msra.mxu0 0.0
    %2577 = vmatprep.subr.mxu0 0.0
    %2578 = vmatpush1.msra.mxu0 0.0
    %2579 = vmatprep.subr.mxu0 0.0
    %2580 = vmatpush1.msra.mxu0 0.0
    %2581 = vmatprep.subr.mxu0 0.0
    %2582 = vmatpush1.msra.mxu0 0.0
    %2583 = vmatprep.subr.mxu0 0.0
    %2584 = vmatpush1.msra.mxu0 0.0
    %2585 = vmatprep.subr.mxu0 0.0
    %2586 = vmatpush1.msra.mxu0 0.0
    %2587 = vmatprep.subr.mxu0 0.0
    %2588 = vmatpush1.msra.mxu0 0.0
    %2589 = vmatprep.subr.mxu0 0.0
    %2590 = vmatpush1.msra.mxu0 0.0
    %2591 = vmatprep.subr.mxu0 0.0
    %2592 = vmatpush1.msra.mxu0 0.0
    %2593 = vmatprep.subr.mxu0 0.0
    %2594 = vmatpush1.msra.mxu0 0.0
    %2595 = vmatprep.subr.mxu0 0.0
    %2596 = vmatpush1.msra.mxu0 0.0
    %2597 = vmatprep.subr.mxu0 0.0
    %2598 = vmatpush1.msra.mxu0 0.0
    %2599 = vmatprep.subr.mxu0 0.0
    %2600 = vmatpush1.msra.mxu0 0.0
    %2601 = vmatprep.subr.mxu0 0.0
    %2602 = vmatpush1.msra.mxu0 0.0
    %2603 = vmatprep.mubr.f32.mxu0 0.0
    %2604 = vmatmul.mubr.f32.gmra.mrb[0].mxu0 %v2537
    %v2605 = vpop.f32.mrb[0].mxu0
    %v2606 = vadd.f32 0.0, %v2605
    %v2607 = vpop.f32.mrb[0].mxu0
    %2608 = vdwg.mxu0
    %v2609 = vadd.f32 %v2461, %v2606
    %v2610 = vxor.u32 %v2534, 2147483648
    %v2611 = vxor.u32 %v2609, 2147483648
    %v2612 = vmul.f32 %v2610, 1.442695
    %v2613 = vpow.pop %v2612
    %v2614 = vmul.f32 %v2611, 1.442695
    %v2615 = vpow.pop %v2614
    %v2616 = vadd.f32 %v2613, 1.0
    %v2617 = vadd.f32 %v2615, 1.0
    %v2618 = vrcp.pop %v2616
    %v2619 = vmul.f32 1.0, %v2618
    %v2620 = vrcp.pop %v2617
    %v2621 = vmul.f32 1.0, %v2620
    %v2622 = vtanh.pop %v2534
    %v2623 = vtanh.pop %v2609
    %v2624 = vmul.f32 %v2619, %v2436
    %v2625 = vmul.f32 %v2621, %v2437
    %2628 = vrot.lane.b32.xlu0 %v2622, 32
    %v2629 = vpop.permute.xlu0 %2628
    %2630 = vrot.lane.b32.xlu0 %v2623, 32
    %v2631 = vpop.permute.xlu0 %2630
    %v2634 = vmul.f32 %v2619, %v2629
    %v2635 = vmul.f32 %v2621, %v2631
    %2638 = vrot.lane.b32.xlu0 %v2634, 32
    %v2639 = vpop.permute.xlu0 %2638
    %2640 = vrot.lane.b32.xlu0 %v2635, 32
    %v2641 = vpop.permute.xlu0 %2640
    %v2644 = vadd.f32 %v2624, %v2639
    %v2645 = vadd.f32 %v2625, %v2641
    %v2646 = vtanh.pop %v2644
    %v2647 = vtanh.pop %v2645
    %2650 = vrot.lane.b32.xlu0 %v2646, 32
    %v2651 = vpop.permute.xlu0 %2650
    %2652 = vrot.lane.b32.xlu0 %v2647, 32
    %v2653 = vpop.permute.xlu0 %2652
    %v2656 = vmul.f32 %v2619, %v2651
    %v2657 = vmul.f32 %v2621, %v2653
    %2659 = vrot.lane.b32.xlu0 %v2656, 64
    %v2660 = vpop.permute.xlu0 %2659
    %2662 = vst.msk [vmem:[#allocation4 + $0x8] sm:$0xff] %vm370, %v2660
    %2664 = vrot.lane.b32.xlu0 %v2657, 96
    %v2665 = vpop.permute.xlu0 %2664
    %2667 = vst.msk [vmem:[#allocation4 + $0x30] sm:$0xff] %vm584, %v2665
    %v2668 = vld [vmem:[#allocation2 + $0x20] sm:$0xff]
    %v2669 = vld [vmem:[#allocation2 + $0x58] sm:$0xff]
    %v2670 = vsel %vm370, %v2660, 0
    %2672 = vmatprep.subr.mxu0 0.0
    %2673 = vmatpush1.msra.mxu0 %v2058
    %2674 = vmatprep.subr.mxu0 0.0
    %2675 = vmatpush1.msra.mxu0 %v2060
    %2676 = vmatprep.subr.mxu0 0.0
    %2677 = vmatpush1.msra.mxu0 %v2062
    %2678 = vmatprep.subr.mxu0 0.0
    %2679 = vmatpush1.msra.mxu0 %v2064
    %2680 = vmatprep.subr.mxu0 0.0
    %2681 = vmatpush1.msra.mxu0 0.0
    %2682 = vmatprep.subr.mxu0 0.0
    %2683 = vmatpush1.msra.mxu0 0.0
    %2684 = vmatprep.subr.mxu0 0.0
    %2685 = vmatpush1.msra.mxu0 0.0
    %2686 = vmatprep.subr.mxu0 0.0
    %2687 = vmatpush1.msra.mxu0 0.0
    %2688 = vmatprep.subr.mxu0 0.0
    %2689 = vmatpush1.msra.mxu0 0.0
    %2690 = vmatprep.subr.mxu0 0.0
    %2691 = vmatpush1.msra.mxu0 0.0
    %2692 = vmatprep.subr.mxu0 0.0
    %2693 = vmatpush1.msra.mxu0 0.0
    %2694 = vmatprep.subr.mxu0 0.0
    %2695 = vmatpush1.msra.mxu0 0.0
    %2696 = vmatprep.subr.mxu0 0.0
    %2697 = vmatpush1.msra.mxu0 0.0
    %2698 = vmatprep.subr.mxu0 0.0
    %2699 = vmatpush1.msra.mxu0 0.0
    %2700 = vmatprep.subr.mxu0 0.0
    %2701 = vmatpush1.msra.mxu0 0.0
    %2702 = vmatprep.subr.mxu0 0.0
    %2703 = vmatpush1.msra.mxu0 0.0
    %2704 = vmatprep.subr.mxu0 0.0
    %2705 = vmatpush1.msra.mxu0 0.0
    %2706 = vmatprep.subr.mxu0 0.0
    %2707 = vmatpush1.msra.mxu0 0.0
    %2708 = vmatprep.subr.mxu0 0.0
    %2709 = vmatpush1.msra.mxu0 0.0
    %2710 = vmatprep.subr.mxu0 0.0
    %2711 = vmatpush1.msra.mxu0 0.0
    %2712 = vmatprep.subr.mxu0 0.0
    %2713 = vmatpush1.msra.mxu0 0.0
    %2714 = vmatprep.subr.mxu0 0.0
    %2715 = vmatpush1.msra.mxu0 0.0
    %2716 = vmatprep.subr.mxu0 0.0
    %2717 = vmatpush1.msra.mxu0 0.0
    %2718 = vmatprep.subr.mxu0 0.0
    %2719 = vmatpush1.msra.mxu0 0.0
    %2720 = vmatprep.subr.mxu0 0.0
    %2721 = vmatpush1.msra.mxu0 0.0
    %2722 = vmatprep.subr.mxu0 0.0
    %2723 = vmatpush1.msra.mxu0 0.0
    %2724 = vmatprep.subr.mxu0 0.0
    %2725 = vmatpush1.msra.mxu0 0.0
    %2726 = vmatprep.subr.mxu0 0.0
    %2727 = vmatpush1.msra.mxu0 0.0
    %2728 = vmatprep.subr.mxu0 0.0
    %2729 = vmatpush1.msra.mxu0 0.0
    %2730 = vmatprep.subr.mxu0 0.0
    %2731 = vmatpush1.msra.mxu0 0.0
    %2732 = vmatprep.subr.mxu0 0.0
    %2733 = vmatpush1.msra.mxu0 0.0
    %2734 = vmatprep.subr.mxu0 0.0
    %2735 = vmatpush1.msra.mxu0 0.0
    %2736 = vmatprep.mubr.f32.mxu0 0.0
    %2737 = vmatmul.mubr.f32.gmra.mrb[0].mxu0 %v2670
    %v2738 = vpop.f32.mrb[0].mxu0
    %v2739 = vadd.f32 0.0, %v2738
    %v2740 = vpop.f32.mrb[0].mxu0
    %2741 = vdwg.mxu0
    %v2742 = vadd.f32 %v2668, %v2739
    %2743 = vrot.lane.b32.xlu0 %v2657, 64
    %v2744 = vpop.permute.xlu0 %2743
    %v2745 = vsel %vm370, %v2744, 0
    %2747 = vmatprep.subr.mxu0 0.0
    %2748 = vmatpush1.msra.mxu0 %v2059
    %2749 = vmatprep.subr.mxu0 0.0
    %2750 = vmatpush1.msra.mxu0 %v2061
    %2751 = vmatprep.subr.mxu0 0.0
    %2752 = vmatpush1.msra.mxu0 %v2063
    %2753 = vmatprep.subr.mxu0 0.0
    %2754 = vmatpush1.msra.mxu0 %v2065
    %2755 = vmatprep.subr.mxu0 0.0
    %2756 = vmatpush1.msra.mxu0 0.0
    %2757 = vmatprep.subr.mxu0 0.0
    %2758 = vmatpush1.msra.mxu0 0.0
    %2759 = vmatprep.subr.mxu0 0.0
    %2760 = vmatpush1.msra.mxu0 0.0
    %2761 = vmatprep.subr.mxu0 0.0
    %2762 = vmatpush1.msra.mxu0 0.0
    %2763 = vmatprep.subr.mxu0 0.0
    %2764 = vmatpush1.msra.mxu0 0.0
    %2765 = vmatprep.subr.mxu0 0.0
    %2766 = vmatpush1.msra.mxu0 0.0
    %2767 = vmatprep.subr.mxu0 0.0
    %2768 = vmatpush1.msra.mxu0 0.0
    %2769 = vmatprep.subr.mxu0 0.0
    %2770 = vmatpush1.msra.mxu0 0.0
    %2771 = vmatprep.subr.mxu0 0.0
    %2772 = vmatpush1.msra.mxu0 0.0
    %2773 = vmatprep.subr.mxu0 0.0
    %2774 = vmatpush1.msra.mxu0 0.0
    %2775 = vmatprep.subr.mxu0 0.0
    %2776 = vmatpush1.msra.mxu0 0.0
    %2777 = vmatprep.subr.mxu0 0.0
    %2778 = vmatpush1.msra.mxu0 0.0
    %2779 = vmatprep.subr.mxu0 0.0
    %2780 = vmatpush1.msra.mxu0 0.0
    %2781 = vmatprep.subr.mxu0 0.0
    %2782 = vmatpush1.msra.mxu0 0.0
    %2783 = vmatprep.subr.mxu0 0.0
    %2784 = vmatpush1.msra.mxu0 0.0
    %2785 = vmatprep.subr.mxu0 0.0
    %2786 = vmatpush1.msra.mxu0 0.0
    %2787 = vmatprep.subr.mxu0 0.0
    %2788 = vmatpush1.msra.mxu0 0.0
    %2789 = vmatprep.subr.mxu0 0.0
    %2790 = vmatpush1.msra.mxu0 0.0
    %2791 = vmatprep.subr.mxu0 0.0
    %2792 = vmatpush1.msra.mxu0 0.0
    %2793 = vmatprep.subr.mxu0 0.0
    %2794 = vmatpush1.msra.mxu0 0.0
    %2795 = vmatprep.subr.mxu0 0.0
    %2796 = vmatpush1.msra.mxu0 0.0
    %2797 = vmatprep.subr.mxu0 0.0
    %2798 = vmatpush1.msra.mxu0 0.0
    %2799 = vmatprep.subr.mxu0 0.0
    %2800 = vmatpush1.msra.mxu0 0.0
    %2801 = vmatprep.subr.mxu0 0.0
    %2802 = vmatpush1.msra.mxu0 0.0
    %2803 = vmatprep.subr.mxu0 0.0
    %2804 = vmatpush1.msra.mxu0 0.0
    %2805 = vmatprep.subr.mxu0 0.0
    %2806 = vmatpush1.msra.mxu0 0.0
    %2807 = vmatprep.subr.mxu0 0.0
    %2808 = vmatpush1.msra.mxu0 0.0
    %2809 = vmatprep.subr.mxu0 0.0
    %2810 = vmatpush1.msra.mxu0 0.0
    %2811 = vmatprep.mubr.f32.mxu0 0.0
    %2812 = vmatmul.mubr.f32.gmra.mrb[0].mxu0 %v2745
    %v2813 = vpop.f32.mrb[0].mxu0
    %v2814 = vadd.f32 0.0, %v2813
    %v2815 = vpop.f32.mrb[0].mxu0
    %2816 = vdwg.mxu0
    %v2817 = vadd.f32 %v2669, %v2814
    %v2818 = vxor.u32 %v2742, 2147483648
    %v2819 = vxor.u32 %v2817, 2147483648
    %v2820 = vmul.f32 %v2818, 1.442695
    %v2821 = vpow.pop %v2820
    %v2822 = vmul.f32 %v2819, 1.442695
    %v2823 = vpow.pop %v2822
    %v2824 = vadd.f32 %v2821, 1.0
    %v2825 = vadd.f32 %v2823, 1.0
    %v2826 = vrcp.pop %v2824
    %v2827 = vmul.f32 1.0, %v2826
    %v2828 = vrcp.pop %v2825
    %v2829 = vmul.f32 1.0, %v2828
    %v2830 = vtanh.pop %v2742
    %v2831 = vtanh.pop %v2817
    %v2832 = vmul.f32 %v2827, %v2644
    %v2833 = vmul.f32 %v2829, %v2645
    %2836 = vrot.lane.b32.xlu0 %v2830, 32
    %v2837 = vpop.permute.xlu0 %2836
    %2838 = vrot.lane.b32.xlu0 %v2831, 32
    %v2839 = vpop.permute.xlu0 %2838
    %v2842 = vmul.f32 %v2827, %v2837
    %v2843 = vmul.f32 %v2829, %v2839
    %2846 = vrot.lane.b32.xlu0 %v2842, 32
    %v2847 = vpop.permute.xlu0 %2846
    %2848 = vrot.lane.b32.xlu0 %v2843, 32
    %v2849 = vpop.permute.xlu0 %2848
    %v2852 = vadd.f32 %v2832, %v2847
    %v2853 = vadd.f32 %v2833, %v2849
    %v2854 = vtanh.pop %v2852
    %v2855 = vtanh.pop %v2853
    %2858 = vrot.lane.b32.xlu0 %v2854, 32
    %v2859 = vpop.permute.xlu0 %2858
    %2860 = vrot.lane.b32.xlu0 %v2855, 32
    %v2861 = vpop.permute.xlu0 %2860
    %v2864 = vmul.f32 %v2827, %v2859
    %v2865 = vmul.f32 %v2829, %v2861
    %2867 = vrot.lane.b32.xlu0 %v2864, 64
    %v2868 = vpop.permute.xlu0 %2867
    %2870 = vst.msk [vmem:[#allocation4 + $0x10] sm:$0xff] %vm370, %v2868
    %2872 = vrot.lane.b32.xlu0 %v2865, 96
    %v2873 = vpop.permute.xlu0 %2872
    %2875 = vst.msk [vmem:[#allocation4 + $0x28] sm:$0xff] %vm584, %v2873
    %v2876 = vld [vmem:[#allocation2 + $0x30] sm:$0xff]
    %v2877 = vld [vmem:[#allocation2 + $0x48] sm:$0xff]
    %v2878 = vsel %vm370, %v2868, 0
    %2880 = vmatprep.subr.mxu0 0.0
    %2881 = vmatpush1.msra.mxu0 %v2058
    %2882 = vmatprep.subr.mxu0 0.0
    %2883 = vmatpush1.msra.mxu0 %v2060
    %2884 = vmatprep.subr.mxu0 0.0
    %2885 = vmatpush1.msra.mxu0 %v2062
    %2886 = vmatprep.subr.mxu0 0.0
    %2887 = vmatpush1.msra.mxu0 %v2064
    %2888 = vmatprep.subr.mxu0 0.0
    %2889 = vmatpush1.msra.mxu0 0.0
    %2890 = vmatprep.subr.mxu0 0.0
    %2891 = vmatpush1.msra.mxu0 0.0
    %2892 = vmatprep.subr.mxu0 0.0
    %2893 = vmatpush1.msra.mxu0 0.0
    %2894 = vmatprep.subr.mxu0 0.0
    %2895 = vmatpush1.msra.mxu0 0.0
    %2896 = vmatprep.subr.mxu0 0.0
    %2897 = vmatpush1.msra.mxu0 0.0
    %2898 = vmatprep.subr.mxu0 0.0
    %2899 = vmatpush1.msra.mxu0 0.0
    %2900 = vmatprep.subr.mxu0 0.0
    %2901 = vmatpush1.msra.mxu0 0.0
    %2902 = vmatprep.subr.mxu0 0.0
    %2903 = vmatpush1.msra.mxu0 0.0
    %2904 = vmatprep.subr.mxu0 0.0
    %2905 = vmatpush1.msra.mxu0 0.0
    %2906 = vmatprep.subr.mxu0 0.0
    %2907 = vmatpush1.msra.mxu0 0.0
    %2908 = vmatprep.subr.mxu0 0.0
    %2909 = vmatpush1.msra.mxu0 0.0
    %2910 = vmatprep.subr.mxu0 0.0
    %2911 = vmatpush1.msra.mxu0 0.0
    %2912 = vmatprep.subr.mxu0 0.0
    %2913 = vmatpush1.msra.mxu0 0.0
    %2914 = vmatprep.subr.mxu0 0.0
    %2915 = vmatpush1.msra.mxu0 0.0
    %2916 = vmatprep.subr.mxu0 0.0
    %2917 = vmatpush1.msra.mxu0 0.0
    %2918 = vmatprep.subr.mxu0 0.0
    %2919 = vmatpush1.msra.mxu0 0.0
    %2920 = vmatprep.subr.mxu0 0.0
    %2921 = vmatpush1.msra.mxu0 0.0
    %2922 = vmatprep.subr.mxu0 0.0
    %2923 = vmatpush1.msra.mxu0 0.0
    %2924 = vmatprep.subr.mxu0 0.0
    %2925 = vmatpush1.msra.mxu0 0.0
    %2926 = vmatprep.subr.mxu0 0.0
    %2927 = vmatpush1.msra.mxu0 0.0
    %2928 = vmatprep.subr.mxu0 0.0
    %2929 = vmatpush1.msra.mxu0 0.0
    %2930 = vmatprep.subr.mxu0 0.0
    %2931 = vmatpush1.msra.mxu0 0.0
    %2932 = vmatprep.subr.mxu0 0.0
    %2933 = vmatpush1.msra.mxu0 0.0
    %2934 = vmatprep.subr.mxu0 0.0
    %2935 = vmatpush1.msra.mxu0 0.0
    %2936 = vmatprep.subr.mxu0 0.0
    %2937 = vmatpush1.msra.mxu0 0.0
    %2938 = vmatprep.subr.mxu0 0.0
    %2939 = vmatpush1.msra.mxu0 0.0
    %2940 = vmatprep.subr.mxu0 0.0
    %2941 = vmatpush1.msra.mxu0 0.0
    %2942 = vmatprep.subr.mxu0 0.0
    %2943 = vmatpush1.msra.mxu0 0.0
    %2944 = vmatprep.mubr.f32.mxu0 0.0
    %2945 = vmatmul.mubr.f32.gmra.mrb[0].mxu0 %v2878
    %v2946 = vpop.f32.mrb[0].mxu0
    %v2947 = vadd.f32 0.0, %v2946
    %v2948 = vpop.f32.mrb[0].mxu0
    %2949 = vdwg.mxu0
    %v2950 = vadd.f32 %v2876, %v2947
    %2951 = vrot.lane.b32.xlu0 %v2865, 64
    %v2952 = vpop.permute.xlu0 %2951
    %v2953 = vsel %vm370, %v2952, 0
    %2955 = vmatprep.subr.mxu0 0.0
    %2956 = vmatpush1.msra.mxu0 %v2059
    %2957 = vmatprep.subr.mxu0 0.0
    %2958 = vmatpush1.msra.mxu0 %v2061
    %2959 = vmatprep.subr.mxu0 0.0
    %2960 = vmatpush1.msra.mxu0 %v2063
    %2961 = vmatprep.subr.mxu0 0.0
    %2962 = vmatpush1.msra.mxu0 %v2065
    %2963 = vmatprep.subr.mxu0 0.0
    %2964 = vmatpush1.msra.mxu0 0.0
    %2965 = vmatprep.subr.mxu0 0.0
    %2966 = vmatpush1.msra.mxu0 0.0
    %2967 = vmatprep.subr.mxu0 0.0
    %2968 = vmatpush1.msra.mxu0 0.0
    %2969 = vmatprep.subr.mxu0 0.0
    %2970 = vmatpush1.msra.mxu0 0.0
    %2971 = vmatprep.subr.mxu0 0.0
    %2972 = vmatpush1.msra.mxu0 0.0
    %2973 = vmatprep.subr.mxu0 0.0
    %2974 = vmatpush1.msra.mxu0 0.0
    %2975 = vmatprep.subr.mxu0 0.0
    %2976 = vmatpush1.msra.mxu0 0.0
    %2977 = vmatprep.subr.mxu0 0.0
    %2978 = vmatpush1.msra.mxu0 0.0
    %2979 = vmatprep.subr.mxu0 0.0
    %2980 = vmatpush1.msra.mxu0 0.0
    %2981 = vmatprep.subr.mxu0 0.0
    %2982 = vmatpush1.msra.mxu0 0.0
    %2983 = vmatprep.subr.mxu0 0.0
    %2984 = vmatpush1.msra.mxu0 0.0
    %2985 = vmatprep.subr.mxu0 0.0
    %2986 = vmatpush1.msra.mxu0 0.0
    %2987 = vmatprep.subr.mxu0 0.0
    %2988 = vmatpush1.msra.mxu0 0.0
    %2989 = vmatprep.subr.mxu0 0.0
    %2990 = vmatpush1.msra.mxu0 0.0
    %2991 = vmatprep.subr.mxu0 0.0
    %2992 = vmatpush1.msra.mxu0 0.0
    %2993 = vmatprep.subr.mxu0 0.0
    %2994 = vmatpush1.msra.mxu0 0.0
    %2995 = vmatprep.subr.mxu0 0.0
    %2996 = vmatpush1.msra.mxu0 0.0
    %2997 = vmatprep.subr.mxu0 0.0
    %2998 = vmatpush1.msra.mxu0 0.0
    %2999 = vmatprep.subr.mxu0 0.0
    %3000 = vmatpush1.msra.mxu0 0.0
    %3001 = vmatprep.subr.mxu0 0.0
    %3002 = vmatpush1.msra.mxu0 0.0
    %3003 = vmatprep.subr.mxu0 0.0
    %3004 = vmatpush1.msra.mxu0 0.0
    %3005 = vmatprep.subr.mxu0 0.0
    %3006 = vmatpush1.msra.mxu0 0.0
    %3007 = vmatprep.subr.mxu0 0.0
    %3008 = vmatpush1.msra.mxu0 0.0
    %3009 = vmatprep.subr.mxu0 0.0
    %3010 = vmatpush1.msra.mxu0 0.0
    %3011 = vmatprep.subr.mxu0 0.0
    %3012 = vmatpush1.msra.mxu0 0.0
    %3013 = vmatprep.subr.mxu0 0.0
    %3014 = vmatpush1.msra.mxu0 0.0
    %3015 = vmatprep.subr.mxu0 0.0
    %3016 = vmatpush1.msra.mxu0 0.0
    %3017 = vmatprep.subr.mxu0 0.0
    %3018 = vmatpush1.msra.mxu0 0.0
    %3019 = vmatprep.mubr.f32.mxu0 0.0
    %3020 = vmatmul.mubr.f32.gmra.mrb[0].mxu0 %v2953
    %v3021 = vpop.f32.mrb[0].mxu0
    %v3022 = vadd.f32 0.0, %v3021
    %v3023 = vpop.f32.mrb[0].mxu0
    %3024 = vdwg.mxu0
    %v3025 = vadd.f32 %v2877, %v3022
    %v3026 = vxor.u32 %v2950, 2147483648
    %v3027 = vxor.u32 %v3025, 2147483648
    %v3028 = vmul.f32 %v3026, 1.442695
    %v3029 = vpow.pop %v3028
    %v3030 = vmul.f32 %v3027, 1.442695
    %v3031 = vpow.pop %v3030
    %v3032 = vadd.f32 %v3029, 1.0
    %v3033 = vadd.f32 %v3031, 1.0
    %v3034 = vrcp.pop %v3032
    %v3035 = vmul.f32 1.0, %v3034
    %v3036 = vrcp.pop %v3033
    %v3037 = vmul.f32 1.0, %v3036
    %v3038 = vtanh.pop %v2950
    %v3039 = vtanh.pop %v3025
    %v3040 = vmul.f32 %v3035, %v2852
    %v3041 = vmul.f32 %v3037, %v2853
    %3044 = vrot.lane.b32.xlu0 %v3038, 32
    %v3045 = vpop.permute.xlu0 %3044
    %3046 = vrot.lane.b32.xlu0 %v3039, 32
    %v3047 = vpop.permute.xlu0 %3046
    %v3050 = vmul.f32 %v3035, %v3045
    %v3051 = vmul.f32 %v3037, %v3047
    %3054 = vrot.lane.b32.xlu0 %v3050, 32
    %v3055 = vpop.permute.xlu0 %3054
    %3056 = vrot.lane.b32.xlu0 %v3051, 32
    %v3057 = vpop.permute.xlu0 %3056
    %v3060 = vadd.f32 %v3040, %v3055
    %v3061 = vadd.f32 %v3041, %v3057
    %v3062 = vtanh.pop %v3060
    %v3063 = vtanh.pop %v3061
    %3066 = vrot.lane.b32.xlu0 %v3062, 32
    %v3067 = vpop.permute.xlu0 %3066
    %3068 = vrot.lane.b32.xlu0 %v3063, 32
    %v3069 = vpop.permute.xlu0 %3068
    %v3072 = vmul.f32 %v3035, %v3067
    %v3073 = vmul.f32 %v3037, %v3069
    %3075 = vrot.lane.b32.xlu0 %v3072, 64
    %v3076 = vpop.permute.xlu0 %3075
    %3078 = vst.msk [vmem:[#allocation4 + $0x18] sm:$0xff] %vm370, %v3076
    %3080 = vrot.lane.b32.xlu0 %v3073, 96
    %v3081 = vpop.permute.xlu0 %3080
    %3083 = vst.msk [vmem:[#allocation4 + $0x20] sm:$0xff] %vm584, %v3081
    %v3084 = vld [vmem:[#allocation2 + $0x40] sm:$0xff]
    %v3085 = vld [vmem:[#allocation2 + $0x38] sm:$0xff]
    %v3086 = vsel %vm370, %v3076, 0
    %3088 = vmatprep.subr.mxu0 0.0
    %3089 = vmatpush1.msra.mxu0 %v2058
    %3090 = vmatprep.subr.mxu0 0.0
    %3091 = vmatpush1.msra.mxu0 %v2060
    %3092 = vmatprep.subr.mxu0 0.0
    %3093 = vmatpush1.msra.mxu0 %v2062
    %3094 = vmatprep.subr.mxu0 0.0
    %3095 = vmatpush1.msra.mxu0 %v2064
    %3096 = vmatprep.subr.mxu0 0.0
    %3097 = vmatpush1.msra.mxu0 0.0
    %3098 = vmatprep.subr.mxu0 0.0
    %3099 = vmatpush1.msra.mxu0 0.0
    %3100 = vmatprep.subr.mxu0 0.0
    %3101 = vmatpush1.msra.mxu0 0.0
    %3102 = vmatprep.subr.mxu0 0.0
    %3103 = vmatpush1.msra.mxu0 0.0
    %3104 = vmatprep.subr.mxu0 0.0
    %3105 = vmatpush1.msra.mxu0 0.0
    %3106 = vmatprep.subr.mxu0 0.0
    %3107 = vmatpush1.msra.mxu0 0.0
    %3108 = vmatprep.subr.mxu0 0.0
    %3109 = vmatpush1.msra.mxu0 0.0
    %3110 = vmatprep.subr.mxu0 0.0
    %3111 = vmatpush1.msra.mxu0 0.0
    %3112 = vmatprep.subr.mxu0 0.0
    %3113 = vmatpush1.msra.mxu0 0.0
    %3114 = vmatprep.subr.mxu0 0.0
    %3115 = vmatpush1.msra.mxu0 0.0
    %3116 = vmatprep.subr.mxu0 0.0
    %3117 = vmatpush1.msra.mxu0 0.0
    %3118 = vmatprep.subr.mxu0 0.0
    %3119 = vmatpush1.msra.mxu0 0.0
    %3120 = vmatprep.subr.mxu0 0.0
    %3121 = vmatpush1.msra.mxu0 0.0
    %3122 = vmatprep.subr.mxu0 0.0
    %3123 = vmatpush1.msra.mxu0 0.0
    %3124 = vmatprep.subr.mxu0 0.0
    %3125 = vmatpush1.msra.mxu0 0.0
    %3126 = vmatprep.subr.mxu0 0.0
    %3127 = vmatpush1.msra.mxu0 0.0
    %3128 = vmatprep.subr.mxu0 0.0
    %3129 = vmatpush1.msra.mxu0 0.0
    %3130 = vmatprep.subr.mxu0 0.0
    %3131 = vmatpush1.msra.mxu0 0.0
    %3132 = vmatprep.subr.mxu0 0.0
    %3133 = vmatpush1.msra.mxu0 0.0
    %3134 = vmatprep.subr.mxu0 0.0
    %3135 = vmatpush1.msra.mxu0 0.0
    %3136 = vmatprep.subr.mxu0 0.0
    %3137 = vmatpush1.msra.mxu0 0.0
    %3138 = vmatprep.subr.mxu0 0.0
    %3139 = vmatpush1.msra.mxu0 0.0
    %3140 = vmatprep.subr.mxu0 0.0
    %3141 = vmatpush1.msra.mxu0 0.0
    %3142 = vmatprep.subr.mxu0 0.0
    %3143 = vmatpush1.msra.mxu0 0.0
    %3144 = vmatprep.subr.mxu0 0.0
    %3145 = vmatpush1.msra.mxu0 0.0
    %3146 = vmatprep.subr.mxu0 0.0
    %3147 = vmatpush1.msra.mxu0 0.0
    %3148 = vmatprep.subr.mxu0 0.0
    %3149 = vmatpush1.msra.mxu0 0.0
    %3150 = vmatprep.subr.mxu0 0.0
    %3151 = vmatpush1.msra.mxu0 0.0
    %3152 = vmatprep.mubr.f32.mxu0 0.0
    %3153 = vmatmul.mubr.f32.gmra.mrb[0].mxu0 %v3086
    %v3154 = vpop.f32.mrb[0].mxu0
    %v3155 = vadd.f32 0.0, %v3154
    %v3156 = vpop.f32.mrb[0].mxu0
    %3157 = vdwg.mxu0
    %v3158 = vadd.f32 %v3084, %v3155
    %3159 = vrot.lane.b32.xlu0 %v3073, 64
    %v3160 = vpop.permute.xlu0 %3159
    %v3161 = vsel %vm370, %v3160, 0
    %3163 = vmatprep.subr.mxu0 0.0
    %3164 = vmatpush1.msra.mxu0 %v2059
    %3165 = vmatprep.subr.mxu0 0.0
    %3166 = vmatpush1.msra.mxu0 %v2061
    %3167 = vmatprep.subr.mxu0 0.0
    %3168 = vmatpush1.msra.mxu0 %v2063
    %3169 = vmatprep.subr.mxu0 0.0
    %3170 = vmatpush1.msra.mxu0 %v2065
    %3171 = vmatprep.subr.mxu0 0.0
    %3172 = vmatpush1.msra.mxu0 0.0
    %3173 = vmatprep.subr.mxu0 0.0
    %3174 = vmatpush1.msra.mxu0 0.0
    %3175 = vmatprep.subr.mxu0 0.0
    %3176 = vmatpush1.msra.mxu0 0.0
    %3177 = vmatprep.subr.mxu0 0.0
    %3178 = vmatpush1.msra.mxu0 0.0
    %3179 = vmatprep.subr.mxu0 0.0
    %3180 = vmatpush1.msra.mxu0 0.0
    %3181 = vmatprep.subr.mxu0 0.0
    %3182 = vmatpush1.msra.mxu0 0.0
    %3183 = vmatprep.subr.mxu0 0.0
    %3184 = vmatpush1.msra.mxu0 0.0
    %3185 = vmatprep.subr.mxu0 0.0
    %3186 = vmatpush1.msra.mxu0 0.0
    %3187 = vmatprep.subr.mxu0 0.0
    %3188 = vmatpush1.msra.mxu0 0.0
    %3189 = vmatprep.subr.mxu0 0.0
    %3190 = vmatpush1.msra.mxu0 0.0
    %3191 = vmatprep.subr.mxu0 0.0
    %3192 = vmatpush1.msra.mxu0 0.0
    %3193 = vmatprep.subr.mxu0 0.0
    %3194 = vmatpush1.msra.mxu0 0.0
    %3195 = vmatprep.subr.mxu0 0.0
    %3196 = vmatpush1.msra.mxu0 0.0
    %3197 = vmatprep.subr.mxu0 0.0
    %3198 = vmatpush1.msra.mxu0 0.0
    %3199 = vmatprep.subr.mxu0 0.0
    %3200 = vmatpush1.msra.mxu0 0.0
    %3201 = vmatprep.subr.mxu0 0.0
    %3202 = vmatpush1.msra.mxu0 0.0
    %3203 = vmatprep.subr.mxu0 0.0
    %3204 = vmatpush1.msra.mxu0 0.0
    %3205 = vmatprep.subr.mxu0 0.0
    %3206 = vmatpush1.msra.mxu0 0.0
    %3207 = vmatprep.subr.mxu0 0.0
    %3208 = vmatpush1.msra.mxu0 0.0
    %3209 = vmatprep.subr.mxu0 0.0
    %3210 = vmatpush1.msra.mxu0 0.0
    %3211 = vmatprep.subr.mxu0 0.0
    %3212 = vmatpush1.msra.mxu0 0.0
    %3213 = vmatprep.subr.mxu0 0.0
    %3214 = vmatpush1.msra.mxu0 0.0
    %3215 = vmatprep.subr.mxu0 0.0
    %3216 = vmatpush1.msra.mxu0 0.0
    %3217 = vmatprep.subr.mxu0 0.0
    %3218 = vmatpush1.msra.mxu0 0.0
    %3219 = vmatprep.subr.mxu0 0.0
    %3220 = vmatpush1.msra.mxu0 0.0
    %3221 = vmatprep.subr.mxu0 0.0
    %3222 = vmatpush1.msra.mxu0 0.0
    %3223 = vmatprep.subr.mxu0 0.0
    %3224 = vmatpush1.msra.mxu0 0.0
    %3225 = vmatprep.subr.mxu0 0.0
    %3226 = vmatpush1.msra.mxu0 0.0
    %3227 = vmatprep.mubr.f32.mxu0 0.0
    %3228 = vmatmul.mubr.f32.gmra.mrb[0].mxu0 %v3161
    %v3229 = vpop.f32.mrb[0].mxu0
    %v3230 = vadd.f32 0.0, %v3229
    %v3231 = vpop.f32.mrb[0].mxu0
    %3232 = vdwg.mxu0
    %v3233 = vadd.f32 %v3085, %v3230
    %v3234 = vxor.u32 %v3158, 2147483648
    %v3235 = vxor.u32 %v3233, 2147483648
    %v3236 = vmul.f32 %v3234, 1.442695
    %v3237 = vpow.pop %v3236
    %v3238 = vmul.f32 %v3235, 1.442695
    %v3239 = vpow.pop %v3238
    %v3240 = vadd.f32 %v3237, 1.0
    %v3241 = vadd.f32 %v3239, 1.0
    %v3242 = vrcp.pop %v3240
    %v3243 = vmul.f32 1.0, %v3242
    %v3244 = vrcp.pop %v3241
    %v3245 = vmul.f32 1.0, %v3244
    %v3246 = vtanh.pop %v3158
    %v3247 = vtanh.pop %v3233
    %v3248 = vmul.f32 %v3243, %v3060
    %v3249 = vmul.f32 %v3245, %v3061
    %3252 = vrot.lane.b32.xlu0 %v3246, 32
    %v3253 = vpop.permute.xlu0 %3252
    %3254 = vrot.lane.b32.xlu0 %v3247, 32
    %v3255 = vpop.permute.xlu0 %3254
    %v3258 = vmul.f32 %v3243, %v3253
    %v3259 = vmul.f32 %v3245, %v3255
    %3262 = vrot.lane.b32.xlu0 %v3258, 32
    %v3263 = vpop.permute.xlu0 %3262
    %3264 = vrot.lane.b32.xlu0 %v3259, 32
    %v3265 = vpop.permute.xlu0 %3264
    %v3268 = vadd.f32 %v3248, %v3263
    %v3269 = vadd.f32 %v3249, %v3265
    %v3270 = vtanh.pop %v3268
    %v3271 = vtanh.pop %v3269
    %3274 = vrot.lane.b32.xlu0 %v3270, 32
    %v3275 = vpop.permute.xlu0 %3274
    %3276 = vrot.lane.b32.xlu0 %v3271, 32
    %v3277 = vpop.permute.xlu0 %3276
    %v3280 = vmul.f32 %v3243, %v3275
    %v3281 = vmul.f32 %v3245, %v3277
    %3283 = vrot.lane.b32.xlu0 %v3280, 64
    %v3284 = vpop.permute.xlu0 %3283
    %3286 = vst.msk [vmem:[#allocation4 + $0x20] sm:$0xff] %vm370, %v3284
    %3288 = vrot.lane.b32.xlu0 %v3281, 96
    %v3289 = vpop.permute.xlu0 %3288
    %3291 = vst.msk [vmem:[#allocation4 + $0x18] sm:$0xff] %vm584, %v3289
    %v3292 = vld [vmem:[#allocation2 + $0x50] sm:$0xff]
    %v3293 = vld [vmem:[#allocation2 + $0x28] sm:$0xff]
    %v3294 = vsel %vm370, %v3284, 0
    %3296 = vmatprep.subr.mxu0 0.0
    %3297 = vmatpush1.msra.mxu0 %v2058
    %3298 = vmatprep.subr.mxu0 0.0
    %3299 = vmatpush1.msra.mxu0 %v2060
    %3300 = vmatprep.subr.mxu0 0.0
    %3301 = vmatpush1.msra.mxu0 %v2062
    %3302 = vmatprep.subr.mxu0 0.0
    %3303 = vmatpush1.msra.mxu0 %v2064
    %3304 = vmatprep.subr.mxu0 0.0
    %3305 = vmatpush1.msra.mxu0 0.0
    %3306 = vmatprep.subr.mxu0 0.0
    %3307 = vmatpush1.msra.mxu0 0.0
    %3308 = vmatprep.subr.mxu0 0.0
    %3309 = vmatpush1.msra.mxu0 0.0
    %3310 = vmatprep.subr.mxu0 0.0
    %3311 = vmatpush1.msra.mxu0 0.0
    %3312 = vmatprep.subr.mxu0 0.0
    %3313 = vmatpush1.msra.mxu0 0.0
    %3314 = vmatprep.subr.mxu0 0.0
    %3315 = vmatpush1.msra.mxu0 0.0
    %3316 = vmatprep.subr.mxu0 0.0
    %3317 = vmatpush1.msra.mxu0 0.0
    %3318 = vmatprep.subr.mxu0 0.0
    %3319 = vmatpush1.msra.mxu0 0.0
    %3320 = vmatprep.subr.mxu0 0.0
    %3321 = vmatpush1.msra.mxu0 0.0
    %3322 = vmatprep.subr.mxu0 0.0
    %3323 = vmatpush1.msra.mxu0 0.0
    %3324 = vmatprep.subr.mxu0 0.0
    %3325 = vmatpush1.msra.mxu0 0.0
    %3326 = vmatprep.subr.mxu0 0.0
    %3327 = vmatpush1.msra.mxu0 0.0
    %3328 = vmatprep.subr.mxu0 0.0
    %3329 = vmatpush1.msra.mxu0 0.0
    %3330 = vmatprep.subr.mxu0 0.0
    %3331 = vmatpush1.msra.mxu0 0.0
    %3332 = vmatprep.subr.mxu0 0.0
    %3333 = vmatpush1.msra.mxu0 0.0
    %3334 = vmatprep.subr.mxu0 0.0
    %3335 = vmatpush1.msra.mxu0 0.0
    %3336 = vmatprep.subr.mxu0 0.0
    %3337 = vmatpush1.msra.mxu0 0.0
    %3338 = vmatprep.subr.mxu0 0.0
    %3339 = vmatpush1.msra.mxu0 0.0
    %3340 = vmatprep.subr.mxu0 0.0
    %3341 = vmatpush1.msra.mxu0 0.0
    %3342 = vmatprep.subr.mxu0 0.0
    %3343 = vmatpush1.msra.mxu0 0.0
    %3344 = vmatprep.subr.mxu0 0.0
    %3345 = vmatpush1.msra.mxu0 0.0
    %3346 = vmatprep.subr.mxu0 0.0
    %3347 = vmatpush1.msra.mxu0 0.0
    %3348 = vmatprep.subr.mxu0 0.0
    %3349 = vmatpush1.msra.mxu0 0.0
    %3350 = vmatprep.subr.mxu0 0.0
    %3351 = vmatpush1.msra.mxu0 0.0
    %3352 = vmatprep.subr.mxu0 0.0
    %3353 = vmatpush1.msra.mxu0 0.0
    %3354 = vmatprep.subr.mxu0 0.0
    %3355 = vmatpush1.msra.mxu0 0.0
    %3356 = vmatprep.subr.mxu0 0.0
    %3357 = vmatpush1.msra.mxu0 0.0
    %3358 = vmatprep.subr.mxu0 0.0
    %3359 = vmatpush1.msra.mxu0 0.0
    %3360 = vmatprep.mubr.f32.mxu0 0.0
    %3361 = vmatmul.mubr.f32.gmra.mrb[0].mxu0 %v3294
    %v3362 = vpop.f32.mrb[0].mxu0
    %v3363 = vadd.f32 0.0, %v3362
    %v3364 = vpop.f32.mrb[0].mxu0
    %3365 = vdwg.mxu0
    %v3366 = vadd.f32 %v3292, %v3363
    %3367 = vrot.lane.b32.xlu0 %v3281, 64
    %v3368 = vpop.permute.xlu0 %3367
    %v3369 = vsel %vm370, %v3368, 0
    %3371 = vmatprep.subr.mxu0 0.0
    %3372 = vmatpush1.msra.mxu0 %v2059
    %3373 = vmatprep.subr.mxu0 0.0
    %3374 = vmatpush1.msra.mxu0 %v2061
    %3375 = vmatprep.subr.mxu0 0.0
    %3376 = vmatpush1.msra.mxu0 %v2063
    %3377 = vmatprep.subr.mxu0 0.0
    %3378 = vmatpush1.msra.mxu0 %v2065
    %3379 = vmatprep.subr.mxu0 0.0
    %3380 = vmatpush1.msra.mxu0 0.0
    %3381 = vmatprep.subr.mxu0 0.0
    %3382 = vmatpush1.msra.mxu0 0.0
    %3383 = vmatprep.subr.mxu0 0.0
    %3384 = vmatpush1.msra.mxu0 0.0
    %3385 = vmatprep.subr.mxu0 0.0
    %3386 = vmatpush1.msra.mxu0 0.0
    %3387 = vmatprep.subr.mxu0 0.0
    %3388 = vmatpush1.msra.mxu0 0.0
    %3389 = vmatprep.subr.mxu0 0.0
    %3390 = vmatpush1.msra.mxu0 0.0
    %3391 = vmatprep.subr.mxu0 0.0
    %3392 = vmatpush1.msra.mxu0 0.0
    %3393 = vmatprep.subr.mxu0 0.0
    %3394 = vmatpush1.msra.mxu0 0.0
    %3395 = vmatprep.subr.mxu0 0.0
    %3396 = vmatpush1.msra.mxu0 0.0
    %3397 = vmatprep.subr.mxu0 0.0
    %3398 = vmatpush1.msra.mxu0 0.0
    %3399 = vmatprep.subr.mxu0 0.0
    %3400 = vmatpush1.msra.mxu0 0.0
    %3401 = vmatprep.subr.mxu0 0.0
    %3402 = vmatpush1.msra.mxu0 0.0
    %3403 = vmatprep.subr.mxu0 0.0
    %3404 = vmatpush1.msra.mxu0 0.0
    %3405 = vmatprep.subr.mxu0 0.0
    %3406 = vmatpush1.msra.mxu0 0.0
    %3407 = vmatprep.subr.mxu0 0.0
    %3408 = vmatpush1.msra.mxu0 0.0
    %3409 = vmatprep.subr.mxu0 0.0
    %3410 = vmatpush1.msra.mxu0 0.0
    %3411 = vmatprep.subr.mxu0 0.0
    %3412 = vmatpush1.msra.mxu0 0.0
    %3413 = vmatprep.subr.mxu0 0.0
    %3414 = vmatpush1.msra.mxu0 0.0
    %3415 = vmatprep.subr.mxu0 0.0
    %3416 = vmatpush1.msra.mxu0 0.0
    %3417 = vmatprep.subr.mxu0 0.0
    %3418 = vmatpush1.msra.mxu0 0.0
    %3419 = vmatprep.subr.mxu0 0.0
    %3420 = vmatpush1.msra.mxu0 0.0
    %3421 = vmatprep.subr.mxu0 0.0
    %3422 = vmatpush1.msra.mxu0 0.0
    %3423 = vmatprep.subr.mxu0 0.0
    %3424 = vmatpush1.msra.mxu0 0.0
    %3425 = vmatprep.subr.mxu0 0.0
    %3426 = vmatpush1.msra.mxu0 0.0
    %3427 = vmatprep.subr.mxu0 0.0
    %3428 = vmatpush1.msra.mxu0 0.0
    %3429 = vmatprep.subr.mxu0 0.0
    %3430 = vmatpush1.msra.mxu0 0.0
    %3431 = vmatprep.subr.mxu0 0.0
    %3432 = vmatpush1.msra.mxu0 0.0
    %3433 = vmatprep.subr.mxu0 0.0
    %3434 = vmatpush1.msra.mxu0 0.0
    %3435 = vmatprep.mubr.f32.mxu0 0.0
    %3436 = vmatmul.mubr.f32.gmra.mrb[0].mxu0 %v3369
    %v3437 = vpop.f32.mrb[0].mxu0
    %v3438 = vadd.f32 0.0, %v3437
    %v3439 = vpop.f32.mrb[0].mxu0
    %3440 = vdwg.mxu0
    %v3441 = vadd.f32 %v3293, %v3438
    %v3442 = vxor.u32 %v3366, 2147483648
    %v3443 = vxor.u32 %v3441, 2147483648
    %v3444 = vmul.f32 %v3442, 1.442695
    %v3445 = vpow.pop %v3444
    %v3446 = vmul.f32 %v3443, 1.442695
    %v3447 = vpow.pop %v3446
    %v3448 = vadd.f32 %v3445, 1.0
    %v3449 = vadd.f32 %v3447, 1.0
    %v3450 = vrcp.pop %v3448
    %v3451 = vmul.f32 1.0, %v3450
    %v3452 = vrcp.pop %v3449
    %v3453 = vmul.f32 1.0, %v3452
    %v3454 = vtanh.pop %v3366
    %v3455 = vtanh.pop %v3441
    %v3456 = vmul.f32 %v3451, %v3268
    %v3457 = vmul.f32 %v3453, %v3269
    %3460 = vrot.lane.b32.xlu0 %v3454, 32
    %v3461 = vpop.permute.xlu0 %3460
    %3462 = vrot.lane.b32.xlu0 %v3455, 32
    %v3463 = vpop.permute.xlu0 %3462
    %v3466 = vmul.f32 %v3451, %v3461
    %v3467 = vmul.f32 %v3453, %v3463
    %3470 = vrot.lane.b32.xlu0 %v3466, 32
    %v3471 = vpop.permute.xlu0 %3470
    %3472 = vrot.lane.b32.xlu0 %v3467, 32
    %v3473 = vpop.permute.xlu0 %3472
    %v3476 = vadd.f32 %v3456, %v3471
    %v3477 = vadd.f32 %v3457, %v3473
    %v3478 = vtanh.pop %v3476
    %v3479 = vtanh.pop %v3477
    %3482 = vrot.lane.b32.xlu0 %v3478, 32
    %v3483 = vpop.permute.xlu0 %3482
    %3484 = vrot.lane.b32.xlu0 %v3479, 32
    %v3485 = vpop.permute.xlu0 %3484
    %v3488 = vmul.f32 %v3451, %v3483
    %v3489 = vmul.f32 %v3453, %v3485
    %3491 = vrot.lane.b32.xlu0 %v3488, 64
    %v3492 = vpop.permute.xlu0 %3491
    %3494 = vst.msk [vmem:[#allocation4 + $0x28] sm:$0xff] %vm370, %v3492
    %3496 = vrot.lane.b32.xlu0 %v3489, 96
    %v3497 = vpop.permute.xlu0 %3496
    %3499 = vst.msk [vmem:[#allocation4 + $0x10] sm:$0xff] %vm584, %v3497
    %v3500 = vld [vmem:[#allocation2 + $0x60] sm:$0xff]
    %v3501 = vld [vmem:[#allocation2 + $0x18] sm:$0xff]
    %v3502 = vsel %vm370, %v3492, 0
    %3504 = vmatprep.subr.mxu0 0.0
    %3505 = vmatpush1.msra.mxu0 %v2058
    %3506 = vmatprep.subr.mxu0 0.0
    %3507 = vmatpush1.msra.mxu0 %v2060
    %3508 = vmatprep.subr.mxu0 0.0
    %3509 = vmatpush1.msra.mxu0 %v2062
    %3510 = vmatprep.subr.mxu0 0.0
    %3511 = vmatpush1.msra.mxu0 %v2064
    %3512 = vmatprep.subr.mxu0 0.0
    %3513 = vmatpush1.msra.mxu0 0.0
    %3514 = vmatprep.subr.mxu0 0.0
    %3515 = vmatpush1.msra.mxu0 0.0
    %3516 = vmatprep.subr.mxu0 0.0
    %3517 = vmatpush1.msra.mxu0 0.0
    %3518 = vmatprep.subr.mxu0 0.0
    %3519 = vmatpush1.msra.mxu0 0.0
    %3520 = vmatprep.subr.mxu0 0.0
    %3521 = vmatpush1.msra.mxu0 0.0
    %3522 = vmatprep.subr.mxu0 0.0
    %3523 = vmatpush1.msra.mxu0 0.0
    %3524 = vmatprep.subr.mxu0 0.0
    %3525 = vmatpush1.msra.mxu0 0.0
    %3526 = vmatprep.subr.mxu0 0.0
    %3527 = vmatpush1.msra.mxu0 0.0
    %3528 = vmatprep.subr.mxu0 0.0
    %3529 = vmatpush1.msra.mxu0 0.0
    %3530 = vmatprep.subr.mxu0 0.0
    %3531 = vmatpush1.msra.mxu0 0.0
    %3532 = vmatprep.subr.mxu0 0.0
    %3533 = vmatpush1.msra.mxu0 0.0
    %3534 = vmatprep.subr.mxu0 0.0
    %3535 = vmatpush1.msra.mxu0 0.0
    %3536 = vmatprep.subr.mxu0 0.0
    %3537 = vmatpush1.msra.mxu0 0.0
    %3538 = vmatprep.subr.mxu0 0.0
    %3539 = vmatpush1.msra.mxu0 0.0
    %3540 = vmatprep.subr.mxu0 0.0
    %3541 = vmatpush1.msra.mxu0 0.0
    %3542 = vmatprep.subr.mxu0 0.0
    %3543 = vmatpush1.msra.mxu0 0.0
    %3544 = vmatprep.subr.mxu0 0.0
    %3545 = vmatpush1.msra.mxu0 0.0
    %3546 = vmatprep.subr.mxu0 0.0
    %3547 = vmatpush1.msra.mxu0 0.0
    %3548 = vmatprep.subr.mxu0 0.0
    %3549 = vmatpush1.msra.mxu0 0.0
    %3550 = vmatprep.subr.mxu0 0.0
    %3551 = vmatpush1.msra.mxu0 0.0
    %3552 = vmatprep.subr.mxu0 0.0
    %3553 = vmatpush1.msra.mxu0 0.0
    %3554 = vmatprep.subr.mxu0 0.0
    %3555 = vmatpush1.msra.mxu0 0.0
    %3556 = vmatprep.subr.mxu0 0.0
    %3557 = vmatpush1.msra.mxu0 0.0
    %3558 = vmatprep.subr.mxu0 0.0
    %3559 = vmatpush1.msra.mxu0 0.0
    %3560 = vmatprep.subr.mxu0 0.0
    %3561 = vmatpush1.msra.mxu0 0.0
    %3562 = vmatprep.subr.mxu0 0.0
    %3563 = vmatpush1.msra.mxu0 0.0
    %3564 = vmatprep.subr.mxu0 0.0
    %3565 = vmatpush1.msra.mxu0 0.0
    %3566 = vmatprep.subr.mxu0 0.0
    %3567 = vmatpush1.msra.mxu0 0.0
    %3568 = vmatprep.mubr.f32.mxu0 0.0
    %3569 = vmatmul.mubr.f32.gmra.mrb[0].mxu0 %v3502
    %v3570 = vpop.f32.mrb[0].mxu0
    %v3571 = vadd.f32 0.0, %v3570
    %v3572 = vpop.f32.mrb[0].mxu0
    %3573 = vdwg.mxu0
    %v3574 = vadd.f32 %v3500, %v3571
    %3575 = vrot.lane.b32.xlu0 %v3489, 64
    %v3576 = vpop.permute.xlu0 %3575
    %v3577 = vsel %vm370, %v3576, 0
    %3579 = vmatprep.subr.mxu0 0.0
    %3580 = vmatpush1.msra.mxu0 %v2059
    %3581 = vmatprep.subr.mxu0 0.0
    %3582 = vmatpush1.msra.mxu0 %v2061
    %3583 = vmatprep.subr.mxu0 0.0
    %3584 = vmatpush1.msra.mxu0 %v2063
    %3585 = vmatprep.subr.mxu0 0.0
    %3586 = vmatpush1.msra.mxu0 %v2065
    %3587 = vmatprep.subr.mxu0 0.0
    %3588 = vmatpush1.msra.mxu0 0.0
    %3589 = vmatprep.subr.mxu0 0.0
    %3590 = vmatpush1.msra.mxu0 0.0
    %3591 = vmatprep.subr.mxu0 0.0
    %3592 = vmatpush1.msra.mxu0 0.0
    %3593 = vmatprep.subr.mxu0 0.0
    %3594 = vmatpush1.msra.mxu0 0.0
    %3595 = vmatprep.subr.mxu0 0.0
    %3596 = vmatpush1.msra.mxu0 0.0
    %3597 = vmatprep.subr.mxu0 0.0
    %3598 = vmatpush1.msra.mxu0 0.0
    %3599 = vmatprep.subr.mxu0 0.0
    %3600 = vmatpush1.msra.mxu0 0.0
    %3601 = vmatprep.subr.mxu0 0.0
    %3602 = vmatpush1.msra.mxu0 0.0
    %3603 = vmatprep.subr.mxu0 0.0
    %3604 = vmatpush1.msra.mxu0 0.0
    %3605 = vmatprep.subr.mxu0 0.0
    %3606 = vmatpush1.msra.mxu0 0.0
    %3607 = vmatprep.subr.mxu0 0.0
    %3608 = vmatpush1.msra.mxu0 0.0
    %3609 = vmatprep.subr.mxu0 0.0
    %3610 = vmatpush1.msra.mxu0 0.0
    %3611 = vmatprep.subr.mxu0 0.0
    %3612 = vmatpush1.msra.mxu0 0.0
    %3613 = vmatprep.subr.mxu0 0.0
    %3614 = vmatpush1.msra.mxu0 0.0
    %3615 = vmatprep.subr.mxu0 0.0
    %3616 = vmatpush1.msra.mxu0 0.0
    %3617 = vmatprep.subr.mxu0 0.0
    %3618 = vmatpush1.msra.mxu0 0.0
    %3619 = vmatprep.subr.mxu0 0.0
    %3620 = vmatpush1.msra.mxu0 0.0
    %3621 = vmatprep.subr.mxu0 0.0
    %3622 = vmatpush1.msra.mxu0 0.0
    %3623 = vmatprep.subr.mxu0 0.0
    %3624 = vmatpush1.msra.mxu0 0.0
    %3625 = vmatprep.subr.mxu0 0.0
    %3626 = vmatpush1.msra.mxu0 0.0
    %3627 = vmatprep.subr.mxu0 0.0
    %3628 = vmatpush1.msra.mxu0 0.0
    %3629 = vmatprep.subr.mxu0 0.0
    %3630 = vmatpush1.msra.mxu0 0.0
    %3631 = vmatprep.subr.mxu0 0.0
    %3632 = vmatpush1.msra.mxu0 0.0
    %3633 = vmatprep.subr.mxu0 0.0
    %3634 = vmatpush1.msra.mxu0 0.0
    %3635 = vmatprep.subr.mxu0 0.0
    %3636 = vmatpush1.msra.mxu0 0.0
    %3637 = vmatprep.subr.mxu0 0.0
    %3638 = vmatpush1.msra.mxu0 0.0
    %3639 = vmatprep.subr.mxu0 0.0
    %3640 = vmatpush1.msra.mxu0 0.0
    %3641 = vmatprep.subr.mxu0 0.0
    %3642 = vmatpush1.msra.mxu0 0.0
    %3643 = vmatprep.mubr.f32.mxu0 0.0
    %3644 = vmatmul.mubr.f32.gmra.mrb[0].mxu0 %v3577
    %v3645 = vpop.f32.mrb[0].mxu0
    %v3646 = vadd.f32 0.0, %v3645
    %v3647 = vpop.f32.mrb[0].mxu0
    %3648 = vdwg.mxu0
    %v3649 = vadd.f32 %v3501, %v3646
    %v3650 = vxor.u32 %v3574, 2147483648
    %v3651 = vxor.u32 %v3649, 2147483648
    %v3652 = vmul.f32 %v3650, 1.442695
    %v3653 = vpow.pop %v3652
    %v3654 = vmul.f32 %v3651, 1.442695
    %v3655 = vpow.pop %v3654
    %v3656 = vadd.f32 %v3653, 1.0
    %v3657 = vadd.f32 %v3655, 1.0
    %v3658 = vrcp.pop %v3656
    %v3659 = vmul.f32 1.0, %v3658
    %v3660 = vrcp.pop %v3657
    %v3661 = vmul.f32 1.0, %v3660
    %v3662 = vtanh.pop %v3574
    %v3663 = vtanh.pop %v3649
    %v3664 = vmul.f32 %v3659, %v3476
    %v3665 = vmul.f32 %v3661, %v3477
    %3668 = vrot.lane.b32.xlu0 %v3662, 32
    %v3669 = vpop.permute.xlu0 %3668
    %3670 = vrot.lane.b32.xlu0 %v3663, 32
    %v3671 = vpop.permute.xlu0 %3670
    %v3674 = vmul.f32 %v3659, %v3669
    %v3675 = vmul.f32 %v3661, %v3671
    %3678 = vrot.lane.b32.xlu0 %v3674, 32
    %v3679 = vpop.permute.xlu0 %3678
    %3680 = vrot.lane.b32.xlu0 %v3675, 32
    %v3681 = vpop.permute.xlu0 %3680
    %v3684 = vadd.f32 %v3664, %v3679
    %v3685 = vadd.f32 %v3665, %v3681
    %v3686 = vtanh.pop %v3684
    %v3687 = vtanh.pop %v3685
    %3690 = vrot.lane.b32.xlu0 %v3686, 32
    %v3691 = vpop.permute.xlu0 %3690
    %3692 = vrot.lane.b32.xlu0 %v3687, 32
    %v3693 = vpop.permute.xlu0 %3692
    %v3696 = vmul.f32 %v3659, %v3691
    %v3697 = vmul.f32 %v3661, %v3693
    %3699 = vrot.lane.b32.xlu0 %v3696, 64
    %v3700 = vpop.permute.xlu0 %3699
    %3702 = vst.msk [vmem:[#allocation4 + $0x30] sm:$0xff] %vm370, %v3700
    %3704 = vrot.lane.b32.xlu0 %v3697, 96
    %v3705 = vpop.permute.xlu0 %3704
    %3707 = vst.msk [vmem:[#allocation4 + $0x8] sm:$0xff] %vm584, %v3705
    %v3708 = vld [vmem:[#allocation2 + $0x70] sm:$0xff]
    %v3709 = vld [vmem:[#allocation2 + $0x8] sm:$0xff]
    %v3710 = vsel %vm370, %v3700, 0
    %3712 = vmatprep.subr.mxu0 0.0
    %3713 = vmatpush1.msra.mxu0 %v2058
    %3714 = vmatprep.subr.mxu0 0.0
    %3715 = vmatpush1.msra.mxu0 %v2060
    %3716 = vmatprep.subr.mxu0 0.0
    %3717 = vmatpush1.msra.mxu0 %v2062
    %3718 = vmatprep.subr.mxu0 0.0
    %3719 = vmatpush1.msra.mxu0 %v2064
    %3720 = vmatprep.subr.mxu0 0.0
    %3721 = vmatpush1.msra.mxu0 0.0
    %3722 = vmatprep.subr.mxu0 0.0
    %3723 = vmatpush1.msra.mxu0 0.0
    %3724 = vmatprep.subr.mxu0 0.0
    %3725 = vmatpush1.msra.mxu0 0.0
    %3726 = vmatprep.subr.mxu0 0.0
    %3727 = vmatpush1.msra.mxu0 0.0
    %3728 = vmatprep.subr.mxu0 0.0
    %3729 = vmatpush1.msra.mxu0 0.0
    %3730 = vmatprep.subr.mxu0 0.0
    %3731 = vmatpush1.msra.mxu0 0.0
    %3732 = vmatprep.subr.mxu0 0.0
    %3733 = vmatpush1.msra.mxu0 0.0
    %3734 = vmatprep.subr.mxu0 0.0
    %3735 = vmatpush1.msra.mxu0 0.0
    %3736 = vmatprep.subr.mxu0 0.0
    %3737 = vmatpush1.msra.mxu0 0.0
    %3738 = vmatprep.subr.mxu0 0.0
    %3739 = vmatpush1.msra.mxu0 0.0
    %3740 = vmatprep.subr.mxu0 0.0
    %3741 = vmatpush1.msra.mxu0 0.0
    %3742 = vmatprep.subr.mxu0 0.0
    %3743 = vmatpush1.msra.mxu0 0.0
    %3744 = vmatprep.subr.mxu0 0.0
    %3745 = vmatpush1.msra.mxu0 0.0
    %3746 = vmatprep.subr.mxu0 0.0
    %3747 = vmatpush1.msra.mxu0 0.0
    %3748 = vmatprep.subr.mxu0 0.0
    %3749 = vmatpush1.msra.mxu0 0.0
    %3750 = vmatprep.subr.mxu0 0.0
    %3751 = vmatpush1.msra.mxu0 0.0
    %3752 = vmatprep.subr.mxu0 0.0
    %3753 = vmatpush1.msra.mxu0 0.0
    %3754 = vmatprep.subr.mxu0 0.0
    %3755 = vmatpush1.msra.mxu0 0.0
    %3756 = vmatprep.subr.mxu0 0.0
    %3757 = vmatpush1.msra.mxu0 0.0
    %3758 = vmatprep.subr.mxu0 0.0
    %3759 = vmatpush1.msra.mxu0 0.0
    %3760 = vmatprep.subr.mxu0 0.0
    %3761 = vmatpush1.msra.mxu0 0.0
    %3762 = vmatprep.subr.mxu0 0.0
    %3763 = vmatpush1.msra.mxu0 0.0
    %3764 = vmatprep.subr.mxu0 0.0
    %3765 = vmatpush1.msra.mxu0 0.0
    %3766 = vmatprep.subr.mxu0 0.0
    %3767 = vmatpush1.msra.mxu0 0.0
    %3768 = vmatprep.subr.mxu0 0.0
    %3769 = vmatpush1.msra.mxu0 0.0
    %3770 = vmatprep.subr.mxu0 0.0
    %3771 = vmatpush1.msra.mxu0 0.0
    %3772 = vmatprep.subr.mxu0 0.0
    %3773 = vmatpush1.msra.mxu0 0.0
    %3774 = vmatprep.subr.mxu0 0.0
    %3775 = vmatpush1.msra.mxu0 0.0
    %3776 = vmatprep.mubr.f32.mxu0 0.0
    %3777 = vmatmul.mubr.f32.gmra.mrb[0].mxu0 %v3710
    %v3778 = vpop.f32.mrb[0].mxu0
    %v3779 = vadd.f32 0.0, %v3778
    %v3780 = vpop.f32.mrb[0].mxu0
    %3781 = vdwg.mxu0
    %v3782 = vadd.f32 %v3708, %v3779
    %3783 = vrot.lane.b32.xlu0 %v3697, 64
    %v3784 = vpop.permute.xlu0 %3783
    %v3785 = vsel %vm370, %v3784, 0
    %3787 = vmatprep.subr.mxu0 0.0
    %3788 = vmatpush1.msra.mxu0 %v2059
    %3789 = vmatprep.subr.mxu0 0.0
    %3790 = vmatpush1.msra.mxu0 %v2061
    %3791 = vmatprep.subr.mxu0 0.0
    %3792 = vmatpush1.msra.mxu0 %v2063
    %3793 = vmatprep.subr.mxu0 0.0
    %3794 = vmatpush1.msra.mxu0 %v2065
    %3795 = vmatprep.subr.mxu0 0.0
    %3796 = vmatpush1.msra.mxu0 0.0
    %3797 = vmatprep.subr.mxu0 0.0
    %3798 = vmatpush1.msra.mxu0 0.0
    %3799 = vmatprep.subr.mxu0 0.0
    %3800 = vmatpush1.msra.mxu0 0.0
    %3801 = vmatprep.subr.mxu0 0.0
    %3802 = vmatpush1.msra.mxu0 0.0
    %3803 = vmatprep.subr.mxu0 0.0
    %3804 = vmatpush1.msra.mxu0 0.0
    %3805 = vmatprep.subr.mxu0 0.0
    %3806 = vmatpush1.msra.mxu0 0.0
    %3807 = vmatprep.subr.mxu0 0.0
    %3808 = vmatpush1.msra.mxu0 0.0
    %3809 = vmatprep.subr.mxu0 0.0
    %3810 = vmatpush1.msra.mxu0 0.0
    %3811 = vmatprep.subr.mxu0 0.0
    %3812 = vmatpush1.msra.mxu0 0.0
    %3813 = vmatprep.subr.mxu0 0.0
    %3814 = vmatpush1.msra.mxu0 0.0
    %3815 = vmatprep.subr.mxu0 0.0
    %3816 = vmatpush1.msra.mxu0 0.0
    %3817 = vmatprep.subr.mxu0 0.0
    %3818 = vmatpush1.msra.mxu0 0.0
    %3819 = vmatprep.subr.mxu0 0.0
    %3820 = vmatpush1.msra.mxu0 0.0
    %3821 = vmatprep.subr.mxu0 0.0
    %3822 = vmatpush1.msra.mxu0 0.0
    %3823 = vmatprep.subr.mxu0 0.0
    %3824 = vmatpush1.msra.mxu0 0.0
    %3825 = vmatprep.subr.mxu0 0.0
    %3826 = vmatpush1.msra.mxu0 0.0
    %3827 = vmatprep.subr.mxu0 0.0
    %3828 = vmatpush1.msra.mxu0 0.0
    %3829 = vmatprep.subr.mxu0 0.0
    %3830 = vmatpush1.msra.mxu0 0.0
    %3831 = vmatprep.subr.mxu0 0.0
    %3832 = vmatpush1.msra.mxu0 0.0
    %3833 = vmatprep.subr.mxu0 0.0
    %3834 = vmatpush1.msra.mxu0 0.0
    %3835 = vmatprep.subr.mxu0 0.0
    %3836 = vmatpush1.msra.mxu0 0.0
    %3837 = vmatprep.subr.mxu0 0.0
    %3838 = vmatpush1.msra.mxu0 0.0
    %3839 = vmatprep.subr.mxu0 0.0
    %3840 = vmatpush1.msra.mxu0 0.0
    %3841 = vmatprep.subr.mxu0 0.0
    %3842 = vmatpush1.msra.mxu0 0.0
    %3843 = vmatprep.subr.mxu0 0.0
    %3844 = vmatpush1.msra.mxu0 0.0
    %3845 = vmatprep.subr.mxu0 0.0
    %3846 = vmatpush1.msra.mxu0 0.0
    %3847 = vmatprep.subr.mxu0 0.0
    %3848 = vmatpush1.msra.mxu0 0.0
    %3849 = vmatprep.subr.mxu0 0.0
    %3850 = vmatpush1.msra.mxu0 0.0
    %3851 = vmatprep.mubr.f32.mxu0 0.0
    %3852 = vmatmul.mubr.f32.gmra.mrb[0].mxu0 %v3785
    %v3853 = vpop.f32.mrb[0].mxu0
    %v3854 = vadd.f32 0.0, %v3853
    %v3855 = vpop.f32.mrb[0].mxu0
    %3856 = vdwg.mxu0
    %v3857 = vadd.f32 %v3709, %v3854
    %v3858 = vxor.u32 %v3782, 2147483648
    %v3859 = vxor.u32 %v3857, 2147483648
    %v3860 = vmul.f32 %v3858, 1.442695
    %v3861 = vpow.pop %v3860
    %v3862 = vmul.f32 %v3859, 1.442695
    %v3863 = vpow.pop %v3862
    %v3864 = vadd.f32 %v3861, 1.0
    %v3865 = vadd.f32 %v3863, 1.0
    %v3866 = vrcp.pop %v3864
    %v3867 = vmul.f32 1.0, %v3866
    %v3868 = vrcp.pop %v3865
    %v3869 = vmul.f32 1.0, %v3868
    %v3870 = vtanh.pop %v3782
    %v3871 = vtanh.pop %v3857
    %v3872 = vmul.f32 %v3867, %v3684
    %v3873 = vmul.f32 %v3869, %v3685
    %3876 = vrot.lane.b32.xlu0 %v3870, 32
    %v3877 = vpop.permute.xlu0 %3876
    %3878 = vrot.lane.b32.xlu0 %v3871, 32
    %v3879 = vpop.permute.xlu0 %3878
    %v3882 = vmul.f32 %v3867, %v3877
    %v3883 = vmul.f32 %v3869, %v3879
    %3886 = vrot.lane.b32.xlu0 %v3882, 32
    %v3887 = vpop.permute.xlu0 %3886
    %3888 = vrot.lane.b32.xlu0 %v3883, 32
    %v3889 = vpop.permute.xlu0 %3888
    %v3892 = vadd.f32 %v3872, %v3887
    %v3893 = vadd.f32 %v3873, %v3889
    %v3894 = vtanh.pop %v3892
    %v3895 = vtanh.pop %v3893
    %3898 = vrot.lane.b32.xlu0 %v3894, 32
    %v3899 = vpop.permute.xlu0 %3898
    %3900 = vrot.lane.b32.xlu0 %v3895, 32
    %v3901 = vpop.permute.xlu0 %3900
    %v3904 = vmul.f32 %v3867, %v3899
    %v3905 = vmul.f32 %v3869, %v3901
    %3907 = vrot.lane.b32.xlu0 %v3904, 64
    %v3908 = vpop.permute.xlu0 %3907
    %3910 = vst.msk [vmem:[#allocation4 + $0x38] sm:$0xff] %vm370, %v3908
    %3912 = vrot.lane.b32.xlu0 %v3905, 96
    %v3913 = vpop.permute.xlu0 %3912
    %3915 = vst.msk [vmem:[#allocation4] sm:$0xff] %vm584, %v3913
    %v3916 = vld [vmem:[#allocation4] sm:$0xff]
    %v3917 = vld [vmem:[#allocation4 + $0x8] sm:$0xff]
    %v3918 = vld [vmem:[#allocation4 + $0x10] sm:$0xff]
    %v3919 = vld [vmem:[#allocation4 + $0x18] sm:$0xff]
    %v3920 = vld [vmem:[#allocation4 + $0x20] sm:$0xff]
    %v3921 = vld [vmem:[#allocation4 + $0x28] sm:$0xff]
    %v3922 = vld [vmem:[#allocation4 + $0x30] sm:$0xff]
    %v3923 = vld [vmem:[#allocation4 + $0x38] sm:$0xff]
    %v3924 = vld [vmem:[#allocation20] sm:$0xff]
    %v3925 = vld [vmem:[#allocation20 + $0x8] sm:$0xff]
    %v3926 = vld [vmem:[#allocation20 + $0x10] sm:$0xff]
    %v3927 = vld [vmem:[#allocation20 + $0x18] sm:$0xff]
    %v3928 = vld [vmem:[#allocation20 + $0x20] sm:$0xff]
    %v3929 = vld [vmem:[#allocation20 + $0x28] sm:$0xff]
    %v3930 = vld [vmem:[#allocation20 + $0x30] sm:$0xff]
    %v3931 = vld [vmem:[#allocation20 + $0x38] sm:$0xff]
    %v3932 = vld [vmem:[#allocation22] sm:$0x1]
    %v3934 = vlaneseq
    %v3935 = vshrl.u32 %v3934, 7
    %v3936 = vsub.s32 0, %v3935
    %v3937 = vrot.slane %v3932, %v3936
    %v3940 = vsel %vm2086, %v3916, 0
    %v3943 = vsel %vm2086, %v3917, 0
    %v3946 = vsel %vm2086, %v3918, 0
    %v3949 = vsel %vm2086, %v3919, 0
    %v3952 = vsel %vm2086, %v3920, 0
    %v3955 = vsel %vm2086, %v3921, 0
    %v3958 = vsel %vm2086, %v3922, 0
    %v3961 = vsel %vm2086, %v3923, 0
    %3963 = vmatprep.subr.mxu0 0.0
    %3964 = vmatpush1.msra.mxu0 %v3924
    %3965 = vmatprep.subr.mxu0 0.0
    %3966 = vmatpush1.msra.mxu0 %v3925
    %3967 = vmatprep.subr.mxu0 0.0
    %3968 = vmatpush1.msra.mxu0 %v3926
    %3969 = vmatprep.subr.mxu0 0.0
    %3970 = vmatpush1.msra.mxu0 %v3927
    %3971 = vmatprep.subr.mxu0 0.0
    %3972 = vmatpush1.msra.mxu0 %v3928
    %3973 = vmatprep.subr.mxu0 0.0
    %3974 = vmatpush1.msra.mxu0 %v3929
    %3975 = vmatprep.subr.mxu0 0.0
    %3976 = vmatpush1.msra.mxu0 %v3930
    %3977 = vmatprep.subr.mxu0 0.0
    %3978 = vmatpush1.msra.mxu0 %v3931
    %3979 = vmatprep.subr.mxu0 0.0
    %3980 = vmatpush1.msra.mxu0 0.0
    %3981 = vmatprep.subr.mxu0 0.0
    %3982 = vmatpush1.msra.mxu0 0.0
    %3983 = vmatprep.subr.mxu0 0.0
    %3984 = vmatpush1.msra.mxu0 0.0
    %3985 = vmatprep.subr.mxu0 0.0
    %3986 = vmatpush1.msra.mxu0 0.0
    %3987 = vmatprep.subr.mxu0 0.0
    %3988 = vmatpush1.msra.mxu0 0.0
    %3989 = vmatprep.subr.mxu0 0.0
    %3990 = vmatpush1.msra.mxu0 0.0
    %3991 = vmatprep.subr.mxu0 0.0
    %3992 = vmatpush1.msra.mxu0 0.0
    %3993 = vmatprep.subr.mxu0 0.0
    %3994 = vmatpush1.msra.mxu0 0.0
    %3995 = vmatprep.subr.mxu0 0.0
    %3996 = vmatpush1.msra.mxu0 0.0
    %3997 = vmatprep.subr.mxu0 0.0
    %3998 = vmatpush1.msra.mxu0 0.0
    %3999 = vmatprep.subr.mxu0 0.0
    %4000 = vmatpush1.msra.mxu0 0.0
    %4001 = vmatprep.subr.mxu0 0.0
    %4002 = vmatpush1.msra.mxu0 0.0
    %4003 = vmatprep.subr.mxu0 0.0
    %4004 = vmatpush1.msra.mxu0 0.0
    %4005 = vmatprep.subr.mxu0 0.0
    %4006 = vmatpush1.msra.mxu0 0.0
    %4007 = vmatprep.subr.mxu0 0.0
    %4008 = vmatpush1.msra.mxu0 0.0
    %4009 = vmatprep.subr.mxu0 0.0
    %4010 = vmatpush1.msra.mxu0 0.0
    %4011 = vmatprep.subr.mxu0 0.0
    %4012 = vmatpush1.msra.mxu0 0.0
    %4013 = vmatprep.subr.mxu0 0.0
    %4014 = vmatpush1.msra.mxu0 0.0
    %4015 = vmatprep.subr.mxu0 0.0
    %4016 = vmatpush1.msra.mxu0 0.0
    %4017 = vmatprep.subr.mxu0 0.0
    %4018 = vmatpush1.msra.mxu0 0.0
    %4019 = vmatprep.subr.mxu0 0.0
    %4020 = vmatpush1.msra.mxu0 0.0
    %4021 = vmatprep.subr.mxu0 0.0
    %4022 = vmatpush1.msra.mxu0 0.0
    %4023 = vmatprep.subr.mxu0 0.0
    %4024 = vmatpush1.msra.mxu0 0.0
    %4025 = vmatprep.subr.mxu0 0.0
    %4026 = vmatpush1.msra.mxu0 0.0
    %4027 = vmatprep.mubr.f32.mxu0 0.0
    %4028 = vmatmul.mubr.f32.gmra.mrb[0].mxu0 %v3940
    %v4029 = vpop.f32.mrb[0].mxu0
    %v4030 = vadd.f32 %v3937, %v4029
    %v4031 = vpop.f32.mrb[0].mxu0
    %4032 = vmatprep.mubr.f32.mxu0 0.0
    %4033 = vmatmul.mubr.f32.gmra.mrb[0].mxu0 %v3943
    %v4034 = vpop.f32.mrb[0].mxu0
    %v4035 = vadd.f32 %v3937, %v4034
    %v4036 = vpop.f32.mrb[0].mxu0
    %4037 = vmatprep.mubr.f32.mxu0 0.0
    %4038 = vmatmul.mubr.f32.gmra.mrb[0].mxu0 %v3946
    %v4039 = vpop.f32.mrb[0].mxu0
    %v4040 = vadd.f32 %v3937, %v4039
    %v4041 = vpop.f32.mrb[0].mxu0
    %4042 = vmatprep.mubr.f32.mxu0 0.0
    %4043 = vmatmul.mubr.f32.gmra.mrb[0].mxu0 %v3949
    %v4044 = vpop.f32.mrb[0].mxu0
    %v4045 = vadd.f32 %v3937, %v4044
    %v4046 = vpop.f32.mrb[0].mxu0
    %4047 = vmatprep.mubr.f32.mxu0 0.0
    %4048 = vmatmul.mubr.f32.gmra.mrb[0].mxu0 %v3952
    %v4049 = vpop.f32.mrb[0].mxu0
    %v4050 = vadd.f32 %v3937, %v4049
    %v4051 = vpop.f32.mrb[0].mxu0
    %4052 = vmatprep.mubr.f32.mxu0 0.0
    %4053 = vmatmul.mubr.f32.gmra.mrb[0].mxu0 %v3955
    %v4054 = vpop.f32.mrb[0].mxu0
    %v4055 = vadd.f32 %v3937, %v4054
    %v4056 = vpop.f32.mrb[0].mxu0
    %4057 = vmatprep.mubr.f32.mxu0 0.0
    %4058 = vmatmul.mubr.f32.gmra.mrb[0].mxu0 %v3958
    %v4059 = vpop.f32.mrb[0].mxu0
    %v4060 = vadd.f32 %v3937, %v4059
    %v4061 = vpop.f32.mrb[0].mxu0
    %4062 = vmatprep.mubr.f32.mxu0 0.0
    %4063 = vmatmul.mubr.f32.gmra.mrb[0].mxu0 %v3961
    %v4064 = vpop.f32.mrb[0].mxu0
    %v4065 = vadd.f32 %v3937, %v4064
    %v4066 = vpop.f32.mrb[0].mxu0
    %4067 = vdwg.mxu0
    %vm4068 = vcmask 31744
    %4069 = vst.msk [vmem:[#allocation23] sm:$0xff] %vm4068, %v4030
    %4070 = vst.msk [vmem:[#allocation23 + $0x8] sm:$0xff] %vm4068, %v4035
    %4071 = vst.msk [vmem:[#allocation23 + $0x10] sm:$0xff] %vm4068, %v4040
    %4072 = vst.msk [vmem:[#allocation23 + $0x18] sm:$0xff] %vm4068, %v4045
    %4073 = vst.msk [vmem:[#allocation23 + $0x20] sm:$0xff] %vm4068, %v4050
    %4074 = vst.msk [vmem:[#allocation23 + $0x28] sm:$0xff] %vm4068, %v4055
    %4075 = vst.msk [vmem:[#allocation23 + $0x30] sm:$0xff] %vm4068, %v4060
    %4076 = vst.msk [vmem:[#allocation23 + $0x38] sm:$0xff] %vm4068, %v4065
    // Predicated region
    $region90: #{lstm_model_forward.1} parent=1 // pred_check
      _
    $region91: #{lstm_model_forward.1} parent=1 // pred_check_branch
      %4078 = sbr.rel (0) target = $region93
    $region92: #{lstm_model_forward.1} parent=1 // pred_region
      %s4080 = ssub.s32 1024, 1024
      %4081 = vsyncadd [#allocation7], %s4080
      %s4082 = sshll.u32 [#allocation23], 4
      %s4083 = int_to_ptr.vmem [resolvable:$true] %s4082
      %4088 = dma.vmem_to_hbm [thread:$0]  %s4083, 1024, %s11, [#allocation7], 128, 128, 8
    $region93: #{lstm_model_forward.1} parent=1 // pred_fallthru
      _
    // Predicated region
    $region94: #{lstm_model_forward.1} parent=1 // pred_check
      _
    $region95: #{lstm_model_forward.1} parent=1 // pred_check_branch
      %4090 = sbr.rel (0) target = $region97
    $region96: #{lstm_model_forward.1} parent=1 // pred_region
      %4091 = dma.done [#allocation7], 1024
    $region97: #{lstm_model_forward.1} parent=1 // pred_fallthru
      _
    %4092 = vsyncpa [#allocation6], 1
    %4093 = vsyncpa [#allocation9], 1
    %4094 = vsyncpa [#allocation12], 1
    %4095 = vsyncpa [#allocation15], 1
    %4096 = vsyncpa [#allocation18], 1
    %4097 = vsyncpa [#allocation21], 1
    %4098 = vsyncpa [#allocation7], 1

</llo_original>
